<compile_context>
chip_gen: v5e
topology: v5e:2x2
jax: 0.10.0
libtpu: 0.0.40
codegen_flags: <defaults>
</compile_context>

<pallas_src>
import functools

import jax
import jax.numpy as jnp
from jax.experimental import pallas as pl
from jax.experimental.pallas import tpu as pltpu

# ---- configuration (mirrors TransPointNetBackbone.__init__ defaults, use_seg=True) ----
PC_DIM = 6
MASK_DIM = 2
STATE_DIM = 128
FEAT_DIM = 128
OUT_DIM = FEAT_DIM
IN_CH = PC_DIM + MASK_DIM          # per-point channels after the torch-side concat
NUM_PN = MASK_DIM + 2              # background, seg0, seg1, all-points PointNets
N_TOKENS = NUM_PN + 1              # + state token
T_PAD = 8                          # tokens padded to a full sublane tile
FF_DIM = 256
H1_DIM = 64                        # PointNet layer-1 width (per PointNet)
H2_DIM = 128                       # PointNet layer-2 width

_TARGET_ROWS = 2048                # aim for ~1-2k point rows per grid step
_NEG_BIG = -1e10                   # masked-max fill; LayerNorm-safe ((-1e10)^2 < f32 max)


def _layer_norm(x, g, b, eps=1e-5):
    mu = jnp.mean(x, axis=-1, keepdims=True)
    var = jnp.mean((x - mu) ** 2, axis=-1, keepdims=True)
    return (x - mu) * jax.lax.rsqrt(var + eps) * g + b


# --------------------------------------------------------------------------------------
# Pallas kernel: one grid step = BLK_B batches of the full forward pass
# --------------------------------------------------------------------------------------
def _kernel(pc_ref, mask_ref, state_ref, *rest):
    out_ref, tok_ref = rest[-2], rest[-1]
    (w1_pc, w1_mask, b1, w2, b2, w3, b3,
     st_w, st_b, w_qkv, b_qkv, w_o, b_o, ln_g, ln_b,
     ff_w1, ff_b1, ff_w2, ff_b2, gm_w, gm_b) = [r[...] for r in rest[:-2]]

    blk_b, n_pts, _ = pc_ref.shape
    rows = blk_b * n_pts

    pc2d = pc_ref[...].reshape(rows, PC_DIM)                 # bf16
    mask_bf = mask_ref[...]                                  # (blk_b, n, MASK_DIM) bf16
    mask2d = mask_bf.reshape(rows, MASK_DIM)
    mask_f = mask_bf.astype(jnp.float32)

    # --- fused PointNet layer 1 (all 4 PointNets at once; split pc/mask weights replace
    #     the torch-side channel concat) ---
    h1 = jnp.dot(pc2d, w1_pc, preferred_element_type=jnp.float32)
    h1 = h1 + jnp.dot(mask2d, w1_mask, preferred_element_type=jnp.float32)
    h1 = jnp.maximum(h1 + b1, 0.0)                           # (rows, NUM_PN*H1_DIM) f32

    # per-PointNet point masks: background, seg0, seg1, all-points
    bg = jnp.sum(mask_f, axis=-1, keepdims=True) <= 0.5      # (blk_b, n, 1)
    group_masks = (bg, mask_f[..., 0:1] > 0.5, mask_f[..., 1:2] > 0.5, None)

    # token scratch: zero everything (incl. the padded token slots read by attention)
    tok_ref[...] = jnp.zeros_like(tok_ref)

    # state token
    state = state_ref[...]                                   # (blk_b, STATE_DIM) f32
    tok_ref[:, 0, :] = jnp.maximum(
        jnp.dot(state, st_w, preferred_element_type=jnp.float32) + st_b, 0.0)

    # --- grouped PointNet layers 2/3 + masked max pool (one token per PointNet) ---
    for g in range(NUM_PN):
        h1_g = h1[:, g * H1_DIM:(g + 1) * H1_DIM].astype(jnp.bfloat16)
        h2 = jnp.maximum(
            jnp.dot(h1_g, w2[g], preferred_element_type=jnp.float32) + b2[g], 0.0)
        f = jnp.dot(h2.astype(jnp.bfloat16), w3[g],
                    preferred_element_type=jnp.float32) + b3[g]
        f = f.reshape(blk_b, n_pts, FEAT_DIM)
        if group_masks[g] is not None:
            f = jnp.where(group_masks[g], f, jnp.float32(_NEG_BIG))
        tok_ref[:, 1 + g, :] = jnp.max(f, axis=1)            # (blk_b, FEAT_DIM)

    # --- 1-layer single-head transformer encoder over the N_TOKENS tokens ---
    x = tok_ref[...]                                         # (blk_b, T_PAD, F) f32
    x2d = x.reshape(blk_b * T_PAD, FEAT_DIM)

    qkv = jnp.dot(x2d, w_qkv, preferred_element_type=jnp.float32) + b_qkv
    q = qkv[:, 0:FEAT_DIM].reshape(blk_b, T_PAD, FEAT_DIM)
    k = qkv[:, FEAT_DIM:2 * FEAT_DIM].reshape(blk_b, T_PAD, FEAT_DIM)
    v = qkv[:, 2 * FEAT_DIM:3 * FEAT_DIM].reshape(blk_b, T_PAD, FEAT_DIM)

    scores = jnp.einsum('btd,bsd->bts', q, k,
                        preferred_element_type=jnp.float32) * (FEAT_DIM ** -0.5)
    key_live = jax.lax.broadcasted_iota(jnp.int32, (1, 1, T_PAD), 2) < N_TOKENS
    scores = jnp.where(key_live, scores, jnp.float32(-1e30))
    scores = scores - jnp.max(scores, axis=-1, keepdims=True)
    e = jnp.exp(scores)
    attn = e / jnp.sum(e, axis=-1, keepdims=True)
    ctx = jnp.einsum('bts,bsd->btd', attn, v, preferred_element_type=jnp.float32)
    ctx2d = jnp.dot(ctx.reshape(blk_b * T_PAD, FEAT_DIM), w_o,
                    preferred_element_type=jnp.float32) + b_o

    x2d = _layer_norm(x2d + ctx2d, ln_g[0], ln_b[0])
    hf = jnp.maximum(jnp.dot(x2d, ff_w1, preferred_element_type=jnp.float32) + ff_b1, 0.0)
    x2d = _layer_norm(
        x2d + jnp.dot(hf, ff_w2, preferred_element_type=jnp.float32) + ff_b2,
        ln_g[1], ln_b[1])

    # mean over the real tokens only, then the final global linear
    x = x2d.reshape(blk_b, T_PAD, FEAT_DIM)
    pooled = jnp.mean(x[:, :N_TOKENS, :], axis=1)            # (blk_b, F)
    out_ref[...] = jnp.dot(pooled, gm_w, preferred_element_type=jnp.float32) + gm_b


# --------------------------------------------------------------------------------------
# Wrapper
# --------------------------------------------------------------------------------------
def _const_index(ndim, i):
    return (0,) * ndim


def pack_params(params):
    """Pack the module-format weights into the fused / bf16 kernel format."""
    (pn_w1, pn_b1, pn_w2, pn_b2, pn_w3, pn_b3,
     st_w, st_b, attn_w, attn_b, ln_g, ln_b,
     ff_w1, ff_b1, ff_w2, ff_b2, gm_w, gm_b) = params

    w1 = jnp.concatenate([pn_w1[i] for i in range(NUM_PN)], axis=-1)     # (IN_CH, NUM_PN*H1)
    b1 = jnp.concatenate([pn_b1[i] for i in range(NUM_PN)], axis=-1)     # (1, NUM_PN*H1)
    w_qkv = jnp.concatenate([attn_w[0], attn_w[1], attn_w[2]], axis=-1)  # (F, 3F)
    b_qkv = jnp.concatenate([attn_b[0], attn_b[1], attn_b[2]], axis=-1)  # (1, 3F)

    return (w1[:PC_DIM].astype(jnp.bfloat16),        # w1_pc
            w1[PC_DIM:].astype(jnp.bfloat16),        # w1_mask
            b1,
            pn_w2.astype(jnp.bfloat16), pn_b2,
            pn_w3.astype(jnp.bfloat16), pn_b3,
            st_w, st_b,
            w_qkv, b_qkv, attn_w[3], attn_b[3],
            ln_g, ln_b,
            ff_w1, ff_b1, ff_w2, ff_b2,
            gm_w, gm_b)


def trans_pointnet_backbone(input_pc, params, *, block_b=None):
    """JAX/Pallas equivalent of TransPointNetBackbone.forward.

    input_pc['pc']   : (B, PC_DIM, N)   torch-style NCW point cloud
    input_pc['mask'] : (B, N, MASK_DIM) segmentation masks
    input_pc['state']: (B, STATE_DIM)
    returns (features (B, OUT_DIM), {})
    """
    pc_ncw = input_pc['pc']
    mask = input_pc['mask']
    state = input_pc['state']
    B, _, N = pc_ncw.shape
    assert N % 8 == 0, "point count must be a multiple of 8"
    # TODO(synk): ragged / non-multiple-of-8 point counts would need point padding + masking.

    # channels-last bf16 point cloud; the channel concat with the mask is folded into the
    # split layer-1 weights, so no concatenated copy is written to HBM.
    pc_cl = jnp.transpose(pc_ncw, (0, 2, 1)).astype(jnp.bfloat16)        # (B, N, PC_DIM)
    mask_bf = mask.astype(jnp.bfloat16)                                  # (B, N, MASK_DIM)
    state3 = state[:, None, :].astype(jnp.float32)                       # (B, 1, STATE_DIM)

    if block_b is None:
        block_b = max(1, min(B, _TARGET_ROWS // N))
    b_pad = ((B + block_b - 1) // block_b) * block_b
    if b_pad != B:
        pad = b_pad - B
        pc_cl = jnp.pad(pc_cl, ((0, pad), (0, 0), (0, 0)))
        mask_bf = jnp.pad(mask_bf, ((0, pad), (0, 0), (0, 0)))
        state3 = jnp.pad(state3, ((0, pad), (0, 0), (0, 0)))

    kparams = pack_params(params)
    weight_specs = [
        pl.BlockSpec(p.shape, functools.partial(_const_index, p.ndim)) for p in kparams
    ]

    out = pl.pallas_call(
        _kernel,
        out_shape=jax.ShapeDtypeStruct((b_pad, 1, OUT_DIM), jnp.float32),
        grid_spec=pltpu.PrefetchScalarGridSpec(
            num_scalar_prefetch=0,
            grid=(b_pad // block_b,),
            in_specs=[
                pl.BlockSpec((block_b, N, PC_DIM), lambda i: (i, 0, 0)),
                pl.BlockSpec((block_b, N, MASK_DIM), lambda i: (i, 0, 0)),
                pl.BlockSpec((block_b, None, STATE_DIM), lambda i: (i, 0, 0)),
            ] + weight_specs,
            out_specs=pl.BlockSpec((block_b, None, OUT_DIM), lambda i: (i, 0, 0)),
            scratch_shapes=[pltpu.VMEM((block_b, T_PAD, FEAT_DIM), jnp.float32)],
        ),
        compiler_params=pltpu.CompilerParams(
            dimension_semantics=("parallel",),   # independent batch tiles -> v7x megacore
            vmem_limit_bytes=32 << 20,           # sized for <=2k-row tiles; headroom on v7x (64 MiB)
        ),
    )(pc_cl, mask_bf, state3, *kparams)

    return out[:B, 0, :], {}


# --------------------------------------------------------------------------------------
# Pure-JAX reference (module-format weights, per-batch, same bf16 rounding on point MLPs)
# --------------------------------------------------------------------------------------
def _reference_forward(pc_ncw, mask, state, params):
    (pn_w1, pn_b1, pn_w2, pn_b2, pn_w3, pn_b3,
     st_w, st_b, attn_w, attn_b, ln_g, ln_b,
     ff_w1, ff_b1, ff_w2, ff_b2, gm_w, gm_b) = params

    outs = []
    with jax.default_matmul_precision("highest"):
        for b in range(pc_ncw.shape[0]):
            pts = jnp.concatenate([pc_ncw[b].T, mask[b]], axis=-1)       # (N, IN_CH)
            seg = pts[:, PC_DIM:]
            bg = jnp.sum(seg, axis=-1, keepdims=True) <= 0.5
            group_masks = [bg, seg[:, 0:1] > 0.5, seg[:, 1:2] > 0.5, None]

            toks = [jnp.maximum(state[b:b + 1] @ st_w + st_b, 0.0)]
            pts_bf = pts.astype(jnp.bfloat16)
            for i in range(NUM_PN):
                h = jnp.maximum(
                    jnp.dot(pts_bf, pn_w1[i].astype(jnp.bfloat16),
                            preferred_element_type=jnp.float32) + pn_b1[i], 0.0)
                h = jnp.maximum(
                    jnp.dot(h.astype(jnp.bfloat16), pn_w2[i].astype(jnp.bfloat16),
                            preferred_element_type=jnp.float32) + pn_b2[i], 0.0)
                f = jnp.dot(h.astype(jnp.bfloat16), pn_w3[i].astype(jnp.bfloat16),
                            preferred_element_type=jnp.float32) + pn_b3[i]
                if group_masks[i] is not None:
                    f = jnp.where(group_masks[i], f, jnp.float32(_NEG_BIG))
                toks.append(jnp.max(f, axis=0, keepdims=True))

            x = jnp.concatenate(toks, axis=0)                            # (N_TOKENS, F)
            q = x @ attn_w[0] + attn_b[0]
            k = x @ attn_w[1] + attn_b[1]
            v = x @ attn_w[2] + attn_b[2]
            s = (q @ k.T) * (FEAT_DIM ** -0.5)
            s = s - jnp.max(s, axis=-1, keepdims=True)
            e = jnp.exp(s)
            a = e / jnp.sum(e, axis=-1, keepdims=True)
            ctx = (a @ v) @ attn_w[3] + attn_b[3]
            x = _layer_norm(x + ctx, ln_g[0], ln_b[0])
            hf = jnp.maximum(x @ ff_w1 + ff_b1, 0.0)
            x = _layer_norm(x + hf @ ff_w2 + ff_b2, ln_g[1], ln_b[1])
            pooled = jnp.mean(x, axis=0, keepdims=True)
            outs.append((pooled @ gm_w + gm_b)[0])
    return jnp.stack(outs, axis=0)


def init_params(key):
    """Deterministic synthetic weights in the module's own format."""
    ks = iter(jax.random.split(key, 24))

    def w(shape):
        fan_in = shape[-2]
        return jax.random.normal(next(ks), shape, jnp.float32) / jnp.sqrt(fan_in)

    def b(shape):
        return jax.random.normal(next(ks), shape, jnp.float32) * 0.05

    pn_w1 = w((NUM_PN, IN_CH, H1_DIM));    pn_b1 = b((NUM_PN, 1, H1_DIM))
    pn_w2 = w((NUM_PN, H1_DIM, H2_DIM));   pn_b2 = b((NUM_PN, 1, H2_DIM))
    pn_w3 = w((NUM_PN, H2_DIM, FEAT_DIM)); pn_b3 = b((NUM_PN, 1, FEAT_DIM))
    st_w = w((STATE_DIM, FEAT_DIM));       st_b = b((1, FEAT_DIM))
    attn_w = w((4, FEAT_DIM, FEAT_DIM));   attn_b = b((4, 1, FEAT_DIM))
    ln_g = jnp.ones((2, 1, FEAT_DIM), jnp.float32)
    ln_b = jnp.zeros((2, 1, FEAT_DIM), jnp.float32)
    ff_w1 = w((FEAT_DIM, FF_DIM));         ff_b1 = b((1, FF_DIM))
    ff_w2 = w((FF_DIM, FEAT_DIM));         ff_b2 = b((1, FEAT_DIM))
    gm_w = w((FEAT_DIM, OUT_DIM));         gm_b = b((1, OUT_DIM))

    return (pn_w1, pn_b1, pn_w2, pn_b2, pn_w3, pn_b3,
            st_w, st_b, attn_w, attn_b, ln_g, ln_b,
            ff_w1, ff_b1, ff_w2, ff_b2, gm_w, gm_b)


if __name__ == "__main__":
    key = jax.random.PRNGKey(0)
    kp, kpc, kseg, kst = jax.random.split(key, 4)

    B, N = 8, 64
    params = init_params(kp)

    # torch-style inputs: pc (B, pc_dim, N) NCW, mask (B, N, mask_dim), state (B, state_dim)
    pc = jax.random.normal(kpc, (B, PC_DIM, N), jnp.float32)
    seg_id = jax.random.randint(kseg, (B, N), 0, MASK_DIM + 1)   # 0 = background
    mask = jnp.stack(
        [(seg_id == i + 1).astype(jnp.float32) for i in range(MASK_DIM)], axis=-1)
    state = jax.random.normal(kst, (B, STATE_DIM), jnp.float32)
    input_pc = {'pc': pc, 'mask': mask, 'state': state}

    # block_b=4 -> grid of 2 steps (exercises the batch tiling / parallel grid)
    out, others = trans_pointnet_backbone(input_pc, params, block_b=4)
    out = jax.block_until_ready(out)
    assert out.shape == (B, OUT_DIM)

    ref = _reference_forward(pc, mask, state, params)
    max_err = float(jnp.max(jnp.abs(out - ref)))
    assert jnp.allclose(out, ref, atol=2e-2, rtol=2e-2), f"max_err={max_err}"

    print("KERNEL_OK")
</pallas_src>

<mosaic_0001>
module attributes {stable_mosaic.version = 11 : i64} {
  func.func @_kernel(%arg0: i32, %arg1: memref<4x64x6xbf16, #tpu.memory_space<vmem>>, %arg2: memref<4x64x2xbf16, #tpu.memory_space<vmem>>, %arg3: memref<4x1x128xf32, #tpu.memory_space<vmem>>, %arg4: memref<6x256xbf16, #tpu.memory_space<vmem>>, %arg5: memref<2x256xbf16, #tpu.memory_space<vmem>>, %arg6: memref<1x256xf32, #tpu.memory_space<vmem>>, %arg7: memref<4x64x128xbf16, #tpu.memory_space<vmem>>, %arg8: memref<4x1x128xf32, #tpu.memory_space<vmem>>, %arg9: memref<4x128x128xbf16, #tpu.memory_space<vmem>>, %arg10: memref<4x1x128xf32, #tpu.memory_space<vmem>>, %arg11: memref<128x128xf32, #tpu.memory_space<vmem>>, %arg12: memref<1x128xf32, #tpu.memory_space<vmem>>, %arg13: memref<128x384xf32, #tpu.memory_space<vmem>>, %arg14: memref<1x384xf32, #tpu.memory_space<vmem>>, %arg15: memref<128x128xf32, #tpu.memory_space<vmem>>, %arg16: memref<1x128xf32, #tpu.memory_space<vmem>>, %arg17: memref<2x1x128xf32, #tpu.memory_space<vmem>>, %arg18: memref<2x1x128xf32, #tpu.memory_space<vmem>>, %arg19: memref<128x256xf32, #tpu.memory_space<vmem>>, %arg20: memref<1x256xf32, #tpu.memory_space<vmem>>, %arg21: memref<256x128xf32, #tpu.memory_space<vmem>>, %arg22: memref<1x128xf32, #tpu.memory_space<vmem>>, %arg23: memref<128x128xf32, #tpu.memory_space<vmem>>, %arg24: memref<1x128xf32, #tpu.memory_space<vmem>>, %arg25: memref<4x1x128xf32, #tpu.memory_space<vmem>>, %arg26: memref<4x8x128xf32, #tpu.memory_space<vmem>>) attributes {dimension_semantics = [#tpu.dimension_semantics<parallel>], iteration_bounds = array<i64: 2>, scalar_prefetch = 0 : i64, scratch_operands = 1 : i64, tpu.core_type = #tpu.core_type<tc>, window_params = [{transform_indices = @transform_0, window_bounds = array<i64: 4, 64, 6>}, {transform_indices = @transform_1, window_bounds = array<i64: 4, 64, 2>}, {transform_indices = @transform_2, window_bounds = array<i64: 4, 1, 128>}, {pipeline_mode = #tpu.pipeline_mode<synchronous>, transform_indices = @transform_3, window_bounds = array<i64: 6, 256>}, {pipeline_mode = #tpu.pipeline_mode<synchronous>, transform_indices = @transform_4, window_bounds = array<i64: 2, 256>}, {pipeline_mode = #tpu.pipeline_mode<synchronous>, transform_indices = @transform_5, window_bounds = array<i64: 1, 256>}, {pipeline_mode = #tpu.pipeline_mode<synchronous>, transform_indices = @transform_6, window_bounds = array<i64: 4, 64, 128>}, {pipeline_mode = #tpu.pipeline_mode<synchronous>, transform_indices = @transform_7, window_bounds = array<i64: 4, 1, 128>}, {pipeline_mode = #tpu.pipeline_mode<synchronous>, transform_indices = @transform_8, window_bounds = array<i64: 4, 128, 128>}, {pipeline_mode = #tpu.pipeline_mode<synchronous>, transform_indices = @transform_9, window_bounds = array<i64: 4, 1, 128>}, {pipeline_mode = #tpu.pipeline_mode<synchronous>, transform_indices = @transform_10, window_bounds = array<i64: 128, 128>}, {pipeline_mode = #tpu.pipeline_mode<synchronous>, transform_indices = @transform_11, window_bounds = array<i64: 1, 128>}, {pipeline_mode = #tpu.pipeline_mode<synchronous>, transform_indices = @transform_12, window_bounds = array<i64: 128, 384>}, {pipeline_mode = #tpu.pipeline_mode<synchronous>, transform_indices = @transform_13, window_bounds = array<i64: 1, 384>}, {pipeline_mode = #tpu.pipeline_mode<synchronous>, transform_indices = @transform_14, window_bounds = array<i64: 128, 128>}, {pipeline_mode = #tpu.pipeline_mode<synchronous>, transform_indices = @transform_15, window_bounds = array<i64: 1, 128>}, {pipeline_mode = #tpu.pipeline_mode<synchronous>, transform_indices = @transform_16, window_bounds = array<i64: 2, 1, 128>}, {pipeline_mode = #tpu.pipeline_mode<synchronous>, transform_indices = @transform_17, window_bounds = array<i64: 2, 1, 128>}, {pipeline_mode = #tpu.pipeline_mode<synchronous>, transform_indices = @transform_18, window_bounds = array<i64: 128, 256>}, {pipeline_mode = #tpu.pipeline_mode<synchronous>, transform_indices = @transform_19, window_bounds = array<i64: 1, 256>}, {pipeline_mode = #tpu.pipeline_mode<synchronous>, transform_indices = @transform_20, window_bounds = array<i64: 256, 128>}, {pipeline_mode = #tpu.pipeline_mode<synchronous>, transform_indices = @transform_21, window_bounds = array<i64: 1, 128>}, {pipeline_mode = #tpu.pipeline_mode<synchronous>, transform_indices = @transform_22, window_bounds = array<i64: 128, 128>}, {pipeline_mode = #tpu.pipeline_mode<synchronous>, transform_indices = @transform_23, window_bounds = array<i64: 1, 128>}, {transform_indices = @transform_24, window_bounds = array<i64: 4, 1, 128>}]} {
    %c0 = arith.constant 0 : index
    %c0_0 = arith.constant 0 : index
    %0 = vector.load %arg4[%c0, %c0_0] : memref<6x256xbf16, #tpu.memory_space<vmem>>, vector<6x256xbf16>
    %c0_1 = arith.constant 0 : index
    %c0_2 = arith.constant 0 : index
    %1 = vector.load %arg5[%c0_1, %c0_2] : memref<2x256xbf16, #tpu.memory_space<vmem>>, vector<2x256xbf16>
    %c0_3 = arith.constant 0 : index
    %c0_4 = arith.constant 0 : index
    %2 = vector.load %arg6[%c0_3, %c0_4] : memref<1x256xf32, #tpu.memory_space<vmem>>, vector<1x256xf32>
    %c0_5 = arith.constant 0 : index
    %c0_6 = arith.constant 0 : index
    %c0_7 = arith.constant 0 : index
    %3 = vector.load %arg7[%c0_5, %c0_6, %c0_7] : memref<4x64x128xbf16, #tpu.memory_space<vmem>>, vector<4x64x128xbf16>
    %c0_8 = arith.constant 0 : index
    %c0_9 = arith.constant 0 : index
    %c0_10 = arith.constant 0 : index
    %4 = vector.load %arg8[%c0_8, %c0_9, %c0_10] : memref<4x1x128xf32, #tpu.memory_space<vmem>>, vector<4x1x128xf32>
    %c0_11 = arith.constant 0 : index
    %c0_12 = arith.constant 0 : index
    %c0_13 = arith.constant 0 : index
    %5 = vector.load %arg9[%c0_11, %c0_12, %c0_13] : memref<4x128x128xbf16, #tpu.memory_space<vmem>>, vector<4x128x128xbf16>
    %c0_14 = arith.constant 0 : index
    %c0_15 = arith.constant 0 : index
    %c0_16 = arith.constant 0 : index
    %6 = vector.load %arg10[%c0_14, %c0_15, %c0_16] : memref<4x1x128xf32, #tpu.memory_space<vmem>>, vector<4x1x128xf32>
    %c0_17 = arith.constant 0 : index
    %c0_18 = arith.constant 0 : index
    %7 = vector.load %arg11[%c0_17, %c0_18] : memref<128x128xf32, #tpu.memory_space<vmem>>, vector<128x128xf32>
    %c0_19 = arith.constant 0 : index
    %c0_20 = arith.constant 0 : index
    %8 = vector.load %arg12[%c0_19, %c0_20] : memref<1x128xf32, #tpu.memory_space<vmem>>, vector<1x128xf32>
    %c0_21 = arith.constant 0 : index
    %c0_22 = arith.constant 0 : index
    %9 = vector.load %arg13[%c0_21, %c0_22] : memref<128x384xf32, #tpu.memory_space<vmem>>, vector<128x384xf32>
    %c0_23 = arith.constant 0 : index
    %c0_24 = arith.constant 0 : index
    %10 = vector.load %arg14[%c0_23, %c0_24] : memref<1x384xf32, #tpu.memory_space<vmem>>, vector<1x384xf32>
    %c0_25 = arith.constant 0 : index
    %c0_26 = arith.constant 0 : index
    %11 = vector.load %arg15[%c0_25, %c0_26] : memref<128x128xf32, #tpu.memory_space<vmem>>, vector<128x128xf32>
    %c0_27 = arith.constant 0 : index
    %c0_28 = arith.constant 0 : index
    %12 = vector.load %arg16[%c0_27, %c0_28] : memref<1x128xf32, #tpu.memory_space<vmem>>, vector<1x128xf32>
    %c0_29 = arith.constant 0 : index
    %c0_30 = arith.constant 0 : index
    %c0_31 = arith.constant 0 : index
    %13 = vector.load %arg17[%c0_29, %c0_30, %c0_31] : memref<2x1x128xf32, #tpu.memory_space<vmem>>, vector<2x1x128xf32>
    %c0_32 = arith.constant 0 : index
    %c0_33 = arith.constant 0 : index
    %c0_34 = arith.constant 0 : index
    %14 = vector.load %arg18[%c0_32, %c0_33, %c0_34] : memref<2x1x128xf32, #tpu.memory_space<vmem>>, vector<2x1x128xf32>
    %c0_35 = arith.constant 0 : index
    %c0_36 = arith.constant 0 : index
    %15 = vector.load %arg19[%c0_35, %c0_36] : memref<128x256xf32, #tpu.memory_space<vmem>>, vector<128x256xf32>
    %c0_37 = arith.constant 0 : index
    %c0_38 = arith.constant 0 : index
    %16 = vector.load %arg20[%c0_37, %c0_38] : memref<1x256xf32, #tpu.memory_space<vmem>>, vector<1x256xf32>
    %c0_39 = arith.constant 0 : index
    %c0_40 = arith.constant 0 : index
    %17 = vector.load %arg21[%c0_39, %c0_40] : memref<256x128xf32, #tpu.memory_space<vmem>>, vector<256x128xf32>
    %c0_41 = arith.constant 0 : index
    %c0_42 = arith.constant 0 : index
    %18 = vector.load %arg22[%c0_41, %c0_42] : memref<1x128xf32, #tpu.memory_space<vmem>>, vector<1x128xf32>
    %c0_43 = arith.constant 0 : index
    %c0_44 = arith.constant 0 : index
    %19 = vector.load %arg23[%c0_43, %c0_44] : memref<128x128xf32, #tpu.memory_space<vmem>>, vector<128x128xf32>
    %c0_45 = arith.constant 0 : index
    %c0_46 = arith.constant 0 : index
    %20 = vector.load %arg24[%c0_45, %c0_46] : memref<1x128xf32, #tpu.memory_space<vmem>>, vector<1x128xf32>
    %c0_47 = arith.constant 0 : index
    %c0_48 = arith.constant 0 : index
    %c0_49 = arith.constant 0 : index
    %21 = vector.load %arg1[%c0_47, %c0_48, %c0_49] : memref<4x64x6xbf16, #tpu.memory_space<vmem>>, vector<4x64x6xbf16>
    %22 = vector.shape_cast %21 : vector<4x64x6xbf16> to vector<256x6xbf16>
    %c0_50 = arith.constant 0 : index
    %c0_51 = arith.constant 0 : index
    %c0_52 = arith.constant 0 : index
    %23 = vector.load %arg2[%c0_50, %c0_51, %c0_52] : memref<4x64x2xbf16, #tpu.memory_space<vmem>>, vector<4x64x2xbf16>
    %24 = vector.shape_cast %23 : vector<4x64x2xbf16> to vector<256x2xbf16>
    %25 = arith.extf %23 : vector<4x64x2xbf16> to vector<4x64x2xf32>
    %cst = arith.constant dense<0.000000e+00> : vector<256x256xf32>
    %26 = tpu.matmul %22, %0, %cst {dimension_numbers = #tpu.dot_dimension_numbers<[1], [0], [0], [1], [0, 0, 1, 1], [], []>} : vector<256x6xbf16>, vector<6x256xbf16>, vector<256x256xf32> -> vector<256x256xf32>
    %cst_53 = arith.constant dense<0.000000e+00> : vector<256x256xf32>
    %27 = tpu.matmul %24, %1, %cst_53 {dimension_numbers = #tpu.dot_dimension_numbers<[1], [0], [0], [1], [0, 0, 1, 1], [], []>} : vector<256x2xbf16>, vector<2x256xbf16>, vector<256x256xf32> -> vector<256x256xf32>
    %28 = arith.addf %26, %27 : vector<256x256xf32>
    %29 = vector.broadcast %2 : vector<1x256xf32> to vector<256x256xf32>
    %30 = arith.addf %28, %29 : vector<256x256xf32>
    %cst_54 = arith.constant 0.000000e+00 : f32
    %31 = vector.broadcast %cst_54 : f32 to vector<256x256xf32>
    %32 = arith.maximumf %30, %31 : vector<256x256xf32>
    %cst_55 = arith.constant dense<0.000000e+00> : vector<4x64xf32>
    %33 = vector.multi_reduction <add>, %25, %cst_55 [2] : vector<4x64x2xf32> to vector<4x64xf32>
    %34 = vector.shape_cast %33 : vector<4x64xf32> to vector<4x64x1xf32>
    %cst_56 = arith.constant 5.000000e-01 : f32
    %35 = vector.broadcast %cst_56 : f32 to vector<4x64x1xf32>
    %36 = arith.cmpf ole, %34, %35 : vector<4x64x1xf32>
    %37 = vector.extract_strided_slice %25 {offsets = [0, 0, 0], sizes = [4, 64, 1], strides = [1, 1, 1]} : vector<4x64x2xf32> to vector<4x64x1xf32>
    %cst_57 = arith.constant 5.000000e-01 : f32
    %38 = vector.broadcast %cst_57 : f32 to vector<4x64x1xf32>
    %39 = arith.cmpf ogt, %37, %38 : vector<4x64x1xf32>
    %40 = vector.extract_strided_slice %25 {offsets = [0, 0, 1], sizes = [4, 64, 1], strides = [1, 1, 1]} : vector<4x64x2xf32> to vector<4x64x1xf32>
    %cst_58 = arith.constant 5.000000e-01 : f32
    %41 = vector.broadcast %cst_58 : f32 to vector<4x64x1xf32>
    %42 = arith.cmpf ogt, %40, %41 : vector<4x64x1xf32>
    %cst_59 = arith.constant 0.000000e+00 : f32
    %43 = vector.broadcast %cst_59 : f32 to vector<4x8x128xf32>
    %c0_60 = arith.constant 0 : index
    %c0_61 = arith.constant 0 : index
    %c0_62 = arith.constant 0 : index
    %44 = vector.load %arg26[%c0_60, %c0_61, %c0_62] : memref<4x8x128xf32, #tpu.memory_space<vmem>>, vector<4x8x128xf32>
    tpu.vector_store %arg26[%c0_60, %c0_61, %c0_62], %43 {strides = array<i32>} : memref<4x8x128xf32, #tpu.memory_space<vmem>>, vector<4x8x128xf32>,
    %c0_63 = arith.constant 0 : index
    %c0_64 = arith.constant 0 : index
    %c0_65 = arith.constant 0 : index
    %45 = vector.load %arg3[%c0_63, %c0_64, %c0_65] : memref<4x1x128xf32, #tpu.memory_space<vmem>>, vector<4x1x128xf32>
    %46 = vector.shape_cast %45 : vector<4x1x128xf32> to vector<4x128xf32>
    %cst_66 = arith.constant dense<0.000000e+00> : vector<4x128xf32>
    %47 = tpu.matmul %46, %7, %cst_66 {dimension_numbers = #tpu.dot_dimension_numbers<[1], [0], [0], [1], [0, 0, 1, 1], [], []>} : vector<4x128xf32>, vector<128x128xf32>, vector<4x128xf32> -> vector<4x128xf32>
    %48 = vector.broadcast %8 : vector<1x128xf32> to vector<4x128xf32>
    %49 = arith.addf %47, %48 : vector<4x128xf32>
    %cst_67 = arith.constant 0.000000e+00 : f32
    %50 = vector.broadcast %cst_67 : f32 to vector<4x128xf32>
    %51 = arith.maximumf %49, %50 : vector<4x128xf32>
    %c0_68 = arith.constant 0 : index
    %c0_69 = arith.constant 0 : index
    %c0_70 = arith.constant 0 : index
    %52 = vector.load %arg26[%c0_68, %c0_69, %c0_70] : memref<4x8x128xf32, #tpu.memory_space<vmem>>, vector<4x1x128xf32>
    %53 = vector.shape_cast %52 : vector<4x1x128xf32> to vector<4x128xf32>
    %54 = vector.shape_cast %51 : vector<4x128xf32> to vector<4x1x128xf32>
    tpu.vector_store %arg26[%c0_68, %c0_69, %c0_70], %54 {strides = array<i32>} : memref<4x8x128xf32, #tpu.memory_space<vmem>>, vector<4x1x128xf32>,
    %55 = vector.extract_strided_slice %32 {offsets = [0, 0], sizes = [256, 64], strides = [1, 1]} : vector<256x256xf32> to vector<256x64xf32>
    %56 = arith.truncf %55 : vector<256x64xf32> to vector<256x64xbf16>
    %57 = vector.extract_strided_slice %3 {offsets = [0, 0, 0], sizes = [1, 64, 128], strides = [1, 1, 1]} : vector<4x64x128xbf16> to vector<1x64x128xbf16>
    %58 = vector.shape_cast %57 : vector<1x64x128xbf16> to vector<64x128xbf16>
    %cst_71 = arith.constant dense<0.000000e+00> : vector<256x128xf32>
    %59 = tpu.matmul %56, %58, %cst_71 {dimension_numbers = #tpu.dot_dimension_numbers<[1], [0], [0], [1], [0, 0, 1, 1], [], []>} : vector<256x64xbf16>, vector<64x128xbf16>, vector<256x128xf32> -> vector<256x128xf32>
    %60 = vector.extract_strided_slice %4 {offsets = [0, 0, 0], sizes = [1, 1, 128], strides = [1, 1, 1]} : vector<4x1x128xf32> to vector<1x1x128xf32>
    %61 = vector.shape_cast %60 : vector<1x1x128xf32> to vector<1x128xf32>
    %62 = vector.broadcast %61 : vector<1x128xf32> to vector<256x128xf32>
    %63 = arith.addf %59, %62 : vector<256x128xf32>
    %cst_72 = arith.constant 0.000000e+00 : f32
    %64 = vector.broadcast %cst_72 : f32 to vector<256x128xf32>
    %65 = arith.maximumf %63, %64 : vector<256x128xf32>
    %66 = arith.truncf %65 : vector<256x128xf32> to vector<256x128xbf16>
    %67 = vector.extract_strided_slice %5 {offsets = [0, 0, 0], sizes = [1, 128, 128], strides = [1, 1, 1]} : vector<4x128x128xbf16> to vector<1x128x128xbf16>
    %68 = vector.shape_cast %67 : vector<1x128x128xbf16> to vector<128x128xbf16>
    %cst_73 = arith.constant dense<0.000000e+00> : vector<256x128xf32>
    %69 = tpu.matmul %66, %68, %cst_73 {dimension_numbers = #tpu.dot_dimension_numbers<[1], [0], [0], [1], [0, 0, 1, 1], [], []>} : vector<256x128xbf16>, vector<128x128xbf16>, vector<256x128xf32> -> vector<256x128xf32>
    %70 = vector.extract_strided_slice %6 {offsets = [0, 0, 0], sizes = [1, 1, 128], strides = [1, 1, 1]} : vector<4x1x128xf32> to vector<1x1x128xf32>
    %71 = vector.shape_cast %70 : vector<1x1x128xf32> to vector<1x128xf32>
    %72 = vector.broadcast %71 : vector<1x128xf32> to vector<256x128xf32>
    %73 = arith.addf %69, %72 : vector<256x128xf32>
    %74 = vector.shape_cast %73 : vector<256x128xf32> to vector<4x64x128xf32>
    %cst_74 = arith.constant -1.000000e+10 : f32
    %75 = vector.shape_cast %36 : vector<4x64x1xi1> to vector<4x64x1xi1>
    %76 = vector.broadcast %75 : vector<4x64x1xi1> to vector<4x64x128xi1>
    %77 = vector.broadcast %cst_74 : f32 to vector<4x64x128xf32>
    %78 = arith.select %76, %74, %77 : vector<4x64x128xi1>, vector<4x64x128xf32>
    %cst_75 = arith.constant dense<0xFF800000> : vector<4x128xf32>
    %79 = vector.multi_reduction <maximumf>, %78, %cst_75 [1] : vector<4x64x128xf32> to vector<4x128xf32>
    %c0_76 = arith.constant 0 : index
    %c1 = arith.constant 1 : index
    %c0_77 = arith.constant 0 : index
    %80 = vector.load %arg26[%c0_76, %c1, %c0_77] : memref<4x8x128xf32, #tpu.memory_space<vmem>>, vector<4x1x128xf32>
    %81 = vector.shape_cast %80 : vector<4x1x128xf32> to vector<4x128xf32>
    %82 = vector.shape_cast %79 : vector<4x128xf32> to vector<4x1x128xf32>
    tpu.vector_store %arg26[%c0_76, %c1, %c0_77], %82 {strides = array<i32>} : memref<4x8x128xf32, #tpu.memory_space<vmem>>, vector<4x1x128xf32>,
    %83 = vector.extract_strided_slice %32 {offsets = [0, 64], sizes = [256, 64], strides = [1, 1]} : vector<256x256xf32> to vector<256x64xf32>
    %84 = arith.truncf %83 : vector<256x64xf32> to vector<256x64xbf16>
    %85 = vector.extract_strided_slice %3 {offsets = [1, 0, 0], sizes = [1, 64, 128], strides = [1, 1, 1]} : vector<4x64x128xbf16> to vector<1x64x128xbf16>
    %86 = vector.shape_cast %85 : vector<1x64x128xbf16> to vector<64x128xbf16>
    %cst_78 = arith.constant dense<0.000000e+00> : vector<256x128xf32>
    %87 = tpu.matmul %84, %86, %cst_78 {dimension_numbers = #tpu.dot_dimension_numbers<[1], [0], [0], [1], [0, 0, 1, 1], [], []>} : vector<256x64xbf16>, vector<64x128xbf16>, vector<256x128xf32> -> vector<256x128xf32>
    %88 = vector.extract_strided_slice %4 {offsets = [1, 0, 0], sizes = [1, 1, 128], strides = [1, 1, 1]} : vector<4x1x128xf32> to vector<1x1x128xf32>
    %89 = vector.shape_cast %88 : vector<1x1x128xf32> to vector<1x128xf32>
    %90 = vector.broadcast %89 : vector<1x128xf32> to vector<256x128xf32>
    %91 = arith.addf %87, %90 : vector<256x128xf32>
    %cst_79 = arith.constant 0.000000e+00 : f32
    %92 = vector.broadcast %cst_79 : f32 to vector<256x128xf32>
    %93 = arith.maximumf %91, %92 : vector<256x128xf32>
    %94 = arith.truncf %93 : vector<256x128xf32> to vector<256x128xbf16>
    %95 = vector.extract_strided_slice %5 {offsets = [1, 0, 0], sizes = [1, 128, 128], strides = [1, 1, 1]} : vector<4x128x128xbf16> to vector<1x128x128xbf16>
    %96 = vector.shape_cast %95 : vector<1x128x128xbf16> to vector<128x128xbf16>
    %cst_80 = arith.constant dense<0.000000e+00> : vector<256x128xf32>
    %97 = tpu.matmul %94, %96, %cst_80 {dimension_numbers = #tpu.dot_dimension_numbers<[1], [0], [0], [1], [0, 0, 1, 1], [], []>} : vector<256x128xbf16>, vector<128x128xbf16>, vector<256x128xf32> -> vector<256x128xf32>
    %98 = vector.extract_strided_slice %6 {offsets = [1, 0, 0], sizes = [1, 1, 128], strides = [1, 1, 1]} : vector<4x1x128xf32> to vector<1x1x128xf32>
    %99 = vector.shape_cast %98 : vector<1x1x128xf32> to vector<1x128xf32>
    %100 = vector.broadcast %99 : vector<1x128xf32> to vector<256x128xf32>
    %101 = arith.addf %97, %100 : vector<256x128xf32>
    %102 = vector.shape_cast %101 : vector<256x128xf32> to vector<4x64x128xf32>
    %cst_81 = arith.constant -1.000000e+10 : f32
    %103 = vector.shape_cast %39 : vector<4x64x1xi1> to vector<4x64x1xi1>
    %104 = vector.broadcast %103 : vector<4x64x1xi1> to vector<4x64x128xi1>
    %105 = vector.broadcast %cst_81 : f32 to vector<4x64x128xf32>
    %106 = arith.select %104, %102, %105 : vector<4x64x128xi1>, vector<4x64x128xf32>
    %cst_82 = arith.constant dense<0xFF800000> : vector<4x128xf32>
    %107 = vector.multi_reduction <maximumf>, %106, %cst_82 [1] : vector<4x64x128xf32> to vector<4x128xf32>
    %c0_83 = arith.constant 0 : index
    %c2 = arith.constant 2 : index
    %c0_84 = arith.constant 0 : index
    %108 = vector.load %arg26[%c0_83, %c2, %c0_84] : memref<4x8x128xf32, #tpu.memory_space<vmem>>, vector<4x1x128xf32>
    %109 = vector.shape_cast %108 : vector<4x1x128xf32> to vector<4x128xf32>
    %110 = vector.shape_cast %107 : vector<4x128xf32> to vector<4x1x128xf32>
    tpu.vector_store %arg26[%c0_83, %c2, %c0_84], %110 {strides = array<i32>} : memref<4x8x128xf32, #tpu.memory_space<vmem>>, vector<4x1x128xf32>,
    %111 = vector.extract_strided_slice %32 {offsets = [0, 128], sizes = [256, 64], strides = [1, 1]} : vector<256x256xf32> to vector<256x64xf32>
    %112 = arith.truncf %111 : vector<256x64xf32> to vector<256x64xbf16>
    %113 = vector.extract_strided_slice %3 {offsets = [2, 0, 0], sizes = [1, 64, 128], strides = [1, 1, 1]} : vector<4x64x128xbf16> to vector<1x64x128xbf16>
    %114 = vector.shape_cast %113 : vector<1x64x128xbf16> to vector<64x128xbf16>
    %cst_85 = arith.constant dense<0.000000e+00> : vector<256x128xf32>
    %115 = tpu.matmul %112, %114, %cst_85 {dimension_numbers = #tpu.dot_dimension_numbers<[1], [0], [0], [1], [0, 0, 1, 1], [], []>} : vector<256x64xbf16>, vector<64x128xbf16>, vector<256x128xf32> -> vector<256x128xf32>
    %116 = vector.extract_strided_slice %4 {offsets = [2, 0, 0], sizes = [1, 1, 128], strides = [1, 1, 1]} : vector<4x1x128xf32> to vector<1x1x128xf32>
    %117 = vector.shape_cast %116 : vector<1x1x128xf32> to vector<1x128xf32>
    %118 = vector.broadcast %117 : vector<1x128xf32> to vector<256x128xf32>
    %119 = arith.addf %115, %118 : vector<256x128xf32>
    %cst_86 = arith.constant 0.000000e+00 : f32
    %120 = vector.broadcast %cst_86 : f32 to vector<256x128xf32>
    %121 = arith.maximumf %119, %120 : vector<256x128xf32>
    %122 = arith.truncf %121 : vector<256x128xf32> to vector<256x128xbf16>
    %123 = vector.extract_strided_slice %5 {offsets = [2, 0, 0], sizes = [1, 128, 128], strides = [1, 1, 1]} : vector<4x128x128xbf16> to vector<1x128x128xbf16>
    %124 = vector.shape_cast %123 : vector<1x128x128xbf16> to vector<128x128xbf16>
    %cst_87 = arith.constant dense<0.000000e+00> : vector<256x128xf32>
    %125 = tpu.matmul %122, %124, %cst_87 {dimension_numbers = #tpu.dot_dimension_numbers<[1], [0], [0], [1], [0, 0, 1, 1], [], []>} : vector<256x128xbf16>, vector<128x128xbf16>, vector<256x128xf32> -> vector<256x128xf32>
    %126 = vector.extract_strided_slice %6 {offsets = [2, 0, 0], sizes = [1, 1, 128], strides = [1, 1, 1]} : vector<4x1x128xf32> to vector<1x1x128xf32>
    %127 = vector.shape_cast %126 : vector<1x1x128xf32> to vector<1x128xf32>
    %128 = vector.broadcast %127 : vector<1x128xf32> to vector<256x128xf32>
    %129 = arith.addf %125, %128 : vector<256x128xf32>
    %130 = vector.shape_cast %129 : vector<256x128xf32> to vector<4x64x128xf32>
    %cst_88 = arith.constant -1.000000e+10 : f32
    %131 = vector.shape_cast %42 : vector<4x64x1xi1> to vector<4x64x1xi1>
    %132 = vector.broadcast %131 : vector<4x64x1xi1> to vector<4x64x128xi1>
    %133 = vector.broadcast %cst_88 : f32 to vector<4x64x128xf32>
    %134 = arith.select %132, %130, %133 : vector<4x64x128xi1>, vector<4x64x128xf32>
    %cst_89 = arith.constant dense<0xFF800000> : vector<4x128xf32>
    %135 = vector.multi_reduction <maximumf>, %134, %cst_89 [1] : vector<4x64x128xf32> to vector<4x128xf32>
    %c0_90 = arith.constant 0 : index
    %c3 = arith.constant 3 : index
    %c0_91 = arith.constant 0 : index
    %136 = vector.load %arg26[%c0_90, %c3, %c0_91] : memref<4x8x128xf32, #tpu.memory_space<vmem>>, vector<4x1x128xf32>
    %137 = vector.shape_cast %136 : vector<4x1x128xf32> to vector<4x128xf32>
    %138 = vector.shape_cast %135 : vector<4x128xf32> to vector<4x1x128xf32>
    tpu.vector_store %arg26[%c0_90, %c3, %c0_91], %138 {strides = array<i32>} : memref<4x8x128xf32, #tpu.memory_space<vmem>>, vector<4x1x128xf32>,
    %139 = vector.extract_strided_slice %32 {offsets = [0, 192], sizes = [256, 64], strides = [1, 1]} : vector<256x256xf32> to vector<256x64xf32>
    %140 = arith.truncf %139 : vector<256x64xf32> to vector<256x64xbf16>
    %141 = vector.extract_strided_slice %3 {offsets = [3, 0, 0], sizes = [1, 64, 128], strides = [1, 1, 1]} : vector<4x64x128xbf16> to vector<1x64x128xbf16>
    %142 = vector.shape_cast %141 : vector<1x64x128xbf16> to vector<64x128xbf16>
    %cst_92 = arith.constant dense<0.000000e+00> : vector<256x128xf32>
    %143 = tpu.matmul %140, %142, %cst_92 {dimension_numbers = #tpu.dot_dimension_numbers<[1], [0], [0], [1], [0, 0, 1, 1], [], []>} : vector<256x64xbf16>, vector<64x128xbf16>, vector<256x128xf32> -> vector<256x128xf32>
    %144 = vector.extract_strided_slice %4 {offsets = [3, 0, 0], sizes = [1, 1, 128], strides = [1, 1, 1]} : vector<4x1x128xf32> to vector<1x1x128xf32>
    %145 = vector.shape_cast %144 : vector<1x1x128xf32> to vector<1x128xf32>
    %146 = vector.broadcast %145 : vector<1x128xf32> to vector<256x128xf32>
    %147 = arith.addf %143, %146 : vector<256x128xf32>
    %cst_93 = arith.constant 0.000000e+00 : f32
    %148 = vector.broadcast %cst_93 : f32 to vector<256x128xf32>
    %149 = arith.maximumf %147, %148 : vector<256x128xf32>
    %150 = arith.truncf %149 : vector<256x128xf32> to vector<256x128xbf16>
    %151 = vector.extract_strided_slice %5 {offsets = [3, 0, 0], sizes = [1, 128, 128], strides = [1, 1, 1]} : vector<4x128x128xbf16> to vector<1x128x128xbf16>
    %152 = vector.shape_cast %151 : vector<1x128x128xbf16> to vector<128x128xbf16>
    %cst_94 = arith.constant dense<0.000000e+00> : vector<256x128xf32>
    %153 = tpu.matmul %150, %152, %cst_94 {dimension_numbers = #tpu.dot_dimension_numbers<[1], [0], [0], [1], [0, 0, 1, 1], [], []>} : vector<256x128xbf16>, vector<128x128xbf16>, vector<256x128xf32> -> vector<256x128xf32>
    %154 = vector.extract_strided_slice %6 {offsets = [3, 0, 0], sizes = [1, 1, 128], strides = [1, 1, 1]} : vector<4x1x128xf32> to vector<1x1x128xf32>
    %155 = vector.shape_cast %154 : vector<1x1x128xf32> to vector<1x128xf32>
    %156 = vector.broadcast %155 : vector<1x128xf32> to vector<256x128xf32>
    %157 = arith.addf %153, %156 : vector<256x128xf32>
    %158 = vector.shape_cast %157 : vector<256x128xf32> to vector<4x64x128xf32>
    %cst_95 = arith.constant dense<0xFF800000> : vector<4x128xf32>
    %159 = vector.multi_reduction <maximumf>, %158, %cst_95 [1] : vector<4x64x128xf32> to vector<4x128xf32>
    %c0_96 = arith.constant 0 : index
    %c4 = arith.constant 4 : index
    %c0_97 = arith.constant 0 : index
    %160 = vector.load %arg26[%c0_96, %c4, %c0_97] : memref<4x8x128xf32, #tpu.memory_space<vmem>>, vector<4x1x128xf32>
    %161 = vector.shape_cast %160 : vector<4x1x128xf32> to vector<4x128xf32>
    %162 = vector.shape_cast %159 : vector<4x128xf32> to vector<4x1x128xf32>
    tpu.vector_store %arg26[%c0_96, %c4, %c0_97], %162 {strides = array<i32>} : memref<4x8x128xf32, #tpu.memory_space<vmem>>, vector<4x1x128xf32>,
    %c0_98 = arith.constant 0 : index
    %c0_99 = arith.constant 0 : index
    %c0_100 = arith.constant 0 : index
    %163 = vector.load %arg26[%c0_98, %c0_99, %c0_100] : memref<4x8x128xf32, #tpu.memory_space<vmem>>, vector<4x8x128xf32>
    %164 = vector.shape_cast %163 : vector<4x8x128xf32> to vector<32x128xf32>
    %cst_101 = arith.constant dense<0.000000e+00> : vector<32x384xf32>
    %165 = tpu.matmul %164, %9, %cst_101 {dimension_numbers = #tpu.dot_dimension_numbers<[1], [0], [0], [1], [0, 0, 1, 1], [], []>} : vector<32x128xf32>, vector<128x384xf32>, vector<32x384xf32> -> vector<32x384xf32>
    %166 = vector.broadcast %10 : vector<1x384xf32> to vector<32x384xf32>
    %167 = arith.addf %165, %166 : vector<32x384xf32>
    %168 = vector.extract_strided_slice %167 {offsets = [0, 0], sizes = [32, 128], strides = [1, 1]} : vector<32x384xf32> to vector<32x128xf32>
    %169 = vector.shape_cast %168 : vector<32x128xf32> to vector<4x8x128xf32>
    %170 = vector.extract_strided_slice %167 {offsets = [0, 128], sizes = [32, 128], strides = [1, 1]} : vector<32x384xf32> to vector<32x128xf32>
    %171 = vector.shape_cast %170 : vector<32x128xf32> to vector<4x8x128xf32>
    %172 = vector.extract_strided_slice %167 {offsets = [0, 256], sizes = [32, 128], strides = [1, 1]} : vector<32x384xf32> to vector<32x128xf32>
    %173 = vector.shape_cast %172 : vector<32x128xf32> to vector<4x8x128xf32>
    "tpu.trace_start"() <{level = 10 : i32, message = "btd,bsd->bts"}> : () -> ()
    %cst_102 = arith.constant dense<0.000000e+00> : vector<4x8x8xf32>
    %174 = tpu.matmul %169, %171, %cst_102 {dimension_numbers = #tpu.dot_dimension_numbers<[2], [2], [1], [1], [0, 0, 0, 1, 1, 1], [0], [0]>} : vector<4x8x128xf32>, vector<4x8x128xf32>, vector<4x8x8xf32> -> vector<4x8x8xf32>
    "tpu.trace_stop"() : () -> ()
    %cst_103 = arith.constant 0.0883883461 : f32
    %175 = vector.broadcast %cst_103 : f32 to vector<4x8x8xf32>
    %176 = arith.mulf %174, %175 : vector<4x8x8xf32>
    %177 = tpu.iota {dimensions = array<i32: 2>} : vector<1x1x8xi32>
    %c5_i32 = arith.constant 5 : i32
    %178 = vector.broadcast %c5_i32 : i32 to vector<1x1x8xi32>
    %179 = arith.cmpi slt, %177, %178 : vector<1x1x8xi32>
    %cst_104 = arith.constant -1.000000e+30 : f32
    %180 = vector.shape_cast %179 : vector<1x1x8xi1> to vector<1x1x8xi1>
    %181 = vector.broadcast %180 : vector<1x1x8xi1> to vector<4x8x8xi1>
    %182 = vector.broadcast %cst_104 : f32 to vector<4x8x8xf32>
    %183 = arith.select %181, %176, %182 : vector<4x8x8xi1>, vector<4x8x8xf32>
    %cst_105 = arith.constant dense<0xFF800000> : vector<4x8xf32>
    %184 = vector.multi_reduction <maximumf>, %183, %cst_105 [2] : vector<4x8x8xf32> to vector<4x8xf32>
    %185 = vector.shape_cast %184 : vector<4x8xf32> to vector<4x8x1xf32>
    %186 = vector.broadcast %185 : vector<4x8x1xf32> to vector<4x8x8xf32>
    %187 = arith.subf %183, %186 : vector<4x8x8xf32>
    %188 = math.exp %187 : vector<4x8x8xf32>
    %cst_106 = arith.constant dense<0.000000e+00> : vector<4x8xf32>
    %189 = vector.multi_reduction <add>, %188, %cst_106 [2] : vector<4x8x8xf32> to vector<4x8xf32>
    %190 = vector.shape_cast %189 : vector<4x8xf32> to vector<4x8x1xf32>
    %191 = vector.broadcast %190 : vector<4x8x1xf32> to vector<4x8x8xf32>
    %192 = arith.divf %188, %191 : vector<4x8x8xf32>
    "tpu.trace_start"() <{level = 10 : i32, message = "bts,bsd->btd"}> : () -> ()
    %cst_107 = arith.constant dense<0.000000e+00> : vector<4x8x128xf32>
    %193 = tpu.matmul %192, %173, %cst_107 {dimension_numbers = #tpu.dot_dimension_numbers<[2], [1], [1], [2], [0, 0, 0, 1, 1, 2], [0], [0]>} : vector<4x8x8xf32>, vector<4x8x128xf32>, vector<4x8x128xf32> -> vector<4x8x128xf32>
    "tpu.trace_stop"() : () -> ()
    %194 = vector.shape_cast %193 : vector<4x8x128xf32> to vector<32x128xf32>
    %cst_108 = arith.constant dense<0.000000e+00> : vector<32x128xf32>
    %195 = tpu.matmul %194, %11, %cst_108 {dimension_numbers = #tpu.dot_dimension_numbers<[1], [0], [0], [1], [0, 0, 1, 1], [], []>} : vector<32x128xf32>, vector<128x128xf32>, vector<32x128xf32> -> vector<32x128xf32>
    %196 = vector.broadcast %12 : vector<1x128xf32> to vector<32x128xf32>
    %197 = arith.addf %195, %196 : vector<32x128xf32>
    %198 = arith.addf %164, %197 : vector<32x128xf32>
    %199 = vector.extract_strided_slice %13 {offsets = [0, 0, 0], sizes = [1, 1, 128], strides = [1, 1, 1]} : vector<2x1x128xf32> to vector<1x1x128xf32>
    %200 = vector.shape_cast %199 : vector<1x1x128xf32> to vector<1x128xf32>
    %201 = vector.extract_strided_slice %14 {offsets = [0, 0, 0], sizes = [1, 1, 128], strides = [1, 1, 1]} : vector<2x1x128xf32> to vector<1x1x128xf32>
    %202 = vector.shape_cast %201 : vector<1x1x128xf32> to vector<1x128xf32>
    %cst_109 = arith.constant dense<0.000000e+00> : vector<32xf32>
    %203 = vector.multi_reduction <add>, %198, %cst_109 [1] : vector<32x128xf32> to vector<32xf32>
    %204 = vector.shape_cast %203 : vector<32xf32> to vector<32x1xf32>
    %cst_110 = arith.constant 1.280000e+02 : f32
    %205 = vector.broadcast %cst_110 : f32 to vector<32x1xf32>
    %206 = arith.divf %204, %205 : vector<32x1xf32>
    %207 = vector.broadcast %206 : vector<32x1xf32> to vector<32x128xf32>
    %208 = arith.subf %198, %207 : vector<32x128xf32>
    %209 = arith.mulf %208, %208 : vector<32x128xf32>
    %cst_111 = arith.constant dense<0.000000e+00> : vector<32xf32>
    %210 = vector.multi_reduction <add>, %209, %cst_111 [1] : vector<32x128xf32> to vector<32xf32>
    %211 = vector.shape_cast %210 : vector<32xf32> to vector<32x1xf32>
    %cst_112 = arith.constant 1.280000e+02 : f32
    %212 = vector.broadcast %cst_112 : f32 to vector<32x1xf32>
    %213 = arith.divf %211, %212 : vector<32x1xf32>
    %214 = vector.broadcast %206 : vector<32x1xf32> to vector<32x128xf32>
    %215 = arith.subf %198, %214 : vector<32x128xf32>
    %cst_113 = arith.constant 9.99999974E-6 : f32
    %216 = vector.broadcast %cst_113 : f32 to vector<32x1xf32>
    %217 = arith.addf %213, %216 : vector<32x1xf32>
    %218 = math.rsqrt %217 : vector<32x1xf32>
    %219 = vector.broadcast %218 : vector<32x1xf32> to vector<32x128xf32>
    %220 = arith.mulf %215, %219 : vector<32x128xf32>
    %221 = vector.broadcast %200 : vector<1x128xf32> to vector<32x128xf32>
    %222 = arith.mulf %220, %221 : vector<32x128xf32>
    %223 = vector.broadcast %202 : vector<1x128xf32> to vector<32x128xf32>
    %224 = arith.addf %222, %223 : vector<32x128xf32>
    %cst_114 = arith.constant dense<0.000000e+00> : vector<32x256xf32>
    %225 = tpu.matmul %224, %15, %cst_114 {dimension_numbers = #tpu.dot_dimension_numbers<[1], [0], [0], [1], [0, 0, 1, 1], [], []>} : vector<32x128xf32>, vector<128x256xf32>, vector<32x256xf32> -> vector<32x256xf32>
    %226 = vector.broadcast %16 : vector<1x256xf32> to vector<32x256xf32>
    %227 = arith.addf %225, %226 : vector<32x256xf32>
    %cst_115 = arith.constant 0.000000e+00 : f32
    %228 = vector.broadcast %cst_115 : f32 to vector<32x256xf32>
    %229 = arith.maximumf %227, %228 : vector<32x256xf32>
    %cst_116 = arith.constant dense<0.000000e+00> : vector<32x128xf32>
    %230 = tpu.matmul %229, %17, %cst_116 {dimension_numbers = #tpu.dot_dimension_numbers<[1], [0], [0], [1], [0, 0, 1, 1], [], []>} : vector<32x256xf32>, vector<256x128xf32>, vector<32x128xf32> -> vector<32x128xf32>
    %231 = arith.addf %224, %230 : vector<32x128xf32>
    %232 = vector.broadcast %18 : vector<1x128xf32> to vector<32x128xf32>
    %233 = arith.addf %231, %232 : vector<32x128xf32>
    %234 = vector.extract_strided_slice %13 {offsets = [1, 0, 0], sizes = [1, 1, 128], strides = [1, 1, 1]} : vector<2x1x128xf32> to vector<1x1x128xf32>
    %235 = vector.shape_cast %234 : vector<1x1x128xf32> to vector<1x128xf32>
    %236 = vector.extract_strided_slice %14 {offsets = [1, 0, 0], sizes = [1, 1, 128], strides = [1, 1, 1]} : vector<2x1x128xf32> to vector<1x1x128xf32>
    %237 = vector.shape_cast %236 : vector<1x1x128xf32> to vector<1x128xf32>
    %cst_117 = arith.constant dense<0.000000e+00> : vector<32xf32>
    %238 = vector.multi_reduction <add>, %233, %cst_117 [1] : vector<32x128xf32> to vector<32xf32>
    %239 = vector.shape_cast %238 : vector<32xf32> to vector<32x1xf32>
    %cst_118 = arith.constant 1.280000e+02 : f32
    %240 = vector.broadcast %cst_118 : f32 to vector<32x1xf32>
    %241 = arith.divf %239, %240 : vector<32x1xf32>
    %242 = vector.broadcast %241 : vector<32x1xf32> to vector<32x128xf32>
    %243 = arith.subf %233, %242 : vector<32x128xf32>
    %244 = arith.mulf %243, %243 : vector<32x128xf32>
    %cst_119 = arith.constant dense<0.000000e+00> : vector<32xf32>
    %245 = vector.multi_reduction <add>, %244, %cst_119 [1] : vector<32x128xf32> to vector<32xf32>
    %246 = vector.shape_cast %245 : vector<32xf32> to vector<32x1xf32>
    %cst_120 = arith.constant 1.280000e+02 : f32
    %247 = vector.broadcast %cst_120 : f32 to vector<32x1xf32>
    %248 = arith.divf %246, %247 : vector<32x1xf32>
    %249 = vector.broadcast %241 : vector<32x1xf32> to vector<32x128xf32>
    %250 = arith.subf %233, %249 : vector<32x128xf32>
    %cst_121 = arith.constant 9.99999974E-6 : f32
    %251 = vector.broadcast %cst_121 : f32 to vector<32x1xf32>
    %252 = arith.addf %248, %251 : vector<32x1xf32>
    %253 = math.rsqrt %252 : vector<32x1xf32>
    %254 = vector.broadcast %253 : vector<32x1xf32> to vector<32x128xf32>
    %255 = arith.mulf %250, %254 : vector<32x128xf32>
    %256 = vector.broadcast %235 : vector<1x128xf32> to vector<32x128xf32>
    %257 = arith.mulf %255, %256 : vector<32x128xf32>
    %258 = vector.broadcast %237 : vector<1x128xf32> to vector<32x128xf32>
    %259 = arith.addf %257, %258 : vector<32x128xf32>
    %260 = vector.shape_cast %259 : vector<32x128xf32> to vector<4x8x128xf32>
    %261 = vector.extract_strided_slice %260 {offsets = [0, 0, 0], sizes = [4, 5, 128], strides = [1, 1, 1]} : vector<4x8x128xf32> to vector<4x5x128xf32>
    %cst_122 = arith.constant dense<0.000000e+00> : vector<4x128xf32>
    %262 = vector.multi_reduction <add>, %261, %cst_122 [1] : vector<4x5x128xf32> to vector<4x128xf32>
    %cst_123 = arith.constant 5.000000e+00 : f32
    %263 = vector.broadcast %cst_123 : f32 to vector<4x128xf32>
    %264 = arith.divf %262, %263 : vector<4x128xf32>
    %cst_124 = arith.constant dense<0.000000e+00> : vector<4x128xf32>
    %265 = tpu.matmul %264, %19, %cst_124 {dimension_numbers = #tpu.dot_dimension_numbers<[1], [0], [0], [1], [0, 0, 1, 1], [], []>} : vector<4x128xf32>, vector<128x128xf32>, vector<4x128xf32> -> vector<4x128xf32>
    %266 = vector.broadcast %20 : vector<1x128xf32> to vector<4x128xf32>
    %267 = arith.addf %265, %266 : vector<4x128xf32>
    %c0_125 = arith.constant 0 : index
    %c0_126 = arith.constant 0 : index
    %c0_127 = arith.constant 0 : index
    %268 = vector.load %arg25[%c0_125, %c0_126, %c0_127] : memref<4x1x128xf32, #tpu.memory_space<vmem>>, vector<4x1x128xf32>
    %269 = vector.shape_cast %268 : vector<4x1x128xf32> to vector<4x128xf32>
    %270 = vector.shape_cast %267 : vector<4x128xf32> to vector<4x1x128xf32>
    tpu.vector_store %arg25[%c0_125, %c0_126, %c0_127], %270 {strides = array<i32>} : memref<4x1x128xf32, #tpu.memory_space<vmem>>, vector<4x1x128xf32>,
    return
  }
  func.func @transform_0(%arg0: i32) -> (i32, i32, i32) {
    %c0_i32 = arith.constant 0 : i32
    %c0_i32_0 = arith.constant 0 : i32
    %c0_i32_1 = arith.constant 0 : i32
    return %arg0, %c0_i32, %c0_i32_0 : i32, i32, i32
  }
  func.func @transform_1(%arg0: i32) -> (i32, i32, i32) {
    %c0_i32 = arith.constant 0 : i32
    %c0_i32_0 = arith.constant 0 : i32
    %c0_i32_1 = arith.constant 0 : i32
    return %arg0, %c0_i32, %c0_i32_0 : i32, i32, i32
  }
  func.func @transform_2(%arg0: i32) -> (i32, i32, i32) {
    %c0_i32 = arith.constant 0 : i32
    %c0_i32_0 = arith.constant 0 : i32
    %c0_i32_1 = arith.constant 0 : i32
    return %arg0, %c0_i32, %c0_i32_0 : i32, i32, i32
  }
  func.func @transform_3(%arg0: i32) -> (i32, i32) {
    %c0_i32 = arith.constant 0 : i32
    %c0_i32_0 = arith.constant 0 : i32
    %c0_i32_1 = arith.constant 0 : i32
    return %c0_i32, %c0_i32_0 : i32, i32
  }
  func.func @transform_4(%arg0: i32) -> (i32, i32) {
    %c0_i32 = arith.constant 0 : i32
    %c0_i32_0 = arith.constant 0 : i32
    %c0_i32_1 = arith.constant 0 : i32
    return %c0_i32, %c0_i32_0 : i32, i32
  }
  func.func @transform_5(%arg0: i32) -> (i32, i32) {
    %c0_i32 = arith.constant 0 : i32
    %c0_i32_0 = arith.constant 0 : i32
    %c0_i32_1 = arith.constant 0 : i32
    return %c0_i32, %c0_i32_0 : i32, i32
  }
  func.func @transform_6(%arg0: i32) -> (i32, i32, i32) {
    %c0_i32 = arith.constant 0 : i32
    %c0_i32_0 = arith.constant 0 : i32
    %c0_i32_1 = arith.constant 0 : i32
    %c0_i32_2 = arith.constant 0 : i32
    return %c0_i32, %c0_i32_0, %c0_i32_1 : i32, i32, i32
  }
  func.func @transform_7(%arg0: i32) -> (i32, i32, i32) {
    %c0_i32 = arith.constant 0 : i32
    %c0_i32_0 = arith.constant 0 : i32
    %c0_i32_1 = arith.constant 0 : i32
    %c0_i32_2 = arith.constant 0 : i32
    return %c0_i32, %c0_i32_0, %c0_i32_1 : i32, i32, i32
  }
  func.func @transform_8(%arg0: i32) -> (i32, i32, i32) {
    %c0_i32 = arith.constant 0 : i32
    %c0_i32_0 = arith.constant 0 : i32
    %c0_i32_1 = arith.constant 0 : i32
    %c0_i32_2 = arith.constant 0 : i32
    return %c0_i32, %c0_i32_0, %c0_i32_1 : i32, i32, i32
  }
  func.func @transform_9(%arg0: i32) -> (i32, i32, i32) {
    %c0_i32 = arith.constant 0 : i32
    %c0_i32_0 = arith.constant 0 : i32
    %c0_i32_1 = arith.constant 0 : i32
    %c0_i32_2 = arith.constant 0 : i32
    return %c0_i32, %c0_i32_0, %c0_i32_1 : i32, i32, i32
  }
  func.func @transform_10(%arg0: i32) -> (i32, i32) {
    %c0_i32 = arith.constant 0 : i32
    %c0_i32_0 = arith.constant 0 : i32
    %c0_i32_1 = arith.constant 0 : i32
    return %c0_i32, %c0_i32_0 : i32, i32
  }
  func.func @transform_11(%arg0: i32) -> (i32, i32) {
    %c0_i32 = arith.constant 0 : i32
    %c0_i32_0 = arith.constant 0 : i32
    %c0_i32_1 = arith.constant 0 : i32
    return %c0_i32, %c0_i32_0 : i32, i32
  }
  func.func @transform_12(%arg0: i32) -> (i32, i32) {
    %c0_i32 = arith.constant 0 : i32
    %c0_i32_0 = arith.constant 0 : i32
    %c0_i32_1 = arith.constant 0 : i32
    return %c0_i32, %c0_i32_0 : i32, i32
  }
  func.func @transform_13(%arg0: i32) -> (i32, i32) {
    %c0_i32 = arith.constant 0 : i32
    %c0_i32_0 = arith.constant 0 : i32
    %c0_i32_1 = arith.constant 0 : i32
    return %c0_i32, %c0_i32_0 : i32, i32
  }
  func.func @transform_14(%arg0: i32) -> (i32, i32) {
    %c0_i32 = arith.constant 0 : i32
    %c0_i32_0 = arith.constant 0 : i32
    %c0_i32_1 = arith.constant 0 : i32
    return %c0_i32, %c0_i32_0 : i32, i32
  }
  func.func @transform_15(%arg0: i32) -> (i32, i32) {
    %c0_i32 = arith.constant 0 : i32
    %c0_i32_0 = arith.constant 0 : i32
    %c0_i32_1 = arith.constant 0 : i32
    return %c0_i32, %c0_i32_0 : i32, i32
  }
  func.func @transform_16(%arg0: i32) -> (i32, i32, i32) {
    %c0_i32 = arith.constant 0 : i32
    %c0_i32_0 = arith.constant 0 : i32
    %c0_i32_1 = arith.constant 0 : i32
    %c0_i32_2 = arith.constant 0 : i32
    return %c0_i32, %c0_i32_0, %c0_i32_1 : i32, i32, i32
  }
  func.func @transform_17(%arg0: i32) -> (i32, i32, i32) {
    %c0_i32 = arith.constant 0 : i32
    %c0_i32_0 = arith.constant 0 : i32
    %c0_i32_1 = arith.constant 0 : i32
    %c0_i32_2 = arith.constant 0 : i32
    return %c0_i32, %c0_i32_0, %c0_i32_1 : i32, i32, i32
  }
  func.func @transform_18(%arg0: i32) -> (i32, i32) {
    %c0_i32 = arith.constant 0 : i32
    %c0_i32_0 = arith.constant 0 : i32
    %c0_i32_1 = arith.constant 0 : i32
    return %c0_i32, %c0_i32_0 : i32, i32
  }
  func.func @transform_19(%arg0: i32) -> (i32, i32) {
    %c0_i32 = arith.constant 0 : i32
    %c0_i32_0 = arith.constant 0 : i32
    %c0_i32_1 = arith.constant 0 : i32
    return %c0_i32, %c0_i32_0 : i32, i32
  }
  func.func @transform_20(%arg0: i32) -> (i32, i32) {
    %c0_i32 = arith.constant 0 : i32
    %c0_i32_0 = arith.constant 0 : i32
    %c0_i32_1 = arith.constant 0 : i32
    return %c0_i32, %c0_i32_0 : i32, i32
  }
  func.func @transform_21(%arg0: i32) -> (i32, i32) {
    %c0_i32 = arith.constant 0 : i32
    %c0_i32_0 = arith.constant 0 : i32
    %c0_i32_1 = arith.constant 0 : i32
    return %c0_i32, %c0_i32_0 : i32, i32
  }
  func.func @transform_22(%arg0: i32) -> (i32, i32) {
    %c0_i32 = arith.constant 0 : i32
    %c0_i32_0 = arith.constant 0 : i32
    %c0_i32_1 = arith.constant 0 : i32
    return %c0_i32, %c0_i32_0 : i32, i32
  }
  func.func @transform_23(%arg0: i32) -> (i32, i32) {
    %c0_i32 = arith.constant 0 : i32
    %c0_i32_0 = arith.constant 0 : i32
    %c0_i32_1 = arith.constant 0 : i32
    return %c0_i32, %c0_i32_0 : i32, i32
  }
  func.func @transform_24(%arg0: i32) -> (i32, i32, i32) {
    %c0_i32 = arith.constant 0 : i32
    %c0_i32_0 = arith.constant 0 : i32
    %c0_i32_1 = arith.constant 0 : i32
    return %arg0, %c0_i32, %c0_i32_0 : i32, i32, i32
  }
}

</mosaic_0001>

<llo_original>
// kernel: tpu_custom_call.1
$region0: #{tpu_custom_call.1}
  #allocation0 [shape = 'u32[]', space=smem, size = 0x4, offset = 0x4, fixed_abs, tag = 'smem constant byte address 0x4 - core index']
  #allocation1 [shape = 'u32[72,128]{1,0:T(1,128)}', space=vmem, size = 0x9000, scoped, tag = 'internal scratch']
  #allocation2 [shape = 'f32[4,8,128]{2,1,0:T(8,128)}', space=vmem, size = 0x4000, scoped, tag = 'scratch operand']
  %s0 = inlined_call_operand.vmem [shape: bf16[8,64,6], index: 0, kind: input, shape index: {}]
  %s1 = inlined_call_operand.vmem [shape: bf16[8,64,2], index: 1, kind: input, shape index: {}]
  %s2 = inlined_call_operand.vmem [shape: f32[8,1,128], index: 2, kind: input, shape index: {}]
  %s3 = inlined_call_operand.vmem [shape: bf16[6,256], index: 3, kind: input, shape index: {}]
  %s4 = inlined_call_operand.hbm [shape: bf16[2,256], index: 4, kind: input, shape index: {}]
  %s5 = inlined_call_operand.hbm [shape: f32[1,256], index: 5, kind: input, shape index: {}]
  %s6 = inlined_call_operand.vmem [shape: bf16[4,64,128], index: 6, kind: input, shape index: {}]
  %s7 = inlined_call_operand.vmem [shape: f32[4,1,128], index: 7, kind: input, shape index: {}]
  %s8 = inlined_call_operand.hbm [shape: bf16[4,128,128], index: 8, kind: input, shape index: {}]
  %s9 = inlined_call_operand.vmem [shape: f32[4,1,128], index: 9, kind: input, shape index: {}]
  %s10 = inlined_call_operand.hbm [shape: f32[128,128], index: 10, kind: input, shape index: {}]
  %s11 = inlined_call_operand.hbm [shape: f32[1,128], index: 11, kind: input, shape index: {}]
  %s12 = inlined_call_operand.vmem [shape: f32[128,384], index: 12, kind: input, shape index: {}]
  %s13 = inlined_call_operand.vmem [shape: f32[1,384], index: 13, kind: input, shape index: {}]
  %s14 = inlined_call_operand.hbm [shape: f32[128,128], index: 14, kind: input, shape index: {}]
  %s15 = inlined_call_operand.vmem [shape: f32[1,128], index: 15, kind: input, shape index: {}]
  %s16 = inlined_call_operand.vmem [shape: f32[2,1,128], index: 16, kind: input, shape index: {}]
  %s17 = inlined_call_operand.vmem [shape: f32[2,1,128], index: 17, kind: input, shape index: {}]
  %s18 = inlined_call_operand.hbm [shape: f32[128,256], index: 18, kind: input, shape index: {}]
  %s19 = inlined_call_operand.vmem [shape: f32[1,256], index: 19, kind: input, shape index: {}]
  %s20 = inlined_call_operand.hbm [shape: f32[256,128], index: 20, kind: input, shape index: {}]
  %s21 = inlined_call_operand.vmem [shape: f32[1,128], index: 21, kind: input, shape index: {}]
  %s22 = inlined_call_operand.hbm [shape: f32[128,128], index: 22, kind: input, shape index: {}]
  %s23 = inlined_call_operand.vmem [shape: f32[1,128], index: 23, kind: input, shape index: {}]
  %s24 = inlined_call_operand.hbm [shape: f32[8,1,128], index: 24, kind: output, shape index: {}]
  %s25 = sld [smem:[#allocation0]]
  $region165: #{tpu_custom_call.1} parent=0
    _
  %s27 = ssub.s32 1, %s25
  %s28 = scalar_select 0, %s27, %s25
  $region1: #{tpu_custom_call.1} parent=0
    #allocation3 [shape = 'u8[1024]{0}', space=vmem, size = 0x400, scoped, tag = 'input window, operand 4, single buffered']
    #allocation4 [shape = 's32[2]{0}', space=sflag, size = 0x8, scoped, tag = 'scoped memory for tpu_custom_call.1']
    #allocation5 [shape = 's32[2]{0}', space=sflag, size = 0x8, scoped, tag = 'scoped memory for tpu_custom_call.1']
    #allocation6 [shape = 'u8[1024]{0}', space=vmem, size = 0x400, scoped, tag = 'input window, operand 5, single buffered']
    #allocation7 [shape = 's32[1]{0}', space=sflag, size = 0x4, scoped, tag = 'scoped memory for tpu_custom_call.1']
    #allocation8 [shape = 'u8[131072]{0}', space=vmem, size = 0x20000, scoped, tag = 'input window, operand 8, single buffered']
    #allocation9 [shape = 'u8[65536]{0}', space=vmem, size = 0x10000, scoped, tag = 'input window, operand 10, single buffered']
    #allocation10 [shape = 's32[1]{0}', space=sflag, size = 0x4, scoped, tag = 'scoped memory for tpu_custom_call.1']
    #allocation11 [shape = 'u8[512]{0}', space=vmem, size = 0x400, scoped, tag = 'input window, operand 11, single buffered']
    #allocation12 [shape = 'u8[65536]{0}', space=vmem, size = 0x10000, scoped, tag = 'input window, operand 14, single buffered']
    #allocation13 [shape = 's32[1]{0}', space=sflag, size = 0x4, scoped, tag = 'scoped memory for tpu_custom_call.1']
    #allocation14 [shape = 'u8[131072]{0}', space=vmem, size = 0x20000, scoped, tag = 'input window, operand 18, single buffered']
    #allocation15 [shape = 'u8[131072]{0}', space=vmem, size = 0x20000, scoped, tag = 'input window, operand 20, single buffered']
    #allocation16 [shape = 's32[1]{0}', space=sflag, size = 0x4, scoped, tag = 'scoped memory for tpu_custom_call.1']
    #allocation17 [shape = 'u8[65536]{0}', space=vmem, size = 0x10000, scoped, tag = 'input window, operand 22, single buffered']
    #allocation18 [shape = 'u8[4096]{0}', space=vmem, size = 0x1000, scoped, tag = 'output window, operand 0']
    %29 = vsyncpa [#allocation4], 0
    %30 = vsyncpa [#allocation7], 0
    %31 = vsyncpa [#allocation10], 0
    %32 = vsyncpa [#allocation13], 0
    %33 = vsyncpa [#allocation16], 0
    %34 = vsyncpa [#allocation5], 0
    %s35 = scalar_lea.sflag [#allocation5], 1
    %36 = vsyncpa %s35, 0
    loop: start=0, step=1, limit=4
    $region2: #{tpu_custom_call.1} parent=1 // loop_pre_header
      _
    $region3: #{tpu_custom_call.1} parent=1 // loop_header
      %s38 = sphi 0, %s42
      %p39 = scmp.ge.s32.totalorder %s38, 4
      %s48 = sphi 0, %s50
      %s51 = sphi 0, %s48
      %s52 = sphi 0, %s51
      %s68 = sphi 0, %s52
      %s74 = sphi 0, %s76
      %s77 = sphi 0, %s74
      %s78 = sphi 0, %s77
      %s94 = sphi 0, %s78
      %s100 = sphi 0, %s102
      %s103 = sphi 0, %s100
      %s104 = sphi 0, %s103
      %s120 = sphi 0, %s104
      %s124 = sphi 0, %s124
      %s126 = sphi 0, %s124
      %s127 = sphi 0, %s126
      %s141 = sphi 0, %s127
      %s145 = sphi 0, %s145
      %s147 = sphi 0, %s145
      %s148 = sphi 0, %s147
      %s162 = sphi 0, %s148
      %s166 = sphi 0, %s166
      %s168 = sphi 0, %s166
      %s169 = sphi 0, %s168
      %s183 = sphi 0, %s169
      %s187 = sphi 0, %s187
      %s189 = sphi 0, %s187
      %s190 = sphi 0, %s189
      %s204 = sphi 0, %s190
      %s208 = sphi 0, %s208
      %s210 = sphi 0, %s208
      %s211 = sphi 0, %s210
      %s225 = sphi 0, %s211
      %s229 = sphi 0, %s229
      %s231 = sphi 0, %s229
      %s232 = sphi 0, %s231
      %s246 = sphi 0, %s232
      %s250 = sphi 0, %s250
      %s252 = sphi 0, %s250
      %s253 = sphi 0, %s252
      %s267 = sphi 0, %s253
      %s271 = sphi 0, %s271
      %s273 = sphi 0, %s271
      %s274 = sphi 0, %s273
      %s288 = sphi 0, %s274
      %s292 = sphi 0, %s292
      %s294 = sphi 0, %s292
      %s295 = sphi 0, %s294
      %s309 = sphi 0, %s295
      %s313 = sphi 0, %s313
      %s315 = sphi 0, %s313
      %s316 = sphi 0, %s315
      %s330 = sphi 0, %s316
      %s334 = sphi 0, %s334
      %s336 = sphi 0, %s334
      %s337 = sphi 0, %s336
      %s351 = sphi 0, %s337
      %s355 = sphi 0, %s355
      %s357 = sphi 0, %s355
      %s358 = sphi 0, %s357
      %s372 = sphi 0, %s358
      %s376 = sphi 0, %s376
      %s378 = sphi 0, %s376
      %s379 = sphi 0, %s378
      %s393 = sphi 0, %s379
      %s397 = sphi 0, %s397
      %s399 = sphi 0, %s397
      %s400 = sphi 0, %s399
      %s414 = sphi 0, %s400
      %s418 = sphi 0, %s418
      %s420 = sphi 0, %s418
      %s421 = sphi 0, %s420
      %s435 = sphi 0, %s421
      %s439 = sphi 0, %s439
      %s441 = sphi 0, %s439
      %s442 = sphi 0, %s441
      %s456 = sphi 0, %s442
      %s460 = sphi 0, %s460
      %s462 = sphi 0, %s460
      %s463 = sphi 0, %s462
      %s477 = sphi 0, %s463
      %s481 = sphi 0, %s481
      %s483 = sphi 0, %s481
      %s484 = sphi 0, %s483
      %s498 = sphi 0, %s484
      %s502 = sphi 0, %s502
      %s504 = sphi 0, %s502
      %s505 = sphi 0, %s504
      %s519 = sphi 0, %s505
      %s523 = sphi 0, %s523
      %s525 = sphi 0, %s523
      %s526 = sphi 0, %s525
      %s540 = sphi 0, %s526
      %s544 = sphi 0, %s544
      %s546 = sphi 0, %s544
      %s547 = sphi 0, %s546
      %s561 = sphi 0, %s547
      %s567 = sphi 0, %s569
      %s570 = sphi 0, %s567
      %s571 = sphi 0, %s570
      %s587 = sphi 0, %s571
    $region4: #{tpu_custom_call.1} parent=1 // loop_header_branch
      %41 = sbr.rel (%p39) target = $region8
    $region5: #{tpu_custom_call.1} parent=1 // loop_body
      %s43 = ssub.s32 %s38, 1
      %s44 = ssub.s32 %s38, 2
      %s45 = sadd.s32 %s38, 1
      %s46 = ssub.s32 %s38, %s45
      %p47 = scmp.eq.s32.totalorder %s46, 0
      %s49 = sadd.s32 %s48, 1
      %s50 = scalar_select %p47, %s48, %s49
      %p53 = pneg %p47
      %p54 = scmp.eq.s32.totalorder %s38, 1
      %p55 = por %p53, %p54
      %p56 = scmp.ne.s32.totalorder %s48, %s51
      %p57 = scmp.eq.s32.totalorder %s38, 0
      %p58 = por %p56, %p57
      %p59 = scmp.ne.s32.totalorder %s48, %s51
      %p60 = scmp.eq.s32.totalorder %s43, 1
      %p61 = por %p59, %p60
      %p62 = scmp.ne.s32.totalorder %s51, %s52
      %p63 = scmp.eq.s32.totalorder %s43, 0
      %p64 = por %p62, %p63
      %p65 = scmp.ne.s32.totalorder %s51, %s52
      %p66 = scmp.eq.s32.totalorder %s44, 1
      %p67 = por %p65, %p66
      %p69 = scmp.ne.s32.totalorder %s52, %s68
      %p70 = scmp.eq.s32.totalorder %s44, 0
      %p71 = por %p69, %p70
      %s72 = ssub.s32 %s38, %s45
      %p73 = scmp.eq.s32.totalorder %s72, 0
      %s75 = sadd.s32 %s74, 1
      %s76 = scalar_select %p73, %s74, %s75
      %p79 = pneg %p73
      %p80 = scmp.eq.s32.totalorder %s38, 1
      %p81 = por %p79, %p80
      %p82 = scmp.ne.s32.totalorder %s74, %s77
      %p83 = scmp.eq.s32.totalorder %s38, 0
      %p84 = por %p82, %p83
      %p85 = scmp.ne.s32.totalorder %s74, %s77
      %p86 = scmp.eq.s32.totalorder %s43, 1
      %p87 = por %p85, %p86
      %p88 = scmp.ne.s32.totalorder %s77, %s78
      %p89 = scmp.eq.s32.totalorder %s43, 0
      %p90 = por %p88, %p89
      %p91 = scmp.ne.s32.totalorder %s77, %s78
      %p92 = scmp.eq.s32.totalorder %s44, 1
      %p93 = por %p91, %p92
      %p95 = scmp.ne.s32.totalorder %s78, %s94
      %p96 = scmp.eq.s32.totalorder %s44, 0
      %p97 = por %p95, %p96
      %s98 = ssub.s32 %s38, %s45
      %p99 = scmp.eq.s32.totalorder %s98, 0
      %s101 = sadd.s32 %s100, 1
      %s102 = scalar_select %p99, %s100, %s101
      %p105 = pneg %p99
      %p106 = scmp.eq.s32.totalorder %s38, 1
      %p107 = por %p105, %p106
      %p108 = scmp.ne.s32.totalorder %s100, %s103
      %p109 = scmp.eq.s32.totalorder %s38, 0
      %p110 = por %p108, %p109
      %p111 = scmp.ne.s32.totalorder %s100, %s103
      %p112 = scmp.eq.s32.totalorder %s43, 1
      %p113 = por %p111, %p112
      %p114 = scmp.ne.s32.totalorder %s103, %s104
      %p115 = scmp.eq.s32.totalorder %s43, 0
      %p116 = por %p114, %p115
      %p117 = scmp.ne.s32.totalorder %s103, %s104
      %p118 = scmp.eq.s32.totalorder %s44, 1
      %p119 = por %p117, %p118
      %p121 = scmp.ne.s32.totalorder %s104, %s120
      %p122 = scmp.eq.s32.totalorder %s44, 0
      %p123 = por %p121, %p122
      %s125 = sadd.s32 %s124, 1
      %p128 = scmp.eq.s32.totalorder %s38, 1
      %p129 = scmp.ne.s32.totalorder %s124, %s126
      %p130 = scmp.eq.s32.totalorder %s38, 0
      %p131 = por %p129, %p130
      %p132 = scmp.ne.s32.totalorder %s124, %s126
      %p133 = scmp.eq.s32.totalorder %s43, 1
      %p134 = por %p132, %p133
      %p135 = scmp.ne.s32.totalorder %s126, %s127
      %p136 = scmp.eq.s32.totalorder %s43, 0
      %p137 = por %p135, %p136
      %p138 = scmp.ne.s32.totalorder %s126, %s127
      %p139 = scmp.eq.s32.totalorder %s44, 1
      %p140 = por %p138, %p139
      %p142 = scmp.ne.s32.totalorder %s127, %s141
      %p143 = scmp.eq.s32.totalorder %s44, 0
      %p144 = por %p142, %p143
      %s146 = sadd.s32 %s145, 1
      %p149 = scmp.eq.s32.totalorder %s38, 1
      %p150 = scmp.ne.s32.totalorder %s145, %s147
      %p151 = scmp.eq.s32.totalorder %s38, 0
      %p152 = por %p150, %p151
      %p153 = scmp.ne.s32.totalorder %s145, %s147
      %p154 = scmp.eq.s32.totalorder %s43, 1
      %p155 = por %p153, %p154
      %p156 = scmp.ne.s32.totalorder %s147, %s148
      %p157 = scmp.eq.s32.totalorder %s43, 0
      %p158 = por %p156, %p157
      %p159 = scmp.ne.s32.totalorder %s147, %s148
      %p160 = scmp.eq.s32.totalorder %s44, 1
      %p161 = por %p159, %p160
      %p163 = scmp.ne.s32.totalorder %s148, %s162
      %p164 = scmp.eq.s32.totalorder %s44, 0
      %p165 = por %p163, %p164
      %s167 = sadd.s32 %s166, 1
      %p170 = scmp.eq.s32.totalorder %s38, 1
      %p171 = scmp.ne.s32.totalorder %s166, %s168
      %p172 = scmp.eq.s32.totalorder %s38, 0
      %p173 = por %p171, %p172
      %p174 = scmp.ne.s32.totalorder %s166, %s168
      %p175 = scmp.eq.s32.totalorder %s43, 1
      %p176 = por %p174, %p175
      %p177 = scmp.ne.s32.totalorder %s168, %s169
      %p178 = scmp.eq.s32.totalorder %s43, 0
      %p179 = por %p177, %p178
      %p180 = scmp.ne.s32.totalorder %s168, %s169
      %p181 = scmp.eq.s32.totalorder %s44, 1
      %p182 = por %p180, %p181
      %p184 = scmp.ne.s32.totalorder %s169, %s183
      %p185 = scmp.eq.s32.totalorder %s44, 0
      %p186 = por %p184, %p185
      %s188 = sadd.s32 %s187, 1
      %p191 = scmp.eq.s32.totalorder %s38, 1
      %p192 = scmp.ne.s32.totalorder %s187, %s189
      %p193 = scmp.eq.s32.totalorder %s38, 0
      %p194 = por %p192, %p193
      %p195 = scmp.ne.s32.totalorder %s187, %s189
      %p196 = scmp.eq.s32.totalorder %s43, 1
      %p197 = por %p195, %p196
      %p198 = scmp.ne.s32.totalorder %s189, %s190
      %p199 = scmp.eq.s32.totalorder %s43, 0
      %p200 = por %p198, %p199
      %p201 = scmp.ne.s32.totalorder %s189, %s190
      %p202 = scmp.eq.s32.totalorder %s44, 1
      %p203 = por %p201, %p202
      %p205 = scmp.ne.s32.totalorder %s190, %s204
      %p206 = scmp.eq.s32.totalorder %s44, 0
      %p207 = por %p205, %p206
      %s209 = sadd.s32 %s208, 1
      %p212 = scmp.eq.s32.totalorder %s38, 1
      %p213 = scmp.ne.s32.totalorder %s208, %s210
      %p214 = scmp.eq.s32.totalorder %s38, 0
      %p215 = por %p213, %p214
      %p216 = scmp.ne.s32.totalorder %s208, %s210
      %p217 = scmp.eq.s32.totalorder %s43, 1
      %p218 = por %p216, %p217
      %p219 = scmp.ne.s32.totalorder %s210, %s211
      %p220 = scmp.eq.s32.totalorder %s43, 0
      %p221 = por %p219, %p220
      %p222 = scmp.ne.s32.totalorder %s210, %s211
      %p223 = scmp.eq.s32.totalorder %s44, 1
      %p224 = por %p222, %p223
      %p226 = scmp.ne.s32.totalorder %s211, %s225
      %p227 = scmp.eq.s32.totalorder %s44, 0
      %p228 = por %p226, %p227
      %s230 = sadd.s32 %s229, 1
      %p233 = scmp.eq.s32.totalorder %s38, 1
      %p234 = scmp.ne.s32.totalorder %s229, %s231
      %p235 = scmp.eq.s32.totalorder %s38, 0
      %p236 = por %p234, %p235
      %p237 = scmp.ne.s32.totalorder %s229, %s231
      %p238 = scmp.eq.s32.totalorder %s43, 1
      %p239 = por %p237, %p238
      %p240 = scmp.ne.s32.totalorder %s231, %s232
      %p241 = scmp.eq.s32.totalorder %s43, 0
      %p242 = por %p240, %p241
      %p243 = scmp.ne.s32.totalorder %s231, %s232
      %p244 = scmp.eq.s32.totalorder %s44, 1
      %p245 = por %p243, %p244
      %p247 = scmp.ne.s32.totalorder %s232, %s246
      %p248 = scmp.eq.s32.totalorder %s44, 0
      %p249 = por %p247, %p248
      %s251 = sadd.s32 %s250, 1
      %p254 = scmp.eq.s32.totalorder %s38, 1
      %p255 = scmp.ne.s32.totalorder %s250, %s252
      %p256 = scmp.eq.s32.totalorder %s38, 0
      %p257 = por %p255, %p256
      %p258 = scmp.ne.s32.totalorder %s250, %s252
      %p259 = scmp.eq.s32.totalorder %s43, 1
      %p260 = por %p258, %p259
      %p261 = scmp.ne.s32.totalorder %s252, %s253
      %p262 = scmp.eq.s32.totalorder %s43, 0
      %p263 = por %p261, %p262
      %p264 = scmp.ne.s32.totalorder %s252, %s253
      %p265 = scmp.eq.s32.totalorder %s44, 1
      %p266 = por %p264, %p265
      %p268 = scmp.ne.s32.totalorder %s253, %s267
      %p269 = scmp.eq.s32.totalorder %s44, 0
      %p270 = por %p268, %p269
      %s272 = sadd.s32 %s271, 1
      %p275 = scmp.eq.s32.totalorder %s38, 1
      %p276 = scmp.ne.s32.totalorder %s271, %s273
      %p277 = scmp.eq.s32.totalorder %s38, 0
      %p278 = por %p276, %p277
      %p279 = scmp.ne.s32.totalorder %s271, %s273
      %p280 = scmp.eq.s32.totalorder %s43, 1
      %p281 = por %p279, %p280
      %p282 = scmp.ne.s32.totalorder %s273, %s274
      %p283 = scmp.eq.s32.totalorder %s43, 0
      %p284 = por %p282, %p283
      %p285 = scmp.ne.s32.totalorder %s273, %s274
      %p286 = scmp.eq.s32.totalorder %s44, 1
      %p287 = por %p285, %p286
      %p289 = scmp.ne.s32.totalorder %s274, %s288
      %p290 = scmp.eq.s32.totalorder %s44, 0
      %p291 = por %p289, %p290
      %s293 = sadd.s32 %s292, 1
      %p296 = scmp.eq.s32.totalorder %s38, 1
      %p297 = scmp.ne.s32.totalorder %s292, %s294
      %p298 = scmp.eq.s32.totalorder %s38, 0
      %p299 = por %p297, %p298
      %p300 = scmp.ne.s32.totalorder %s292, %s294
      %p301 = scmp.eq.s32.totalorder %s43, 1
      %p302 = por %p300, %p301
      %p303 = scmp.ne.s32.totalorder %s294, %s295
      %p304 = scmp.eq.s32.totalorder %s43, 0
      %p305 = por %p303, %p304
      %p306 = scmp.ne.s32.totalorder %s294, %s295
      %p307 = scmp.eq.s32.totalorder %s44, 1
      %p308 = por %p306, %p307
      %p310 = scmp.ne.s32.totalorder %s295, %s309
      %p311 = scmp.eq.s32.totalorder %s44, 0
      %p312 = por %p310, %p311
      %s314 = sadd.s32 %s313, 1
      %p317 = scmp.eq.s32.totalorder %s38, 1
      %p318 = scmp.ne.s32.totalorder %s313, %s315
      %p319 = scmp.eq.s32.totalorder %s38, 0
      %p320 = por %p318, %p319
      %p321 = scmp.ne.s32.totalorder %s313, %s315
      %p322 = scmp.eq.s32.totalorder %s43, 1
      %p323 = por %p321, %p322
      %p324 = scmp.ne.s32.totalorder %s315, %s316
      %p325 = scmp.eq.s32.totalorder %s43, 0
      %p326 = por %p324, %p325
      %p327 = scmp.ne.s32.totalorder %s315, %s316
      %p328 = scmp.eq.s32.totalorder %s44, 1
      %p329 = por %p327, %p328
      %p331 = scmp.ne.s32.totalorder %s316, %s330
      %p332 = scmp.eq.s32.totalorder %s44, 0
      %p333 = por %p331, %p332
      %s335 = sadd.s32 %s334, 1
      %p338 = scmp.eq.s32.totalorder %s38, 1
      %p339 = scmp.ne.s32.totalorder %s334, %s336
      %p340 = scmp.eq.s32.totalorder %s38, 0
      %p341 = por %p339, %p340
      %p342 = scmp.ne.s32.totalorder %s334, %s336
      %p343 = scmp.eq.s32.totalorder %s43, 1
      %p344 = por %p342, %p343
      %p345 = scmp.ne.s32.totalorder %s336, %s337
      %p346 = scmp.eq.s32.totalorder %s43, 0
      %p347 = por %p345, %p346
      %p348 = scmp.ne.s32.totalorder %s336, %s337
      %p349 = scmp.eq.s32.totalorder %s44, 1
      %p350 = por %p348, %p349
      %p352 = scmp.ne.s32.totalorder %s337, %s351
      %p353 = scmp.eq.s32.totalorder %s44, 0
      %p354 = por %p352, %p353
      %s356 = sadd.s32 %s355, 1
      %p359 = scmp.eq.s32.totalorder %s38, 1
      %p360 = scmp.ne.s32.totalorder %s355, %s357
      %p361 = scmp.eq.s32.totalorder %s38, 0
      %p362 = por %p360, %p361
      %p363 = scmp.ne.s32.totalorder %s355, %s357
      %p364 = scmp.eq.s32.totalorder %s43, 1
      %p365 = por %p363, %p364
      %p366 = scmp.ne.s32.totalorder %s357, %s358
      %p367 = scmp.eq.s32.totalorder %s43, 0
      %p368 = por %p366, %p367
      %p369 = scmp.ne.s32.totalorder %s357, %s358
      %p370 = scmp.eq.s32.totalorder %s44, 1
      %p371 = por %p369, %p370
      %p373 = scmp.ne.s32.totalorder %s358, %s372
      %p374 = scmp.eq.s32.totalorder %s44, 0
      %p375 = por %p373, %p374
      %s377 = sadd.s32 %s376, 1
      %p380 = scmp.eq.s32.totalorder %s38, 1
      %p381 = scmp.ne.s32.totalorder %s376, %s378
      %p382 = scmp.eq.s32.totalorder %s38, 0
      %p383 = por %p381, %p382
      %p384 = scmp.ne.s32.totalorder %s376, %s378
      %p385 = scmp.eq.s32.totalorder %s43, 1
      %p386 = por %p384, %p385
      %p387 = scmp.ne.s32.totalorder %s378, %s379
      %p388 = scmp.eq.s32.totalorder %s43, 0
      %p389 = por %p387, %p388
      %p390 = scmp.ne.s32.totalorder %s378, %s379
      %p391 = scmp.eq.s32.totalorder %s44, 1
      %p392 = por %p390, %p391
      %p394 = scmp.ne.s32.totalorder %s379, %s393
      %p395 = scmp.eq.s32.totalorder %s44, 0
      %p396 = por %p394, %p395
      %s398 = sadd.s32 %s397, 1
      %p401 = scmp.eq.s32.totalorder %s38, 1
      %p402 = scmp.ne.s32.totalorder %s397, %s399
      %p403 = scmp.eq.s32.totalorder %s38, 0
      %p404 = por %p402, %p403
      %p405 = scmp.ne.s32.totalorder %s397, %s399
      %p406 = scmp.eq.s32.totalorder %s43, 1
      %p407 = por %p405, %p406
      %p408 = scmp.ne.s32.totalorder %s399, %s400
      %p409 = scmp.eq.s32.totalorder %s43, 0
      %p410 = por %p408, %p409
      %p411 = scmp.ne.s32.totalorder %s399, %s400
      %p412 = scmp.eq.s32.totalorder %s44, 1
      %p413 = por %p411, %p412
      %p415 = scmp.ne.s32.totalorder %s400, %s414
      %p416 = scmp.eq.s32.totalorder %s44, 0
      %p417 = por %p415, %p416
      %s419 = sadd.s32 %s418, 1
      %p422 = scmp.eq.s32.totalorder %s38, 1
      %p423 = scmp.ne.s32.totalorder %s418, %s420
      %p424 = scmp.eq.s32.totalorder %s38, 0
      %p425 = por %p423, %p424
      %p426 = scmp.ne.s32.totalorder %s418, %s420
      %p427 = scmp.eq.s32.totalorder %s43, 1
      %p428 = por %p426, %p427
      %p429 = scmp.ne.s32.totalorder %s420, %s421
      %p430 = scmp.eq.s32.totalorder %s43, 0
      %p431 = por %p429, %p430
      %p432 = scmp.ne.s32.totalorder %s420, %s421
      %p433 = scmp.eq.s32.totalorder %s44, 1
      %p434 = por %p432, %p433
      %p436 = scmp.ne.s32.totalorder %s421, %s435
      %p437 = scmp.eq.s32.totalorder %s44, 0
      %p438 = por %p436, %p437
      %s440 = sadd.s32 %s439, 1
      %p443 = scmp.eq.s32.totalorder %s38, 1
      %p444 = scmp.ne.s32.totalorder %s439, %s441
      %p445 = scmp.eq.s32.totalorder %s38, 0
      %p446 = por %p444, %p445
      %p447 = scmp.ne.s32.totalorder %s439, %s441
      %p448 = scmp.eq.s32.totalorder %s43, 1
      %p449 = por %p447, %p448
      %p450 = scmp.ne.s32.totalorder %s441, %s442
      %p451 = scmp.eq.s32.totalorder %s43, 0
      %p452 = por %p450, %p451
      %p453 = scmp.ne.s32.totalorder %s441, %s442
      %p454 = scmp.eq.s32.totalorder %s44, 1
      %p455 = por %p453, %p454
      %p457 = scmp.ne.s32.totalorder %s442, %s456
      %p458 = scmp.eq.s32.totalorder %s44, 0
      %p459 = por %p457, %p458
      %s461 = sadd.s32 %s460, 1
      %p464 = scmp.eq.s32.totalorder %s38, 1
      %p465 = scmp.ne.s32.totalorder %s460, %s462
      %p466 = scmp.eq.s32.totalorder %s38, 0
      %p467 = por %p465, %p466
      %p468 = scmp.ne.s32.totalorder %s460, %s462
      %p469 = scmp.eq.s32.totalorder %s43, 1
      %p470 = por %p468, %p469
      %p471 = scmp.ne.s32.totalorder %s462, %s463
      %p472 = scmp.eq.s32.totalorder %s43, 0
      %p473 = por %p471, %p472
      %p474 = scmp.ne.s32.totalorder %s462, %s463
      %p475 = scmp.eq.s32.totalorder %s44, 1
      %p476 = por %p474, %p475
      %p478 = scmp.ne.s32.totalorder %s463, %s477
      %p479 = scmp.eq.s32.totalorder %s44, 0
      %p480 = por %p478, %p479
      %s482 = sadd.s32 %s481, 1
      %p485 = scmp.eq.s32.totalorder %s38, 1
      %p486 = scmp.ne.s32.totalorder %s481, %s483
      %p487 = scmp.eq.s32.totalorder %s38, 0
      %p488 = por %p486, %p487
      %p489 = scmp.ne.s32.totalorder %s481, %s483
      %p490 = scmp.eq.s32.totalorder %s43, 1
      %p491 = por %p489, %p490
      %p492 = scmp.ne.s32.totalorder %s483, %s484
      %p493 = scmp.eq.s32.totalorder %s43, 0
      %p494 = por %p492, %p493
      %p495 = scmp.ne.s32.totalorder %s483, %s484
      %p496 = scmp.eq.s32.totalorder %s44, 1
      %p497 = por %p495, %p496
      %p499 = scmp.ne.s32.totalorder %s484, %s498
      %p500 = scmp.eq.s32.totalorder %s44, 0
      %p501 = por %p499, %p500
      %s503 = sadd.s32 %s502, 1
      %p506 = scmp.eq.s32.totalorder %s38, 1
      %p507 = scmp.ne.s32.totalorder %s502, %s504
      %p508 = scmp.eq.s32.totalorder %s38, 0
      %p509 = por %p507, %p508
      %p510 = scmp.ne.s32.totalorder %s502, %s504
      %p511 = scmp.eq.s32.totalorder %s43, 1
      %p512 = por %p510, %p511
      %p513 = scmp.ne.s32.totalorder %s504, %s505
      %p514 = scmp.eq.s32.totalorder %s43, 0
      %p515 = por %p513, %p514
      %p516 = scmp.ne.s32.totalorder %s504, %s505
      %p517 = scmp.eq.s32.totalorder %s44, 1
      %p518 = por %p516, %p517
      %p520 = scmp.ne.s32.totalorder %s505, %s519
      %p521 = scmp.eq.s32.totalorder %s44, 0
      %p522 = por %p520, %p521
      %s524 = sadd.s32 %s523, 1
      %p527 = scmp.eq.s32.totalorder %s38, 1
      %p528 = scmp.ne.s32.totalorder %s523, %s525
      %p529 = scmp.eq.s32.totalorder %s38, 0
      %p530 = por %p528, %p529
      %p531 = scmp.ne.s32.totalorder %s523, %s525
      %p532 = scmp.eq.s32.totalorder %s43, 1
      %p533 = por %p531, %p532
      %p534 = scmp.ne.s32.totalorder %s525, %s526
      %p535 = scmp.eq.s32.totalorder %s43, 0
      %p536 = por %p534, %p535
      %p537 = scmp.ne.s32.totalorder %s525, %s526
      %p538 = scmp.eq.s32.totalorder %s44, 1
      %p539 = por %p537, %p538
      %p541 = scmp.ne.s32.totalorder %s526, %s540
      %p542 = scmp.eq.s32.totalorder %s44, 0
      %p543 = por %p541, %p542
      %s545 = sadd.s32 %s544, 1
      %p548 = scmp.eq.s32.totalorder %s38, 1
      %p549 = scmp.ne.s32.totalorder %s544, %s546
      %p550 = scmp.eq.s32.totalorder %s38, 0
      %p551 = por %p549, %p550
      %p552 = scmp.ne.s32.totalorder %s544, %s546
      %p553 = scmp.eq.s32.totalorder %s43, 1
      %p554 = por %p552, %p553
      %p555 = scmp.ne.s32.totalorder %s546, %s547
      %p556 = scmp.eq.s32.totalorder %s43, 0
      %p557 = por %p555, %p556
      %p558 = scmp.ne.s32.totalorder %s546, %s547
      %p559 = scmp.eq.s32.totalorder %s44, 1
      %p560 = por %p558, %p559
      %p562 = scmp.ne.s32.totalorder %s547, %s561
      %p563 = scmp.eq.s32.totalorder %s44, 0
      %p564 = por %p562, %p563
      %s565 = ssub.s32 %s38, %s45
      %p566 = scmp.eq.s32.totalorder %s565, 0
      %s568 = sadd.s32 %s567, 1
      %s569 = scalar_select %p566, %s567, %s568
      %p572 = pneg %p566
      %p573 = scmp.eq.s32.totalorder %s38, 1
      %p574 = por %p572, %p573
      %p575 = scmp.ne.s32.totalorder %s567, %s570
      %p576 = scmp.eq.s32.totalorder %s38, 0
      %p577 = por %p575, %p576
      %p578 = scmp.ne.s32.totalorder %s567, %s570
      %p579 = scmp.eq.s32.totalorder %s43, 1
      %p580 = por %p578, %p579
      %p581 = scmp.ne.s32.totalorder %s570, %s571
      %p582 = scmp.eq.s32.totalorder %s43, 0
      %p583 = por %p581, %p582
      %p584 = scmp.ne.s32.totalorder %s570, %s571
      %p585 = scmp.eq.s32.totalorder %s44, 1
      %p586 = por %p584, %p585
      %p588 = scmp.ne.s32.totalorder %s571, %s587
      %p589 = scmp.eq.s32.totalorder %s44, 0
      %p590 = por %p588, %p589
      %p591 = scmp.le.s32.totalorder 1, %s38
      %p592 = scmp.lt.s32.totalorder %s38, 3
      %p593 = pnand %p591, %p592
      %p594 = pneg %p593
      // Predicated region
      $region9: #{tpu_custom_call.1} parent=5 // pred_check
        _
      $region10: #{tpu_custom_call.1} parent=5 // pred_check_branch
        %596 = sbr.rel (%p593) target = $region12
      $region11: #{tpu_custom_call.1} parent=5 // pred_region
        %s597 = ssub.s32 %s38, 1
        // Predicated region
        $region13: #{tpu_custom_call.1} parent=11 // pred_check
          %p598 = pneg %p137
        $region14: #{tpu_custom_call.1} parent=11 // pred_check_branch
          %600 = sbr.rel (%p598) target = $region16
        $region15: #{tpu_custom_call.1} parent=11 // pred_region
          _
        $region16: #{tpu_custom_call.1} parent=11 // pred_fallthru
          _
        // Predicated region
        $region17: #{tpu_custom_call.1} parent=11 // pred_check
          %p601 = pneg %p158
        $region18: #{tpu_custom_call.1} parent=11 // pred_check_branch
          %603 = sbr.rel (%p601) target = $region20
        $region19: #{tpu_custom_call.1} parent=11 // pred_region
          %605 = vsyncadd [#allocation4], 0
          %s607 = sshll.u32 %s4, 4
          %s608 = int_to_ptr.hbm [resolvable:$true] %s607
          %s609 = sshll.u32 [#allocation3], 4
          %s610 = int_to_ptr.vmem [resolvable:$true] %s609
          %612 = dma.hbm_to_vmem [thread:$0]  %s608, 32, %s610, [#allocation4]
        $region20: #{tpu_custom_call.1} parent=11 // pred_fallthru
          _
        // Predicated region
        $region21: #{tpu_custom_call.1} parent=11 // pred_check
          %p613 = pneg %p179
        $region22: #{tpu_custom_call.1} parent=11 // pred_check_branch
          %615 = sbr.rel (%p613) target = $region24
        $region23: #{tpu_custom_call.1} parent=11 // pred_region
          %617 = vsyncadd [#allocation7], 0
          %s619 = sshll.u32 %s5, 4
          %s620 = int_to_ptr.hbm [resolvable:$true] %s619
          %s621 = sshll.u32 [#allocation6], 4
          %s622 = int_to_ptr.vmem [resolvable:$true] %s621
          %624 = dma.hbm_to_vmem [thread:$0]  %s620, 32, %s622, [#allocation7]
        $region24: #{tpu_custom_call.1} parent=11 // pred_fallthru
          _
        // Predicated region
        $region25: #{tpu_custom_call.1} parent=11 // pred_check
          %p625 = pneg %p200
        $region26: #{tpu_custom_call.1} parent=11 // pred_check_branch
          %627 = sbr.rel (%p625) target = $region28
        $region27: #{tpu_custom_call.1} parent=11 // pred_region
          _
        $region28: #{tpu_custom_call.1} parent=11 // pred_fallthru
          _
        // Predicated region
        $region29: #{tpu_custom_call.1} parent=11 // pred_check
          %p628 = pneg %p221
        $region30: #{tpu_custom_call.1} parent=11 // pred_check_branch
          %630 = sbr.rel (%p628) target = $region32
        $region31: #{tpu_custom_call.1} parent=11 // pred_region
          _
        $region32: #{tpu_custom_call.1} parent=11 // pred_fallthru
          _
        // Predicated region
        $region33: #{tpu_custom_call.1} parent=11 // pred_check
          %p631 = pneg %p242
        $region34: #{tpu_custom_call.1} parent=11 // pred_check_branch
          %633 = sbr.rel (%p631) target = $region36
        $region35: #{tpu_custom_call.1} parent=11 // pred_region
          %635 = vsyncadd [#allocation7], 0
          %s636 = sshll.u32 %s8, 4
          %s637 = int_to_ptr.hbm [resolvable:$true] %s636
          %s638 = sshll.u32 [#allocation8], 4
          %s639 = int_to_ptr.vmem [resolvable:$true] %s638
          %644 = dma.hbm_to_vmem [thread:$0]  %s637, 4096, %s639, [#allocation7], 64, 64, 4
        $region36: #{tpu_custom_call.1} parent=11 // pred_fallthru
          _
        // Predicated region
        $region37: #{tpu_custom_call.1} parent=11 // pred_check
          %p645 = pneg %p263
        $region38: #{tpu_custom_call.1} parent=11 // pred_check_branch
          %647 = sbr.rel (%p645) target = $region40
        $region39: #{tpu_custom_call.1} parent=11 // pred_region
          _
        $region40: #{tpu_custom_call.1} parent=11 // pred_fallthru
          _
        // Predicated region
        $region41: #{tpu_custom_call.1} parent=11 // pred_check
          %p648 = pneg %p284
        $region42: #{tpu_custom_call.1} parent=11 // pred_check_branch
          %650 = sbr.rel (%p648) target = $region44
        $region43: #{tpu_custom_call.1} parent=11 // pred_region
          %652 = vsyncadd [#allocation10], 0
          %s653 = sshll.u32 %s10, 4
          %s654 = int_to_ptr.hbm [resolvable:$true] %s653
          %s655 = sshll.u32 [#allocation9], 4
          %s656 = int_to_ptr.vmem [resolvable:$true] %s655
          %661 = dma.hbm_to_vmem [thread:$0]  %s654, 2048, %s656, [#allocation10], 128, 128, 8
        $region44: #{tpu_custom_call.1} parent=11 // pred_fallthru
          _
        // Predicated region
        $region45: #{tpu_custom_call.1} parent=11 // pred_check
          %p662 = pneg %p305
        $region46: #{tpu_custom_call.1} parent=11 // pred_check_branch
          %664 = sbr.rel (%p662) target = $region48
        $region47: #{tpu_custom_call.1} parent=11 // pred_region
          %666 = vsyncadd [#allocation10], 0
          %s668 = sshll.u32 %s11, 4
          %s669 = int_to_ptr.hbm [resolvable:$true] %s668
          %s670 = sshll.u32 [#allocation11], 4
          %s671 = int_to_ptr.vmem [resolvable:$true] %s670
          %673 = dma.hbm_to_vmem [thread:$0]  %s669, 16, %s671, [#allocation10]
        $region48: #{tpu_custom_call.1} parent=11 // pred_fallthru
          _
        // Predicated region
        $region49: #{tpu_custom_call.1} parent=11 // pred_check
          %p674 = pneg %p326
        $region50: #{tpu_custom_call.1} parent=11 // pred_check_branch
          %676 = sbr.rel (%p674) target = $region52
        $region51: #{tpu_custom_call.1} parent=11 // pred_region
          _
        $region52: #{tpu_custom_call.1} parent=11 // pred_fallthru
          _
        // Predicated region
        $region53: #{tpu_custom_call.1} parent=11 // pred_check
          %p677 = pneg %p347
        $region54: #{tpu_custom_call.1} parent=11 // pred_check_branch
          %679 = sbr.rel (%p677) target = $region56
        $region55: #{tpu_custom_call.1} parent=11 // pred_region
          _
        $region56: #{tpu_custom_call.1} parent=11 // pred_fallthru
          _
        // Predicated region
        $region57: #{tpu_custom_call.1} parent=11 // pred_check
          %p680 = pneg %p368
        $region58: #{tpu_custom_call.1} parent=11 // pred_check_branch
          %682 = sbr.rel (%p680) target = $region60
        $region59: #{tpu_custom_call.1} parent=11 // pred_region
          %684 = vsyncadd [#allocation13], 0
          %s685 = sshll.u32 %s14, 4
          %s686 = int_to_ptr.hbm [resolvable:$true] %s685
          %s687 = sshll.u32 [#allocation12], 4
          %s688 = int_to_ptr.vmem [resolvable:$true] %s687
          %693 = dma.hbm_to_vmem [thread:$0]  %s686, 2048, %s688, [#allocation13], 128, 128, 8
        $region60: #{tpu_custom_call.1} parent=11 // pred_fallthru
          _
        // Predicated region
        $region61: #{tpu_custom_call.1} parent=11 // pred_check
          %p694 = pneg %p389
        $region62: #{tpu_custom_call.1} parent=11 // pred_check_branch
          %696 = sbr.rel (%p694) target = $region64
        $region63: #{tpu_custom_call.1} parent=11 // pred_region
          _
        $region64: #{tpu_custom_call.1} parent=11 // pred_fallthru
          _
        // Predicated region
        $region65: #{tpu_custom_call.1} parent=11 // pred_check
          %p697 = pneg %p410
        $region66: #{tpu_custom_call.1} parent=11 // pred_check_branch
          %699 = sbr.rel (%p697) target = $region68
        $region67: #{tpu_custom_call.1} parent=11 // pred_region
          _
        $region68: #{tpu_custom_call.1} parent=11 // pred_fallthru
          _
        // Predicated region
        $region69: #{tpu_custom_call.1} parent=11 // pred_check
          %p700 = pneg %p431
        $region70: #{tpu_custom_call.1} parent=11 // pred_check_branch
          %702 = sbr.rel (%p700) target = $region72
        $region71: #{tpu_custom_call.1} parent=11 // pred_region
          _
        $region72: #{tpu_custom_call.1} parent=11 // pred_fallthru
          _
        // Predicated region
        $region73: #{tpu_custom_call.1} parent=11 // pred_check
          %p703 = pneg %p452
        $region74: #{tpu_custom_call.1} parent=11 // pred_check_branch
          %705 = sbr.rel (%p703) target = $region76
        $region75: #{tpu_custom_call.1} parent=11 // pred_region
          %707 = vsyncadd [#allocation13], 0
          %s708 = sshll.u32 %s18, 4
          %s709 = int_to_ptr.hbm [resolvable:$true] %s708
          %s710 = sshll.u32 [#allocation14], 4
          %s711 = int_to_ptr.vmem [resolvable:$true] %s710
          %716 = dma.hbm_to_vmem [thread:$0]  %s709, 4096, %s711, [#allocation13], 256, 256, 16
        $region76: #{tpu_custom_call.1} parent=11 // pred_fallthru
          _
        // Predicated region
        $region77: #{tpu_custom_call.1} parent=11 // pred_check
          %p717 = pneg %p473
        $region78: #{tpu_custom_call.1} parent=11 // pred_check_branch
          %719 = sbr.rel (%p717) target = $region80
        $region79: #{tpu_custom_call.1} parent=11 // pred_region
          _
        $region80: #{tpu_custom_call.1} parent=11 // pred_fallthru
          _
        // Predicated region
        $region81: #{tpu_custom_call.1} parent=11 // pred_check
          %p720 = pneg %p494
        $region82: #{tpu_custom_call.1} parent=11 // pred_check_branch
          %722 = sbr.rel (%p720) target = $region84
        $region83: #{tpu_custom_call.1} parent=11 // pred_region
          %724 = vsyncadd [#allocation16], 0
          %s725 = sshll.u32 %s20, 4
          %s726 = int_to_ptr.hbm [resolvable:$true] %s725
          %s727 = sshll.u32 [#allocation15], 4
          %s728 = int_to_ptr.vmem [resolvable:$true] %s727
          %733 = dma.hbm_to_vmem [thread:$0]  %s726, 4096, %s728, [#allocation16], 128, 128, 8
        $region84: #{tpu_custom_call.1} parent=11 // pred_fallthru
          _
        // Predicated region
        $region85: #{tpu_custom_call.1} parent=11 // pred_check
          %p734 = pneg %p515
        $region86: #{tpu_custom_call.1} parent=11 // pred_check_branch
          %736 = sbr.rel (%p734) target = $region88
        $region87: #{tpu_custom_call.1} parent=11 // pred_region
          _
        $region88: #{tpu_custom_call.1} parent=11 // pred_fallthru
          _
        // Predicated region
        $region89: #{tpu_custom_call.1} parent=11 // pred_check
          %p737 = pneg %p536
        $region90: #{tpu_custom_call.1} parent=11 // pred_check_branch
          %739 = sbr.rel (%p737) target = $region92
        $region91: #{tpu_custom_call.1} parent=11 // pred_region
          %741 = vsyncadd [#allocation16], 0
          %s742 = sshll.u32 %s22, 4
          %s743 = int_to_ptr.hbm [resolvable:$true] %s742
          %s744 = sshll.u32 [#allocation17], 4
          %s745 = int_to_ptr.vmem [resolvable:$true] %s744
          %750 = dma.hbm_to_vmem [thread:$0]  %s743, 2048, %s745, [#allocation16], 128, 128, 8
        $region92: #{tpu_custom_call.1} parent=11 // pred_fallthru
          _
        // Predicated region
        $region93: #{tpu_custom_call.1} parent=11 // pred_check
          %p751 = pneg %p557
        $region94: #{tpu_custom_call.1} parent=11 // pred_check_branch
          %753 = sbr.rel (%p751) target = $region96
        $region95: #{tpu_custom_call.1} parent=11 // pred_region
          _
        $region96: #{tpu_custom_call.1} parent=11 // pred_fallthru
          _
      $region12: #{tpu_custom_call.1} parent=5 // pred_fallthru
        _
      %p754 = scmp.lt.s32.totalorder %s38, 2
      // Predicated region
      $region97: #{tpu_custom_call.1} parent=5 // pred_check
        %p755 = pneg %p754
      $region98: #{tpu_custom_call.1} parent=5 // pred_check_branch
        %757 = sbr.rel (%p755) target = $region100
      $region99: #{tpu_custom_call.1} parent=5 // pred_region
        // Predicated region
        $region101: #{tpu_custom_call.1} parent=99 // pred_check
          %p758 = pneg %p58
        $region102: #{tpu_custom_call.1} parent=99 // pred_check_branch
          %760 = sbr.rel (%p758) target = $region104
        $region103: #{tpu_custom_call.1} parent=99 // pred_region
          %s761 = smul.u32 4, %s38
          %p762 = scmp.lt.s32.totalorder %s761, 7
          %s763 = scalar_select %p762, %s761, 7
          %s764 = smul.addr %s763, 8
          %s765 = smul.addr %s764, 4
          %s766 = scalar_lea.vmem %s0, %s765
          %s767 = smul.u32 4, %s38
        $region104: #{tpu_custom_call.1} parent=99 // pred_fallthru
          _
        // Predicated region
        $region105: #{tpu_custom_call.1} parent=99 // pred_check
          %p768 = pneg %p84
        $region106: #{tpu_custom_call.1} parent=99 // pred_check_branch
          %770 = sbr.rel (%p768) target = $region108
        $region107: #{tpu_custom_call.1} parent=99 // pred_region
          %s771 = smul.u32 4, %s38
          %p772 = scmp.lt.s32.totalorder %s771, 7
          %s773 = scalar_select %p772, %s771, 7
          %s774 = smul.addr %s773, 8
          %s775 = smul.addr %s774, 4
          %s776 = scalar_lea.vmem %s1, %s775
          %s777 = smul.u32 4, %s38
        $region108: #{tpu_custom_call.1} parent=99 // pred_fallthru
          _
        // Predicated region
        $region109: #{tpu_custom_call.1} parent=99 // pred_check
          %p778 = pneg %p110
        $region110: #{tpu_custom_call.1} parent=99 // pred_check_branch
          %780 = sbr.rel (%p778) target = $region112
        $region111: #{tpu_custom_call.1} parent=99 // pred_region
          %s781 = smul.u32 4, %s38
          %p782 = scmp.lt.s32.totalorder %s781, 7
          %s783 = scalar_select %p782, %s781, 7
          %s784 = scalar_lea.vmem %s2, %s783
          %s785 = smul.u32 4, %s38
        $region112: #{tpu_custom_call.1} parent=99 // pred_fallthru
          _
      $region100: #{tpu_custom_call.1} parent=5 // pred_fallthru
        _
      %p786 = scmp.le.s32.totalorder 1, %s38
      %p787 = scmp.lt.s32.totalorder %s38, 3
      %p788 = pnand %p786, %p787
      %p789 = pneg %p788
      // Predicated region
      $region113: #{tpu_custom_call.1} parent=5 // pred_check
        _
      $region114: #{tpu_custom_call.1} parent=5 // pred_check_branch
        %791 = sbr.rel (%p788) target = $region116
      $region115: #{tpu_custom_call.1} parent=5 // pred_region
        %s792 = ssub.s32 %s38, 1
        // Predicated region
        $region117: #{tpu_custom_call.1} parent=115 // pred_check
          %p793 = pneg %p158
        $region118: #{tpu_custom_call.1} parent=115 // pred_check_branch
          %795 = sbr.rel (%p793) target = $region120
        $region119: #{tpu_custom_call.1} parent=115 // pred_region
          %797 = dma.done [#allocation4], 32
        $region120: #{tpu_custom_call.1} parent=115 // pred_fallthru
          _
        // Predicated region
        $region121: #{tpu_custom_call.1} parent=115 // pred_check
          %p798 = pneg %p179
        $region122: #{tpu_custom_call.1} parent=115 // pred_check_branch
          %800 = sbr.rel (%p798) target = $region124
        $region123: #{tpu_custom_call.1} parent=115 // pred_region
          %802 = dma.done [#allocation7], 32
        $region124: #{tpu_custom_call.1} parent=115 // pred_fallthru
          _
        // Predicated region
        $region125: #{tpu_custom_call.1} parent=115 // pred_check
          %p803 = pneg %p242
        $region126: #{tpu_custom_call.1} parent=115 // pred_check_branch
          %805 = sbr.rel (%p803) target = $region128
        $region127: #{tpu_custom_call.1} parent=115 // pred_region
          %807 = dma.done [#allocation7], 4096
        $region128: #{tpu_custom_call.1} parent=115 // pred_fallthru
          _
        // Predicated region
        $region129: #{tpu_custom_call.1} parent=115 // pred_check
          %p808 = pneg %p284
        $region130: #{tpu_custom_call.1} parent=115 // pred_check_branch
          %810 = sbr.rel (%p808) target = $region132
        $region131: #{tpu_custom_call.1} parent=115 // pred_region
          %812 = dma.done [#allocation10], 2048
        $region132: #{tpu_custom_call.1} parent=115 // pred_fallthru
          _
        // Predicated region
        $region133: #{tpu_custom_call.1} parent=115 // pred_check
          %p813 = pneg %p305
        $region134: #{tpu_custom_call.1} parent=115 // pred_check_branch
          %815 = sbr.rel (%p813) target = $region136
        $region135: #{tpu_custom_call.1} parent=115 // pred_region
          %817 = dma.done [#allocation10], 16
        $region136: #{tpu_custom_call.1} parent=115 // pred_fallthru
          _
        // Predicated region
        $region137: #{tpu_custom_call.1} parent=115 // pred_check
          %p818 = pneg %p368
        $region138: #{tpu_custom_call.1} parent=115 // pred_check_branch
          %820 = sbr.rel (%p818) target = $region140
        $region139: #{tpu_custom_call.1} parent=115 // pred_region
          %822 = dma.done [#allocation13], 2048
        $region140: #{tpu_custom_call.1} parent=115 // pred_fallthru
          _
        // Predicated region
        $region141: #{tpu_custom_call.1} parent=115 // pred_check
          %p823 = pneg %p452
        $region142: #{tpu_custom_call.1} parent=115 // pred_check_branch
          %825 = sbr.rel (%p823) target = $region144
        $region143: #{tpu_custom_call.1} parent=115 // pred_region
          %827 = dma.done [#allocation13], 4096
        $region144: #{tpu_custom_call.1} parent=115 // pred_fallthru
          _
        // Predicated region
        $region145: #{tpu_custom_call.1} parent=115 // pred_check
          %p828 = pneg %p494
        $region146: #{tpu_custom_call.1} parent=115 // pred_check_branch
          %830 = sbr.rel (%p828) target = $region148
        $region147: #{tpu_custom_call.1} parent=115 // pred_region
          %832 = dma.done [#allocation16], 4096
        $region148: #{tpu_custom_call.1} parent=115 // pred_fallthru
          _
        // Predicated region
        $region149: #{tpu_custom_call.1} parent=115 // pred_check
          %p833 = pneg %p536
        $region150: #{tpu_custom_call.1} parent=115 // pred_check_branch
          %835 = sbr.rel (%p833) target = $region152
        $region151: #{tpu_custom_call.1} parent=115 // pred_region
          %837 = dma.done [#allocation16], 2048
        $region152: #{tpu_custom_call.1} parent=115 // pred_fallthru
          _
        %s838 = smul.u32 4, %s43
        %p839 = scmp.lt.s32.totalorder %s838, 7
        %s840 = scalar_select %p839, %s838, 7
        %s841 = smul.addr %s840, 8
        %s842 = smul.addr %s841, 4
        %s843 = scalar_lea.vmem %s0, %s842
        %p844 = pneg %p64
        %p845 = pneg %p61
        %s846 = smul.u32 4, %s43
        %p847 = scmp.lt.s32.totalorder %s846, 7
        %s848 = scalar_select %p847, %s846, 7
        %s849 = smul.addr %s848, 8
        %s850 = smul.addr %s849, 4
        %s851 = scalar_lea.vmem %s1, %s850
        %p852 = pneg %p90
        %p853 = pneg %p87
        %s854 = smul.u32 4, %s43
        %p855 = scmp.lt.s32.totalorder %s854, 7
        %s856 = scalar_select %p855, %s854, 7
        %s857 = scalar_lea.vmem %s2, %s856
        %p858 = pneg %p116
        %p859 = pneg %p113
        %p860 = pneg %p137
        %p861 = pneg %p134
        %p862 = pneg %p158
        %p863 = pneg %p155
        %p864 = pneg %p179
        %p865 = pneg %p176
        %p866 = pneg %p200
        %p867 = pneg %p197
        %p868 = pneg %p221
        %p869 = pneg %p218
        %p870 = pneg %p242
        %p871 = pneg %p239
        %p872 = pneg %p263
        %p873 = pneg %p260
        %p874 = pneg %p284
        %p875 = pneg %p281
        %p876 = pneg %p305
        %p877 = pneg %p302
        %p878 = pneg %p326
        %p879 = pneg %p323
        %p880 = pneg %p347
        %p881 = pneg %p344
        %p882 = pneg %p368
        %p883 = pneg %p365
        %p884 = pneg %p389
        %p885 = pneg %p386
        %p886 = pneg %p410
        %p887 = pneg %p407
        %p888 = pneg %p431
        %p889 = pneg %p428
        %p890 = pneg %p452
        %p891 = pneg %p449
        %p892 = pneg %p473
        %p893 = pneg %p470
        %p894 = pneg %p494
        %p895 = pneg %p491
        %p896 = pneg %p515
        %p897 = pneg %p512
        %p898 = pneg %p536
        %p899 = pneg %p533
        %p900 = pneg %p557
        %p901 = pneg %p554
        %p902 = pneg %p583
        %p903 = pneg %p580
        %s904 = sand.u32 %s570, 1
        %s905 = scalar_lea.sflag [#allocation5], %s904
        %s906 = sand.u32 %s570, 1
        %s907 = smul.addr %s906, 4
        %s908 = scalar_lea.vmem [#allocation18], %s907
        %s909 = smul.u32 4, %s43
        %p910 = scmp.lt.s32.totalorder %s909, 7
        %s911 = scalar_select %p910, %s909, 7
        %s912 = smul.addr %s911, 8
        %s913 = smul.addr %s912, 4
        %s914 = scalar_lea.vmem %s0, %s913
        %s915 = smul.u32 4, %s43
        %s916 = smul.u32 4, %s43
        %p917 = scmp.lt.s32.totalorder %s916, 7
        %s918 = scalar_select %p917, %s916, 7
        %s919 = smul.addr %s918, 8
        %s920 = smul.addr %s919, 4
        %s921 = scalar_lea.vmem %s1, %s920
        %s922 = smul.u32 4, %s43
        %s923 = smul.u32 4, %s43
        %p924 = scmp.lt.s32.totalorder %s923, 7
        %s925 = scalar_select %p924, %s923, 7
        %s926 = scalar_lea.vmem %s2, %s925
        %s927 = smul.u32 4, %s43
        %s928 = smul.u32 4, %s43
        %v930 = vld [vmem:[%s3] sm:$0x77]
        %v931 = vld [vmem:[#allocation3] sm:$0x3]
        %v932 = vld [vmem:[#allocation6] sm:$0x3]
        %v933 = vld [vmem:[%s6] sm:$0xf]
        %v934 = vld [vmem:[%s6 + $0x4] sm:$0xf]
        %v935 = vld [vmem:[%s6 + $0x8] sm:$0xf]
        %v936 = vld [vmem:[%s6 + $0xc] sm:$0xf]
        %v937 = vld [vmem:[%s6 + $0x10] sm:$0xf]
        %v938 = vld [vmem:[%s6 + $0x14] sm:$0xf]
        %v939 = vld [vmem:[%s6 + $0x18] sm:$0xf]
        %v940 = vld [vmem:[%s6 + $0x1c] sm:$0xf]
        %v941 = vld [vmem:[%s6 + $0x20] sm:$0xf]
        %v942 = vld [vmem:[%s6 + $0x24] sm:$0xf]
        %v943 = vld [vmem:[%s6 + $0x28] sm:$0xf]
        %v944 = vld [vmem:[%s6 + $0x2c] sm:$0xf]
        %v945 = vld [vmem:[%s6 + $0x30] sm:$0xf]
        %v946 = vld [vmem:[%s6 + $0x34] sm:$0xf]
        %v947 = vld [vmem:[%s6 + $0x38] sm:$0xf]
        %v948 = vld [vmem:[%s6 + $0x3c] sm:$0xf]
        %v949 = vld [vmem:[%s6 + $0x40] sm:$0xf]
        %v950 = vld [vmem:[%s6 + $0x44] sm:$0xf]
        %v951 = vld [vmem:[%s6 + $0x48] sm:$0xf]
        %v952 = vld [vmem:[%s6 + $0x4c] sm:$0xf]
        %v953 = vld [vmem:[%s6 + $0x50] sm:$0xf]
        %v954 = vld [vmem:[%s6 + $0x54] sm:$0xf]
        %v955 = vld [vmem:[%s6 + $0x58] sm:$0xf]
        %v956 = vld [vmem:[%s6 + $0x5c] sm:$0xf]
        %v957 = vld [vmem:[%s6 + $0x60] sm:$0xf]
        %v958 = vld [vmem:[%s6 + $0x64] sm:$0xf]
        %v959 = vld [vmem:[%s6 + $0x68] sm:$0xf]
        %v960 = vld [vmem:[%s6 + $0x6c] sm:$0xf]
        %v961 = vld [vmem:[%s6 + $0x70] sm:$0xf]
        %v962 = vld [vmem:[%s6 + $0x74] sm:$0xf]
        %v963 = vld [vmem:[%s6 + $0x78] sm:$0xf]
        %v964 = vld [vmem:[%s6 + $0x7c] sm:$0xf]
        %v965 = vld [vmem:[%s7] sm:$0x1]
        %v966 = vld [vmem:[%s7 + $0x1] sm:$0x1]
        %v967 = vld [vmem:[%s7 + $0x2] sm:$0x1]
        %v968 = vld [vmem:[%s7 + $0x3] sm:$0x1]
        %v969 = vld [vmem:[#allocation8] sm:$0xf]
        %v970 = vld [vmem:[#allocation8 + $0x4] sm:$0xf]
        %v971 = vld [vmem:[#allocation8 + $0x8] sm:$0xf]
        %v972 = vld [vmem:[#allocation8 + $0xc] sm:$0xf]
        %v973 = vld [vmem:[#allocation8 + $0x10] sm:$0xf]
        %v974 = vld [vmem:[#allocation8 + $0x14] sm:$0xf]
        %v975 = vld [vmem:[#allocation8 + $0x18] sm:$0xf]
        %v976 = vld [vmem:[#allocation8 + $0x1c] sm:$0xf]
        %v977 = vld [vmem:[#allocation8 + $0x20] sm:$0xf]
        %v978 = vld [vmem:[#allocation8 + $0x24] sm:$0xf]
        %v979 = vld [vmem:[#allocation8 + $0x28] sm:$0xf]
        %v980 = vld [vmem:[#allocation8 + $0x2c] sm:$0xf]
        %v981 = vld [vmem:[#allocation8 + $0x30] sm:$0xf]
        %v982 = vld [vmem:[#allocation8 + $0x34] sm:$0xf]
        %v983 = vld [vmem:[#allocation8 + $0x38] sm:$0xf]
        %v984 = vld [vmem:[#allocation8 + $0x3c] sm:$0xf]
        %v985 = vld [vmem:[#allocation8 + $0x40] sm:$0xf]
        %v986 = vld [vmem:[#allocation8 + $0x44] sm:$0xf]
        %v987 = vld [vmem:[#allocation8 + $0x48] sm:$0xf]
        %v988 = vld [vmem:[#allocation8 + $0x4c] sm:$0xf]
        %v989 = vld [vmem:[#allocation8 + $0x50] sm:$0xf]
        %v990 = vld [vmem:[#allocation8 + $0x54] sm:$0xf]
        %v991 = vld [vmem:[#allocation8 + $0x58] sm:$0xf]
        %v992 = vld [vmem:[#allocation8 + $0x5c] sm:$0xf]
        %v993 = vld [vmem:[#allocation8 + $0x60] sm:$0xf]
        %v994 = vld [vmem:[#allocation8 + $0x64] sm:$0xf]
        %v995 = vld [vmem:[#allocation8 + $0x68] sm:$0xf]
        %v996 = vld [vmem:[#allocation8 + $0x6c] sm:$0xf]
        %v997 = vld [vmem:[#allocation8 + $0x70] sm:$0xf]
        %v998 = vld [vmem:[#allocation8 + $0x74] sm:$0xf]
        %v999 = vld [vmem:[#allocation8 + $0x78] sm:$0xf]
        %v1000 = vld [vmem:[#allocation8 + $0x7c] sm:$0xf]
        %v1001 = vld [vmem:[#allocation8 + $0x80] sm:$0xf]
        %v1002 = vld [vmem:[#allocation8 + $0x84] sm:$0xf]
        %v1003 = vld [vmem:[#allocation8 + $0x88] sm:$0xf]
        %v1004 = vld [vmem:[#allocation8 + $0x8c] sm:$0xf]
        %v1005 = vld [vmem:[#allocation8 + $0x90] sm:$0xf]
        %v1006 = vld [vmem:[#allocation8 + $0x94] sm:$0xf]
        %v1007 = vld [vmem:[#allocation8 + $0x98] sm:$0xf]
        %v1008 = vld [vmem:[#allocation8 + $0x9c] sm:$0xf]
        %v1009 = vld [vmem:[#allocation8 + $0xa0] sm:$0xf]
        %v1010 = vld [vmem:[#allocation8 + $0xa4] sm:$0xf]
        %v1011 = vld [vmem:[#allocation8 + $0xa8] sm:$0xf]
        %v1012 = vld [vmem:[#allocation8 + $0xac] sm:$0xf]
        %v1013 = vld [vmem:[#allocation8 + $0xb0] sm:$0xf]
        %v1014 = vld [vmem:[#allocation8 + $0xb4] sm:$0xf]
        %v1015 = vld [vmem:[#allocation8 + $0xb8] sm:$0xf]
        %v1016 = vld [vmem:[#allocation8 + $0xbc] sm:$0xf]
        %v1017 = vld [vmem:[#allocation8 + $0xc0] sm:$0xf]
        %v1018 = vld [vmem:[#allocation8 + $0xc4] sm:$0xf]
        %v1019 = vld [vmem:[#allocation8 + $0xc8] sm:$0xf]
        %v1020 = vld [vmem:[#allocation8 + $0xcc] sm:$0xf]
        %v1021 = vld [vmem:[#allocation8 + $0xd0] sm:$0xf]
        %v1022 = vld [vmem:[#allocation8 + $0xd4] sm:$0xf]
        %v1023 = vld [vmem:[#allocation8 + $0xd8] sm:$0xf]
        %v1024 = vld [vmem:[#allocation8 + $0xdc] sm:$0xf]
        %v1025 = vld [vmem:[#allocation8 + $0xe0] sm:$0xf]
        %v1026 = vld [vmem:[#allocation8 + $0xe4] sm:$0xf]
        %v1027 = vld [vmem:[#allocation8 + $0xe8] sm:$0xf]
        %v1028 = vld [vmem:[#allocation8 + $0xec] sm:$0xf]
        %v1029 = vld [vmem:[#allocation8 + $0xf0] sm:$0xf]
        %v1030 = vld [vmem:[#allocation8 + $0xf4] sm:$0xf]
        %v1031 = vld [vmem:[#allocation8 + $0xf8] sm:$0xf]
        %v1032 = vld [vmem:[#allocation8 + $0xfc] sm:$0xf]
        %v1033 = vld [vmem:[%s9] sm:$0x1]
        %v1034 = vld [vmem:[%s9 + $0x1] sm:$0x1]
        %v1035 = vld [vmem:[%s9 + $0x2] sm:$0x1]
        %v1036 = vld [vmem:[%s9 + $0x3] sm:$0x1]
        %v1037 = vld [vmem:[#allocation9] sm:$0xff]
        %v1038 = vld [vmem:[#allocation9 + $0x8] sm:$0xff]
        %v1039 = vld [vmem:[#allocation9 + $0x10] sm:$0xff]
        %v1040 = vld [vmem:[#allocation9 + $0x18] sm:$0xff]
        %v1041 = vld [vmem:[#allocation9 + $0x20] sm:$0xff]
        %v1042 = vld [vmem:[#allocation9 + $0x28] sm:$0xff]
        %v1043 = vld [vmem:[#allocation9 + $0x30] sm:$0xff]
        %v1044 = vld [vmem:[#allocation9 + $0x38] sm:$0xff]
        %v1045 = vld [vmem:[#allocation9 + $0x40] sm:$0xff]
        %v1046 = vld [vmem:[#allocation9 + $0x48] sm:$0xff]
        %v1047 = vld [vmem:[#allocation9 + $0x50] sm:$0xff]
        %v1048 = vld [vmem:[#allocation9 + $0x58] sm:$0xff]
        %v1049 = vld [vmem:[#allocation9 + $0x60] sm:$0xff]
        %v1050 = vld [vmem:[#allocation9 + $0x68] sm:$0xff]
        %v1051 = vld [vmem:[#allocation9 + $0x70] sm:$0xff]
        %v1052 = vld [vmem:[#allocation9 + $0x78] sm:$0xff]
        %v1053 = vld [vmem:[#allocation11] sm:$0x1]
        %v1054 = vld [vmem:[%s12] sm:$0xff]
        %v1055 = vld [vmem:[%s12 + $0x8] sm:$0xff]
        %v1056 = vld [vmem:[%s12 + $0x10] sm:$0xff]
        %v1057 = vld [vmem:[%s12 + $0x18] sm:$0xff]
        %v1058 = vld [vmem:[%s12 + $0x20] sm:$0xff]
        %v1059 = vld [vmem:[%s12 + $0x28] sm:$0xff]
        %v1060 = vld [vmem:[%s12 + $0x30] sm:$0xff]
        %v1061 = vld [vmem:[%s12 + $0x38] sm:$0xff]
        %v1062 = vld [vmem:[%s12 + $0x40] sm:$0xff]
        %v1063 = vld [vmem:[%s12 + $0x48] sm:$0xff]
        %v1064 = vld [vmem:[%s12 + $0x50] sm:$0xff]
        %v1065 = vld [vmem:[%s12 + $0x58] sm:$0xff]
        %v1066 = vld [vmem:[%s12 + $0x60] sm:$0xff]
        %v1067 = vld [vmem:[%s12 + $0x68] sm:$0xff]
        %v1068 = vld [vmem:[%s12 + $0x70] sm:$0xff]
        %v1069 = vld [vmem:[%s12 + $0x78] sm:$0xff]
        %v1070 = vld [vmem:[%s12 + $0x80] sm:$0xff]
        %v1071 = vld [vmem:[%s12 + $0x88] sm:$0xff]
        %v1072 = vld [vmem:[%s12 + $0x90] sm:$0xff]
        %v1073 = vld [vmem:[%s12 + $0x98] sm:$0xff]
        %v1074 = vld [vmem:[%s12 + $0xa0] sm:$0xff]
        %v1075 = vld [vmem:[%s12 + $0xa8] sm:$0xff]
        %v1076 = vld [vmem:[%s12 + $0xb0] sm:$0xff]
        %v1077 = vld [vmem:[%s12 + $0xb8] sm:$0xff]
        %v1078 = vld [vmem:[%s12 + $0xc0] sm:$0xff]
        %v1079 = vld [vmem:[%s12 + $0xc8] sm:$0xff]
        %v1080 = vld [vmem:[%s12 + $0xd0] sm:$0xff]
        %v1081 = vld [vmem:[%s12 + $0xd8] sm:$0xff]
        %v1082 = vld [vmem:[%s12 + $0xe0] sm:$0xff]
        %v1083 = vld [vmem:[%s12 + $0xe8] sm:$0xff]
        %v1084 = vld [vmem:[%s12 + $0xf0] sm:$0xff]
        %v1085 = vld [vmem:[%s12 + $0xf8] sm:$0xff]
        %v1086 = vld [vmem:[%s12 + $0x100] sm:$0xff]
        %v1087 = vld [vmem:[%s12 + $0x108] sm:$0xff]
        %v1088 = vld [vmem:[%s12 + $0x110] sm:$0xff]
        %v1089 = vld [vmem:[%s12 + $0x118] sm:$0xff]
        %v1090 = vld [vmem:[%s12 + $0x120] sm:$0xff]
        %v1091 = vld [vmem:[%s12 + $0x128] sm:$0xff]
        %v1092 = vld [vmem:[%s12 + $0x130] sm:$0xff]
        %v1093 = vld [vmem:[%s12 + $0x138] sm:$0xff]
        %v1094 = vld [vmem:[%s12 + $0x140] sm:$0xff]
        %v1095 = vld [vmem:[%s12 + $0x148] sm:$0xff]
        %v1096 = vld [vmem:[%s12 + $0x150] sm:$0xff]
        %v1097 = vld [vmem:[%s12 + $0x158] sm:$0xff]
        %v1098 = vld [vmem:[%s12 + $0x160] sm:$0xff]
        %v1099 = vld [vmem:[%s12 + $0x168] sm:$0xff]
        %v1100 = vld [vmem:[%s12 + $0x170] sm:$0xff]
        %v1101 = vld [vmem:[%s12 + $0x178] sm:$0xff]
        %v1102 = vld [vmem:[%s13] sm:$0x7]
        %v1103 = vld [vmem:[#allocation12] sm:$0xff]
        %v1104 = vld [vmem:[#allocation12 + $0x8] sm:$0xff]
        %v1105 = vld [vmem:[#allocation12 + $0x10] sm:$0xff]
        %v1106 = vld [vmem:[#allocation12 + $0x18] sm:$0xff]
        %v1107 = vld [vmem:[#allocation12 + $0x20] sm:$0xff]
        %v1108 = vld [vmem:[#allocation12 + $0x28] sm:$0xff]
        %v1109 = vld [vmem:[#allocation12 + $0x30] sm:$0xff]
        %v1110 = vld [vmem:[#allocation12 + $0x38] sm:$0xff]
        %v1111 = vld [vmem:[#allocation12 + $0x40] sm:$0xff]
        %v1112 = vld [vmem:[#allocation12 + $0x48] sm:$0xff]
        %v1113 = vld [vmem:[#allocation12 + $0x50] sm:$0xff]
        %v1114 = vld [vmem:[#allocation12 + $0x58] sm:$0xff]
        %v1115 = vld [vmem:[#allocation12 + $0x60] sm:$0xff]
        %v1116 = vld [vmem:[#allocation12 + $0x68] sm:$0xff]
        %v1117 = vld [vmem:[#allocation12 + $0x70] sm:$0xff]
        %v1118 = vld [vmem:[#allocation12 + $0x78] sm:$0xff]
        %v1119 = vld [vmem:[%s15] sm:$0x1]
        %v1120 = vld [vmem:[%s16] sm:$0x1]
        %v1121 = vld [vmem:[%s16 + $0x1] sm:$0x1]
        %v1122 = vld [vmem:[%s17] sm:$0x1]
        %v1123 = vld [vmem:[%s17 + $0x1] sm:$0x1]
        %v1124 = vld [vmem:[#allocation14] sm:$0xff]
        %v1125 = vld [vmem:[#allocation14 + $0x8] sm:$0xff]
        %v1126 = vld [vmem:[#allocation14 + $0x10] sm:$0xff]
        %v1127 = vld [vmem:[#allocation14 + $0x18] sm:$0xff]
        %v1128 = vld [vmem:[#allocation14 + $0x20] sm:$0xff]
        %v1129 = vld [vmem:[#allocation14 + $0x28] sm:$0xff]
        %v1130 = vld [vmem:[#allocation14 + $0x30] sm:$0xff]
        %v1131 = vld [vmem:[#allocation14 + $0x38] sm:$0xff]
        %v1132 = vld [vmem:[#allocation14 + $0x40] sm:$0xff]
        %v1133 = vld [vmem:[#allocation14 + $0x48] sm:$0xff]
        %v1134 = vld [vmem:[#allocation14 + $0x50] sm:$0xff]
        %v1135 = vld [vmem:[#allocation14 + $0x58] sm:$0xff]
        %v1136 = vld [vmem:[#allocation14 + $0x60] sm:$0xff]
        %v1137 = vld [vmem:[#allocation14 + $0x68] sm:$0xff]
        %v1138 = vld [vmem:[#allocation14 + $0x70] sm:$0xff]
        %v1139 = vld [vmem:[#allocation14 + $0x78] sm:$0xff]
        %v1140 = vld [vmem:[#allocation14 + $0x80] sm:$0xff]
        %v1141 = vld [vmem:[#allocation14 + $0x88] sm:$0xff]
        %v1142 = vld [vmem:[#allocation14 + $0x90] sm:$0xff]
        %v1143 = vld [vmem:[#allocation14 + $0x98] sm:$0xff]
        %v1144 = vld [vmem:[#allocation14 + $0xa0] sm:$0xff]
        %v1145 = vld [vmem:[#allocation14 + $0xa8] sm:$0xff]
        %v1146 = vld [vmem:[#allocation14 + $0xb0] sm:$0xff]
        %v1147 = vld [vmem:[#allocation14 + $0xb8] sm:$0xff]
        %v1148 = vld [vmem:[#allocation14 + $0xc0] sm:$0xff]
        %v1149 = vld [vmem:[#allocation14 + $0xc8] sm:$0xff]
        %v1150 = vld [vmem:[#allocation14 + $0xd0] sm:$0xff]
        %v1151 = vld [vmem:[#allocation14 + $0xd8] sm:$0xff]
        %v1152 = vld [vmem:[#allocation14 + $0xe0] sm:$0xff]
        %v1153 = vld [vmem:[#allocation14 + $0xe8] sm:$0xff]
        %v1154 = vld [vmem:[#allocation14 + $0xf0] sm:$0xff]
        %v1155 = vld [vmem:[#allocation14 + $0xf8] sm:$0xff]
        %v1156 = vld [vmem:[%s19] sm:$0x3]
        %v1157 = vld [vmem:[#allocation15] sm:$0xff]
        %v1158 = vld [vmem:[#allocation15 + $0x8] sm:$0xff]
        %v1159 = vld [vmem:[#allocation15 + $0x10] sm:$0xff]
        %v1160 = vld [vmem:[#allocation15 + $0x18] sm:$0xff]
        %v1161 = vld [vmem:[#allocation15 + $0x20] sm:$0xff]
        %v1162 = vld [vmem:[#allocation15 + $0x28] sm:$0xff]
        %v1163 = vld [vmem:[#allocation15 + $0x30] sm:$0xff]
        %v1164 = vld [vmem:[#allocation15 + $0x38] sm:$0xff]
        %v1165 = vld [vmem:[#allocation15 + $0x40] sm:$0xff]
        %v1166 = vld [vmem:[#allocation15 + $0x48] sm:$0xff]
        %v1167 = vld [vmem:[#allocation15 + $0x50] sm:$0xff]
        %v1168 = vld [vmem:[#allocation15 + $0x58] sm:$0xff]
        %v1169 = vld [vmem:[#allocation15 + $0x60] sm:$0xff]
        %v1170 = vld [vmem:[#allocation15 + $0x68] sm:$0xff]
        %v1171 = vld [vmem:[#allocation15 + $0x70] sm:$0xff]
        %v1172 = vld [vmem:[#allocation15 + $0x78] sm:$0xff]
        %v1173 = vld [vmem:[#allocation15 + $0x80] sm:$0xff]
        %v1174 = vld [vmem:[#allocation15 + $0x88] sm:$0xff]
        %v1175 = vld [vmem:[#allocation15 + $0x90] sm:$0xff]
        %v1176 = vld [vmem:[#allocation15 + $0x98] sm:$0xff]
        %v1177 = vld [vmem:[#allocation15 + $0xa0] sm:$0xff]
        %v1178 = vld [vmem:[#allocation15 + $0xa8] sm:$0xff]
        %v1179 = vld [vmem:[#allocation15 + $0xb0] sm:$0xff]
        %v1180 = vld [vmem:[#allocation15 + $0xb8] sm:$0xff]
        %v1181 = vld [vmem:[#allocation15 + $0xc0] sm:$0xff]
        %v1182 = vld [vmem:[#allocation15 + $0xc8] sm:$0xff]
        %v1183 = vld [vmem:[#allocation15 + $0xd0] sm:$0xff]
        %v1184 = vld [vmem:[#allocation15 + $0xd8] sm:$0xff]
        %v1185 = vld [vmem:[#allocation15 + $0xe0] sm:$0xff]
        %v1186 = vld [vmem:[#allocation15 + $0xe8] sm:$0xff]
        %v1187 = vld [vmem:[#allocation15 + $0xf0] sm:$0xff]
        %v1188 = vld [vmem:[#allocation15 + $0xf8] sm:$0xff]
        %v1189 = vld [vmem:[%s21] sm:$0x1]
        %v1190 = vld [vmem:[#allocation17] sm:$0xff]
        %v1191 = vld [vmem:[#allocation17 + $0x8] sm:$0xff]
        %v1192 = vld [vmem:[#allocation17 + $0x10] sm:$0xff]
        %v1193 = vld [vmem:[#allocation17 + $0x18] sm:$0xff]
        %v1194 = vld [vmem:[#allocation17 + $0x20] sm:$0xff]
        %v1195 = vld [vmem:[#allocation17 + $0x28] sm:$0xff]
        %v1196 = vld [vmem:[#allocation17 + $0x30] sm:$0xff]
        %v1197 = vld [vmem:[#allocation17 + $0x38] sm:$0xff]
        %v1198 = vld [vmem:[#allocation17 + $0x40] sm:$0xff]
        %v1199 = vld [vmem:[#allocation17 + $0x48] sm:$0xff]
        %v1200 = vld [vmem:[#allocation17 + $0x50] sm:$0xff]
        %v1201 = vld [vmem:[#allocation17 + $0x58] sm:$0xff]
        %v1202 = vld [vmem:[#allocation17 + $0x60] sm:$0xff]
        %v1203 = vld [vmem:[#allocation17 + $0x68] sm:$0xff]
        %v1204 = vld [vmem:[#allocation17 + $0x70] sm:$0xff]
        %v1205 = vld [vmem:[#allocation17 + $0x78] sm:$0xff]
        %v1206 = vld [vmem:[%s23] sm:$0x1]
        %v1207 = vld [vmem:[%s914] sm:$0xf]
        %v1208 = vld [vmem:[%s914 + $0x4] sm:$0xf]
        %v1209 = vld [vmem:[%s914 + $0x8] sm:$0xf]
        %v1210 = vld [vmem:[%s914 + $0xc] sm:$0xf]
        %v1211 = vld [vmem:[%s914 + $0x10] sm:$0xf]
        %v1212 = vld [vmem:[%s914 + $0x14] sm:$0xf]
        %v1213 = vld [vmem:[%s914 + $0x18] sm:$0xf]
        %v1214 = vld [vmem:[%s914 + $0x1c] sm:$0xf]
        %v1215 = vld [vmem:[%s914 + $0x20] sm:$0xf]
        %v1216 = vld [vmem:[%s914 + $0x24] sm:$0xf]
        %v1217 = vld [vmem:[%s914 + $0x28] sm:$0xf]
        %v1218 = vld [vmem:[%s914 + $0x2c] sm:$0xf]
        %v1219 = vld [vmem:[%s914 + $0x30] sm:$0xf]
        %v1220 = vld [vmem:[%s914 + $0x34] sm:$0xf]
        %v1221 = vld [vmem:[%s914 + $0x38] sm:$0xf]
        %v1222 = vld [vmem:[%s914 + $0x3c] sm:$0xf]
        %v1223 = vld [vmem:[%s914 + $0x40] sm:$0xf]
        %v1224 = vld [vmem:[%s914 + $0x44] sm:$0xf]
        %v1225 = vld [vmem:[%s914 + $0x48] sm:$0xf]
        %v1226 = vld [vmem:[%s914 + $0x4c] sm:$0xf]
        %v1227 = vld [vmem:[%s914 + $0x50] sm:$0xf]
        %v1228 = vld [vmem:[%s914 + $0x54] sm:$0xf]
        %v1229 = vld [vmem:[%s914 + $0x58] sm:$0xf]
        %v1230 = vld [vmem:[%s914 + $0x5c] sm:$0xf]
        %v1231 = vld [vmem:[%s914 + $0x60] sm:$0xf]
        %v1232 = vld [vmem:[%s914 + $0x64] sm:$0xf]
        %v1233 = vld [vmem:[%s914 + $0x68] sm:$0xf]
        %v1234 = vld [vmem:[%s914 + $0x6c] sm:$0xf]
        %v1235 = vld [vmem:[%s914 + $0x70] sm:$0xf]
        %v1236 = vld [vmem:[%s914 + $0x74] sm:$0xf]
        %v1237 = vld [vmem:[%s914 + $0x78] sm:$0xf]
        %v1238 = vld [vmem:[%s914 + $0x7c] sm:$0xf]
        %v1239 = vld [vmem:[%s921] sm:$0xf]
        %v1240 = vld [vmem:[%s921 + $0x4] sm:$0xf]
        %v1241 = vld [vmem:[%s921 + $0x8] sm:$0xf]
        %v1242 = vld [vmem:[%s921 + $0xc] sm:$0xf]
        %v1243 = vld [vmem:[%s921 + $0x10] sm:$0xf]
        %v1244 = vld [vmem:[%s921 + $0x14] sm:$0xf]
        %v1245 = vld [vmem:[%s921 + $0x18] sm:$0xf]
        %v1246 = vld [vmem:[%s921 + $0x1c] sm:$0xf]
        %v1247 = vld [vmem:[%s921 + $0x20] sm:$0xf]
        %v1248 = vld [vmem:[%s921 + $0x24] sm:$0xf]
        %v1249 = vld [vmem:[%s921 + $0x28] sm:$0xf]
        %v1250 = vld [vmem:[%s921 + $0x2c] sm:$0xf]
        %v1251 = vld [vmem:[%s921 + $0x30] sm:$0xf]
        %v1252 = vld [vmem:[%s921 + $0x34] sm:$0xf]
        %v1253 = vld [vmem:[%s921 + $0x38] sm:$0xf]
        %v1254 = vld [vmem:[%s921 + $0x3c] sm:$0xf]
        %v1255 = vld [vmem:[%s921 + $0x40] sm:$0xf]
        %v1256 = vld [vmem:[%s921 + $0x44] sm:$0xf]
        %v1257 = vld [vmem:[%s921 + $0x48] sm:$0xf]
        %v1258 = vld [vmem:[%s921 + $0x4c] sm:$0xf]
        %v1259 = vld [vmem:[%s921 + $0x50] sm:$0xf]
        %v1260 = vld [vmem:[%s921 + $0x54] sm:$0xf]
        %v1261 = vld [vmem:[%s921 + $0x58] sm:$0xf]
        %v1262 = vld [vmem:[%s921 + $0x5c] sm:$0xf]
        %v1263 = vld [vmem:[%s921 + $0x60] sm:$0xf]
        %v1264 = vld [vmem:[%s921 + $0x64] sm:$0xf]
        %v1265 = vld [vmem:[%s921 + $0x68] sm:$0xf]
        %v1266 = vld [vmem:[%s921 + $0x6c] sm:$0xf]
        %v1267 = vld [vmem:[%s921 + $0x70] sm:$0xf]
        %v1268 = vld [vmem:[%s921 + $0x74] sm:$0xf]
        %v1269 = vld [vmem:[%s921 + $0x78] sm:$0xf]
        %v1270 = vld [vmem:[%s921 + $0x7c] sm:$0xf]
        %v1271 = vunpack.c.l.bf16 %v1239
        %v1272 = vunpack.c.l.bf16 %v1240
        %v1273 = vunpack.c.l.bf16 %v1241
        %v1274 = vunpack.c.l.bf16 %v1242
        %v1275 = vunpack.c.l.bf16 %v1243
        %v1276 = vunpack.c.l.bf16 %v1244
        %v1277 = vunpack.c.l.bf16 %v1245
        %v1278 = vunpack.c.l.bf16 %v1246
        %v1279 = vunpack.c.l.bf16 %v1247
        %v1280 = vunpack.c.l.bf16 %v1248
        %v1281 = vunpack.c.l.bf16 %v1249
        %v1282 = vunpack.c.l.bf16 %v1250
        %v1283 = vunpack.c.l.bf16 %v1251
        %v1284 = vunpack.c.l.bf16 %v1252
        %v1285 = vunpack.c.l.bf16 %v1253
        %v1286 = vunpack.c.l.bf16 %v1254
        %v1287 = vunpack.c.l.bf16 %v1255
        %v1288 = vunpack.c.l.bf16 %v1256
        %v1289 = vunpack.c.l.bf16 %v1257
        %v1290 = vunpack.c.l.bf16 %v1258
        %v1291 = vunpack.c.l.bf16 %v1259
        %v1292 = vunpack.c.l.bf16 %v1260
        %v1293 = vunpack.c.l.bf16 %v1261
        %v1294 = vunpack.c.l.bf16 %v1262
        %v1295 = vunpack.c.l.bf16 %v1263
        %v1296 = vunpack.c.l.bf16 %v1264
        %v1297 = vunpack.c.l.bf16 %v1265
        %v1298 = vunpack.c.l.bf16 %v1266
        %v1299 = vunpack.c.l.bf16 %v1267
        %v1300 = vunpack.c.l.bf16 %v1268
        %v1301 = vunpack.c.l.bf16 %v1269
        %v1302 = vunpack.c.l.bf16 %v1270
        %v1335 = vunpack.c.l.b16 %v1239
        %v1336 = vunpack.c.l.b16 %v1240
        %v1337 = vunpack.c.l.b16 %v1241
        %v1338 = vunpack.c.l.b16 %v1242
        %v1339 = vunpack.c.l.b16 %v1243
        %v1340 = vunpack.c.l.b16 %v1244
        %v1341 = vunpack.c.l.b16 %v1245
        %v1342 = vunpack.c.l.b16 %v1246
        %v1343 = vunpack.c.l.b16 %v1247
        %v1344 = vunpack.c.l.b16 %v1248
        %v1345 = vunpack.c.l.b16 %v1249
        %v1346 = vunpack.c.l.b16 %v1250
        %v1347 = vunpack.c.l.b16 %v1251
        %v1348 = vunpack.c.l.b16 %v1252
        %v1349 = vunpack.c.l.b16 %v1253
        %v1350 = vunpack.c.l.b16 %v1254
        %v1351 = vunpack.c.l.b16 %v1255
        %v1352 = vunpack.c.l.b16 %v1256
        %v1353 = vunpack.c.l.b16 %v1257
        %v1354 = vunpack.c.l.b16 %v1258
        %v1355 = vunpack.c.l.b16 %v1259
        %v1356 = vunpack.c.l.b16 %v1260
        %v1357 = vunpack.c.l.b16 %v1261
        %v1358 = vunpack.c.l.b16 %v1262
        %v1359 = vunpack.c.l.b16 %v1263
        %v1360 = vunpack.c.l.b16 %v1264
        %v1361 = vunpack.c.l.b16 %v1265
        %v1362 = vunpack.c.l.b16 %v1266
        %v1363 = vunpack.c.l.b16 %v1267
        %v1364 = vunpack.c.l.b16 %v1268
        %v1365 = vunpack.c.l.b16 %v1269
        %v1366 = vunpack.c.l.b16 %v1270
        %v1367 = vpack.c.b16 %v1336, %v1335
        %v1368 = vpack.c.b16 %v1338, %v1337
        %v1369 = vpack.c.b16 %v1340, %v1339
        %v1370 = vpack.c.b16 %v1342, %v1341
        %v1371 = vpack.c.b16 %v1344, %v1343
        %v1372 = vpack.c.b16 %v1346, %v1345
        %v1373 = vpack.c.b16 %v1348, %v1347
        %v1374 = vpack.c.b16 %v1350, %v1349
        %v1375 = vpack.c.b16 %v1352, %v1351
        %v1376 = vpack.c.b16 %v1354, %v1353
        %v1377 = vpack.c.b16 %v1356, %v1355
        %v1378 = vpack.c.b16 %v1358, %v1357
        %v1379 = vpack.c.b16 %v1360, %v1359
        %v1380 = vpack.c.b16 %v1362, %v1361
        %v1381 = vpack.c.b16 %v1364, %v1363
        %v1382 = vpack.c.b16 %v1366, %v1365
        %1384 = vst [vmem:[#allocation1] ss:$9 sm:$0xff] %v931
        %v1385 = vld [vmem:[#allocation1] sm:$0xff]
        %v1386 = vld [vmem:[#allocation1 + $0x9] sm:$0xff]
        %vm1387 = vcmask 15360
        %v1389 = vsel %vm1387, %v1367, 0
        %v1392 = vsel %vm1387, %v1368, 0
        %v1395 = vsel %vm1387, %v1369, 0
        %v1398 = vsel %vm1387, %v1370, 0
        %v1401 = vsel %vm1387, %v1371, 0
        %v1404 = vsel %vm1387, %v1372, 0
        %v1407 = vsel %vm1387, %v1373, 0
        %v1410 = vsel %vm1387, %v1374, 0
        %v1413 = vsel %vm1387, %v1375, 0
        %v1416 = vsel %vm1387, %v1376, 0
        %v1419 = vsel %vm1387, %v1377, 0
        %v1422 = vsel %vm1387, %v1378, 0
        %v1425 = vsel %vm1387, %v1379, 0
        %v1428 = vsel %vm1387, %v1380, 0
        %v1431 = vsel %vm1387, %v1381, 0
        %v1434 = vsel %vm1387, %v1382, 0
        %vm1436 = vcmask 1040384
        %v1437 = vsel %vm1436, %v1385, 0
        %v1439 = vsel %vm1436, %v1386, 0
        %1441 = vmatpush.bf16.msra.mxu0 0
        %1442 = vmatpush.bf16.msra.mxu0 0
        %1443 = vmatpush.bf16.msra.mxu0 0
        %1444 = vmatpush.bf16.msra.mxu0 0
        %1445 = vmatpush.bf16.msra.mxu0 0
        %1446 = vmatpush.bf16.msra.mxu0 0
        %1447 = vmatpush.bf16.msra.mxu0 0
        %1448 = vmatpush.bf16.msra.mxu0 %v1437
        %1449 = vmatmul.bf16.gmra.mxu0 %v1389
        %v1450 = vpop.f32.mrf.mxu0
        %v1451 = vadd.f32 0.0, %v1450
        %v1452 = vpop.f32.mrf.mxu0
        %v1453 = vadd.f32 0.0, %v1452
        %1454 = vmatmul.bf16.gmra.mxu0 %v1392
        %v1455 = vpop.f32.mrf.mxu0
        %v1456 = vadd.f32 0.0, %v1455
        %v1457 = vpop.f32.mrf.mxu0
        %v1458 = vadd.f32 0.0, %v1457
        %1459 = vmatmul.bf16.gmra.mxu0 %v1395
        %v1460 = vpop.f32.mrf.mxu0
        %v1461 = vadd.f32 0.0, %v1460
        %v1462 = vpop.f32.mrf.mxu0
        %v1463 = vadd.f32 0.0, %v1462
        %1464 = vmatmul.bf16.gmra.mxu0 %v1398
        %v1465 = vpop.f32.mrf.mxu0
        %v1466 = vadd.f32 0.0, %v1465
        %v1467 = vpop.f32.mrf.mxu0
        %v1468 = vadd.f32 0.0, %v1467
        %1469 = vmatmul.bf16.gmra.mxu0 %v1401
        %v1470 = vpop.f32.mrf.mxu0
        %v1471 = vadd.f32 0.0, %v1470
        %v1472 = vpop.f32.mrf.mxu0
        %v1473 = vadd.f32 0.0, %v1472
        %1474 = vmatmul.bf16.gmra.mxu0 %v1404
        %v1475 = vpop.f32.mrf.mxu0
        %v1476 = vadd.f32 0.0, %v1475
        %v1477 = vpop.f32.mrf.mxu0
        %v1478 = vadd.f32 0.0, %v1477
        %1479 = vmatmul.bf16.gmra.mxu0 %v1407
        %v1480 = vpop.f32.mrf.mxu0
        %v1481 = vadd.f32 0.0, %v1480
        %v1482 = vpop.f32.mrf.mxu0
        %v1483 = vadd.f32 0.0, %v1482
        %1484 = vmatmul.bf16.gmra.mxu0 %v1410
        %v1485 = vpop.f32.mrf.mxu0
        %v1486 = vadd.f32 0.0, %v1485
        %v1487 = vpop.f32.mrf.mxu0
        %v1488 = vadd.f32 0.0, %v1487
        %1489 = vmatmul.bf16.gmra.mxu0 %v1413
        %v1490 = vpop.f32.mrf.mxu0
        %v1491 = vadd.f32 0.0, %v1490
        %v1492 = vpop.f32.mrf.mxu0
        %v1493 = vadd.f32 0.0, %v1492
        %1494 = vmatmul.bf16.gmra.mxu0 %v1416
        %v1495 = vpop.f32.mrf.mxu0
        %v1496 = vadd.f32 0.0, %v1495
        %v1497 = vpop.f32.mrf.mxu0
        %v1498 = vadd.f32 0.0, %v1497
        %1499 = vmatmul.bf16.gmra.mxu0 %v1419
        %v1500 = vpop.f32.mrf.mxu0
        %v1501 = vadd.f32 0.0, %v1500
        %v1502 = vpop.f32.mrf.mxu0
        %v1503 = vadd.f32 0.0, %v1502
        %1504 = vmatmul.bf16.gmra.mxu0 %v1422
        %v1505 = vpop.f32.mrf.mxu0
        %v1506 = vadd.f32 0.0, %v1505
        %v1507 = vpop.f32.mrf.mxu0
        %v1508 = vadd.f32 0.0, %v1507
        %1509 = vmatmul.bf16.gmra.mxu0 %v1425
        %v1510 = vpop.f32.mrf.mxu0
        %v1511 = vadd.f32 0.0, %v1510
        %v1512 = vpop.f32.mrf.mxu0
        %v1513 = vadd.f32 0.0, %v1512
        %1514 = vmatmul.bf16.gmra.mxu0 %v1428
        %v1515 = vpop.f32.mrf.mxu0
        %v1516 = vadd.f32 0.0, %v1515
        %v1517 = vpop.f32.mrf.mxu0
        %v1518 = vadd.f32 0.0, %v1517
        %1519 = vmatmul.bf16.gmra.mxu0 %v1431
        %v1520 = vpop.f32.mrf.mxu0
        %v1521 = vadd.f32 0.0, %v1520
        %v1522 = vpop.f32.mrf.mxu0
        %v1523 = vadd.f32 0.0, %v1522
        %1524 = vmatmul.bf16.gmra.mxu0 %v1434
        %v1525 = vpop.f32.mrf.mxu0
        %v1526 = vadd.f32 0.0, %v1525
        %v1527 = vpop.f32.mrf.mxu0
        %v1528 = vadd.f32 0.0, %v1527
        %1529 = vdwg.mxu0
        %1530 = vmatpush.bf16.msra.mxu0 0
        %1531 = vmatpush.bf16.msra.mxu0 0
        %1532 = vmatpush.bf16.msra.mxu0 0
        %1533 = vmatpush.bf16.msra.mxu0 0
        %1534 = vmatpush.bf16.msra.mxu0 0
        %1535 = vmatpush.bf16.msra.mxu0 0
        %1536 = vmatpush.bf16.msra.mxu0 0
        %1537 = vmatpush.bf16.msra.mxu0 %v1439
        %1538 = vmatmul.bf16.gmra.mxu0 %v1389
        %v1539 = vpop.f32.mrf.mxu0
        %v1540 = vadd.f32 0.0, %v1539
        %v1541 = vpop.f32.mrf.mxu0
        %v1542 = vadd.f32 0.0, %v1541
        %1543 = vmatmul.bf16.gmra.mxu0 %v1392
        %v1544 = vpop.f32.mrf.mxu0
        %v1545 = vadd.f32 0.0, %v1544
        %v1546 = vpop.f32.mrf.mxu0
        %v1547 = vadd.f32 0.0, %v1546
        %1548 = vmatmul.bf16.gmra.mxu0 %v1395
        %v1549 = vpop.f32.mrf.mxu0
        %v1550 = vadd.f32 0.0, %v1549
        %v1551 = vpop.f32.mrf.mxu0
        %v1552 = vadd.f32 0.0, %v1551
        %1553 = vmatmul.bf16.gmra.mxu0 %v1398
        %v1554 = vpop.f32.mrf.mxu0
        %v1555 = vadd.f32 0.0, %v1554
        %v1556 = vpop.f32.mrf.mxu0
        %v1557 = vadd.f32 0.0, %v1556
        %1558 = vmatmul.bf16.gmra.mxu0 %v1401
        %v1559 = vpop.f32.mrf.mxu0
        %v1560 = vadd.f32 0.0, %v1559
        %v1561 = vpop.f32.mrf.mxu0
        %v1562 = vadd.f32 0.0, %v1561
        %1563 = vmatmul.bf16.gmra.mxu0 %v1404
        %v1564 = vpop.f32.mrf.mxu0
        %v1565 = vadd.f32 0.0, %v1564
        %v1566 = vpop.f32.mrf.mxu0
        %v1567 = vadd.f32 0.0, %v1566
        %1568 = vmatmul.bf16.gmra.mxu0 %v1407
        %v1569 = vpop.f32.mrf.mxu0
        %v1570 = vadd.f32 0.0, %v1569
        %v1571 = vpop.f32.mrf.mxu0
        %v1572 = vadd.f32 0.0, %v1571
        %1573 = vmatmul.bf16.gmra.mxu0 %v1410
        %v1574 = vpop.f32.mrf.mxu0
        %v1575 = vadd.f32 0.0, %v1574
        %v1576 = vpop.f32.mrf.mxu0
        %v1577 = vadd.f32 0.0, %v1576
        %1578 = vmatmul.bf16.gmra.mxu0 %v1413
        %v1579 = vpop.f32.mrf.mxu0
        %v1580 = vadd.f32 0.0, %v1579
        %v1581 = vpop.f32.mrf.mxu0
        %v1582 = vadd.f32 0.0, %v1581
        %1583 = vmatmul.bf16.gmra.mxu0 %v1416
        %v1584 = vpop.f32.mrf.mxu0
        %v1585 = vadd.f32 0.0, %v1584
        %v1586 = vpop.f32.mrf.mxu0
        %v1587 = vadd.f32 0.0, %v1586
        %1588 = vmatmul.bf16.gmra.mxu0 %v1419
        %v1589 = vpop.f32.mrf.mxu0
        %v1590 = vadd.f32 0.0, %v1589
        %v1591 = vpop.f32.mrf.mxu0
        %v1592 = vadd.f32 0.0, %v1591
        %1593 = vmatmul.bf16.gmra.mxu0 %v1422
        %v1594 = vpop.f32.mrf.mxu0
        %v1595 = vadd.f32 0.0, %v1594
        %v1596 = vpop.f32.mrf.mxu0
        %v1597 = vadd.f32 0.0, %v1596
        %1598 = vmatmul.bf16.gmra.mxu0 %v1425
        %v1599 = vpop.f32.mrf.mxu0
        %v1600 = vadd.f32 0.0, %v1599
        %v1601 = vpop.f32.mrf.mxu0
        %v1602 = vadd.f32 0.0, %v1601
        %1603 = vmatmul.bf16.gmra.mxu0 %v1428
        %v1604 = vpop.f32.mrf.mxu0
        %v1605 = vadd.f32 0.0, %v1604
        %v1606 = vpop.f32.mrf.mxu0
        %v1607 = vadd.f32 0.0, %v1606
        %1608 = vmatmul.bf16.gmra.mxu0 %v1431
        %v1609 = vpop.f32.mrf.mxu0
        %v1610 = vadd.f32 0.0, %v1609
        %v1611 = vpop.f32.mrf.mxu0
        %v1612 = vadd.f32 0.0, %v1611
        %1613 = vmatmul.bf16.gmra.mxu0 %v1434
        %v1614 = vpop.f32.mrf.mxu0
        %v1615 = vadd.f32 0.0, %v1614
        %v1616 = vpop.f32.mrf.mxu0
        %v1617 = vadd.f32 0.0, %v1616
        %1618 = vdwg.mxu0
        %v1651 = vunpack.c.l.b16 %v1207
        %v1652 = vunpack.c.l.b16 %v1208
        %v1653 = vunpack.c.l.b16 %v1209
        %v1654 = vunpack.c.l.b16 %v1210
        %v1655 = vunpack.c.l.b16 %v1211
        %v1656 = vunpack.c.l.b16 %v1212
        %v1657 = vunpack.c.l.b16 %v1213
        %v1658 = vunpack.c.l.b16 %v1214
        %v1659 = vunpack.c.l.b16 %v1215
        %v1660 = vunpack.c.l.b16 %v1216
        %v1661 = vunpack.c.l.b16 %v1217
        %v1662 = vunpack.c.l.b16 %v1218
        %v1663 = vunpack.c.l.b16 %v1219
        %v1664 = vunpack.c.l.b16 %v1220
        %v1665 = vunpack.c.l.b16 %v1221
        %v1666 = vunpack.c.l.b16 %v1222
        %v1667 = vunpack.c.l.b16 %v1223
        %v1668 = vunpack.c.l.b16 %v1224
        %v1669 = vunpack.c.l.b16 %v1225
        %v1670 = vunpack.c.l.b16 %v1226
        %v1671 = vunpack.c.l.b16 %v1227
        %v1672 = vunpack.c.l.b16 %v1228
        %v1673 = vunpack.c.l.b16 %v1229
        %v1674 = vunpack.c.l.b16 %v1230
        %v1675 = vunpack.c.l.b16 %v1231
        %v1676 = vunpack.c.l.b16 %v1232
        %v1677 = vunpack.c.l.b16 %v1233
        %v1678 = vunpack.c.l.b16 %v1234
        %v1679 = vunpack.c.l.b16 %v1235
        %v1680 = vunpack.c.l.b16 %v1236
        %v1681 = vunpack.c.l.b16 %v1237
        %v1682 = vunpack.c.l.b16 %v1238
        %v1683 = vpack.c.b16 %v1652, %v1651
        %v1684 = vpack.c.b16 %v1654, %v1653
        %v1685 = vpack.c.b16 %v1656, %v1655
        %v1686 = vpack.c.b16 %v1658, %v1657
        %v1687 = vpack.c.b16 %v1660, %v1659
        %v1688 = vpack.c.b16 %v1662, %v1661
        %v1689 = vpack.c.b16 %v1664, %v1663
        %v1690 = vpack.c.b16 %v1666, %v1665
        %v1691 = vpack.c.b16 %v1668, %v1667
        %v1692 = vpack.c.b16 %v1670, %v1669
        %v1693 = vpack.c.b16 %v1672, %v1671
        %v1694 = vpack.c.b16 %v1674, %v1673
        %v1695 = vpack.c.b16 %v1676, %v1675
        %v1696 = vpack.c.b16 %v1678, %v1677
        %v1697 = vpack.c.b16 %v1680, %v1679
        %v1698 = vpack.c.b16 %v1682, %v1681
        %v1700 = vunpack.c.l.b16 %v930
        %v1701 = vunpack.c.h.b16 %v930
        %v1702 = vpack.c.b16 %v1700, %v1700
        %v1703 = vpack.c.b16 %v1701, %v1701
        %vm1704 = vcmask 48128
        %v1706 = vsel %vm1704, %v1683, 0
        %v1709 = vsel %vm1704, %v1684, 0
        %v1712 = vsel %vm1704, %v1685, 0
        %v1715 = vsel %vm1704, %v1686, 0
        %v1718 = vsel %vm1704, %v1687, 0
        %v1721 = vsel %vm1704, %v1688, 0
        %v1724 = vsel %vm1704, %v1689, 0
        %v1727 = vsel %vm1704, %v1690, 0
        %v1730 = vsel %vm1704, %v1691, 0
        %v1733 = vsel %vm1704, %v1692, 0
        %v1736 = vsel %vm1704, %v1693, 0
        %v1739 = vsel %vm1704, %v1694, 0
        %v1742 = vsel %vm1704, %v1695, 0
        %v1745 = vsel %vm1704, %v1696, 0
        %v1748 = vsel %vm1704, %v1697, 0
        %v1751 = vsel %vm1704, %v1698, 0
        %vm1753 = vcmask 1042432
        %v1755 = vsel %vm1753, %v1702, 0
        %v1758 = vsel %vm1753, %v1703, 0
        %1760 = vmatpush.bf16.msra.mxu0 0
        %1761 = vmatpush.bf16.msra.mxu0 0
        %1762 = vmatpush.bf16.msra.mxu0 0
        %1763 = vmatpush.bf16.msra.mxu0 0
        %1764 = vmatpush.bf16.msra.mxu0 0
        %1765 = vmatpush.bf16.msra.mxu0 0
        %1766 = vmatpush.bf16.msra.mxu0 0
        %1767 = vmatpush.bf16.msra.mxu0 %v1755
        %1768 = vmatmul.bf16.gmra.mxu0 %v1706
        %v1769 = vpop.f32.mrf.mxu0
        %v1770 = vadd.f32 %v1451, %v1769
        %v1771 = vpop.f32.mrf.mxu0
        %v1772 = vadd.f32 %v1453, %v1771
        %1773 = vmatmul.bf16.gmra.mxu0 %v1709
        %v1774 = vpop.f32.mrf.mxu0
        %v1775 = vadd.f32 %v1456, %v1774
        %v1776 = vpop.f32.mrf.mxu0
        %v1777 = vadd.f32 %v1458, %v1776
        %1778 = vmatmul.bf16.gmra.mxu0 %v1712
        %v1779 = vpop.f32.mrf.mxu0
        %v1780 = vadd.f32 %v1461, %v1779
        %v1781 = vpop.f32.mrf.mxu0
        %v1782 = vadd.f32 %v1463, %v1781
        %1783 = vmatmul.bf16.gmra.mxu0 %v1715
        %v1784 = vpop.f32.mrf.mxu0
        %v1785 = vadd.f32 %v1466, %v1784
        %v1786 = vpop.f32.mrf.mxu0
        %v1787 = vadd.f32 %v1468, %v1786
        %1788 = vmatmul.bf16.gmra.mxu0 %v1718
        %v1789 = vpop.f32.mrf.mxu0
        %v1790 = vadd.f32 %v1471, %v1789
        %v1791 = vpop.f32.mrf.mxu0
        %v1792 = vadd.f32 %v1473, %v1791
        %1793 = vmatmul.bf16.gmra.mxu0 %v1721
        %v1794 = vpop.f32.mrf.mxu0
        %v1795 = vadd.f32 %v1476, %v1794
        %v1796 = vpop.f32.mrf.mxu0
        %v1797 = vadd.f32 %v1478, %v1796
        %1798 = vmatmul.bf16.gmra.mxu0 %v1724
        %v1799 = vpop.f32.mrf.mxu0
        %v1800 = vadd.f32 %v1481, %v1799
        %v1801 = vpop.f32.mrf.mxu0
        %v1802 = vadd.f32 %v1483, %v1801
        %1803 = vmatmul.bf16.gmra.mxu0 %v1727
        %v1804 = vpop.f32.mrf.mxu0
        %v1805 = vadd.f32 %v1486, %v1804
        %v1806 = vpop.f32.mrf.mxu0
        %v1807 = vadd.f32 %v1488, %v1806
        %1808 = vmatmul.bf16.gmra.mxu0 %v1730
        %v1809 = vpop.f32.mrf.mxu0
        %v1810 = vadd.f32 %v1491, %v1809
        %v1811 = vpop.f32.mrf.mxu0
        %v1812 = vadd.f32 %v1493, %v1811
        %1813 = vmatmul.bf16.gmra.mxu0 %v1733
        %v1814 = vpop.f32.mrf.mxu0
        %v1815 = vadd.f32 %v1496, %v1814
        %v1816 = vpop.f32.mrf.mxu0
        %v1817 = vadd.f32 %v1498, %v1816
        %1818 = vmatmul.bf16.gmra.mxu0 %v1736
        %v1819 = vpop.f32.mrf.mxu0
        %v1820 = vadd.f32 %v1501, %v1819
        %v1821 = vpop.f32.mrf.mxu0
        %v1822 = vadd.f32 %v1503, %v1821
        %1823 = vmatmul.bf16.gmra.mxu0 %v1739
        %v1824 = vpop.f32.mrf.mxu0
        %v1825 = vadd.f32 %v1506, %v1824
        %v1826 = vpop.f32.mrf.mxu0
        %v1827 = vadd.f32 %v1508, %v1826
        %1828 = vmatmul.bf16.gmra.mxu0 %v1742
        %v1829 = vpop.f32.mrf.mxu0
        %v1830 = vadd.f32 %v1511, %v1829
        %v1831 = vpop.f32.mrf.mxu0
        %v1832 = vadd.f32 %v1513, %v1831
        %1833 = vmatmul.bf16.gmra.mxu0 %v1745
        %v1834 = vpop.f32.mrf.mxu0
        %v1835 = vadd.f32 %v1516, %v1834
        %v1836 = vpop.f32.mrf.mxu0
        %v1837 = vadd.f32 %v1518, %v1836
        %1838 = vmatmul.bf16.gmra.mxu0 %v1748
        %v1839 = vpop.f32.mrf.mxu0
        %v1840 = vadd.f32 %v1521, %v1839
        %v1841 = vpop.f32.mrf.mxu0
        %v1842 = vadd.f32 %v1523, %v1841
        %1843 = vmatmul.bf16.gmra.mxu0 %v1751
        %v1844 = vpop.f32.mrf.mxu0
        %v1845 = vadd.f32 %v1526, %v1844
        %v1846 = vpop.f32.mrf.mxu0
        %v1847 = vadd.f32 %v1528, %v1846
        %1848 = vdwg.mxu0
        %1849 = vmatpush.bf16.msra.mxu0 0
        %1850 = vmatpush.bf16.msra.mxu0 0
        %1851 = vmatpush.bf16.msra.mxu0 0
        %1852 = vmatpush.bf16.msra.mxu0 0
        %1853 = vmatpush.bf16.msra.mxu0 0
        %1854 = vmatpush.bf16.msra.mxu0 0
        %1855 = vmatpush.bf16.msra.mxu0 0
        %1856 = vmatpush.bf16.msra.mxu0 %v1758
        %1857 = vmatmul.bf16.gmra.mxu0 %v1706
        %v1858 = vpop.f32.mrf.mxu0
        %v1859 = vadd.f32 %v1540, %v1858
        %v1860 = vpop.f32.mrf.mxu0
        %v1861 = vadd.f32 %v1542, %v1860
        %1862 = vmatmul.bf16.gmra.mxu0 %v1709
        %v1863 = vpop.f32.mrf.mxu0
        %v1864 = vadd.f32 %v1545, %v1863
        %v1865 = vpop.f32.mrf.mxu0
        %v1866 = vadd.f32 %v1547, %v1865
        %1867 = vmatmul.bf16.gmra.mxu0 %v1712
        %v1868 = vpop.f32.mrf.mxu0
        %v1869 = vadd.f32 %v1550, %v1868
        %v1870 = vpop.f32.mrf.mxu0
        %v1871 = vadd.f32 %v1552, %v1870
        %1872 = vmatmul.bf16.gmra.mxu0 %v1715
        %v1873 = vpop.f32.mrf.mxu0
        %v1874 = vadd.f32 %v1555, %v1873
        %v1875 = vpop.f32.mrf.mxu0
        %v1876 = vadd.f32 %v1557, %v1875
        %1877 = vmatmul.bf16.gmra.mxu0 %v1718
        %v1878 = vpop.f32.mrf.mxu0
        %v1879 = vadd.f32 %v1560, %v1878
        %v1880 = vpop.f32.mrf.mxu0
        %v1881 = vadd.f32 %v1562, %v1880
        %1882 = vmatmul.bf16.gmra.mxu0 %v1721
        %v1883 = vpop.f32.mrf.mxu0
        %v1884 = vadd.f32 %v1565, %v1883
        %v1885 = vpop.f32.mrf.mxu0
        %v1886 = vadd.f32 %v1567, %v1885
        %1887 = vmatmul.bf16.gmra.mxu0 %v1724
        %v1888 = vpop.f32.mrf.mxu0
        %v1889 = vadd.f32 %v1570, %v1888
        %v1890 = vpop.f32.mrf.mxu0
        %v1891 = vadd.f32 %v1572, %v1890
        %1892 = vmatmul.bf16.gmra.mxu0 %v1727
        %v1893 = vpop.f32.mrf.mxu0
        %v1894 = vadd.f32 %v1575, %v1893
        %v1895 = vpop.f32.mrf.mxu0
        %v1896 = vadd.f32 %v1577, %v1895
        %1897 = vmatmul.bf16.gmra.mxu0 %v1730
        %v1898 = vpop.f32.mrf.mxu0
        %v1899 = vadd.f32 %v1580, %v1898
        %v1900 = vpop.f32.mrf.mxu0
        %v1901 = vadd.f32 %v1582, %v1900
        %1902 = vmatmul.bf16.gmra.mxu0 %v1733
        %v1903 = vpop.f32.mrf.mxu0
        %v1904 = vadd.f32 %v1585, %v1903
        %v1905 = vpop.f32.mrf.mxu0
        %v1906 = vadd.f32 %v1587, %v1905
        %1907 = vmatmul.bf16.gmra.mxu0 %v1736
        %v1908 = vpop.f32.mrf.mxu0
        %v1909 = vadd.f32 %v1590, %v1908
        %v1910 = vpop.f32.mrf.mxu0
        %v1911 = vadd.f32 %v1592, %v1910
        %1912 = vmatmul.bf16.gmra.mxu0 %v1739
        %v1913 = vpop.f32.mrf.mxu0
        %v1914 = vadd.f32 %v1595, %v1913
        %v1915 = vpop.f32.mrf.mxu0
        %v1916 = vadd.f32 %v1597, %v1915
        %1917 = vmatmul.bf16.gmra.mxu0 %v1742
        %v1918 = vpop.f32.mrf.mxu0
        %v1919 = vadd.f32 %v1600, %v1918
        %v1920 = vpop.f32.mrf.mxu0
        %v1921 = vadd.f32 %v1602, %v1920
        %1922 = vmatmul.bf16.gmra.mxu0 %v1745
        %v1923 = vpop.f32.mrf.mxu0
        %v1924 = vadd.f32 %v1605, %v1923
        %v1925 = vpop.f32.mrf.mxu0
        %v1926 = vadd.f32 %v1607, %v1925
        %1927 = vmatmul.bf16.gmra.mxu0 %v1748
        %v1928 = vpop.f32.mrf.mxu0
        %v1929 = vadd.f32 %v1610, %v1928
        %v1930 = vpop.f32.mrf.mxu0
        %v1931 = vadd.f32 %v1612, %v1930
        %1932 = vmatmul.bf16.gmra.mxu0 %v1751
        %v1933 = vpop.f32.mrf.mxu0
        %v1934 = vadd.f32 %v1615, %v1933
        %v1935 = vpop.f32.mrf.mxu0
        %v1936 = vadd.f32 %v1617, %v1935
        %1937 = vdwg.mxu0
        %v1939 = vperm.slane %v932, 0
        %v1940 = vperm.slane %v932, 1
        %v1943 = vadd.f32 %v1770, %v1939
        %v1944 = vadd.f32 %v1859, %v1940
        %v1945 = vadd.f32 %v1772, %v1939
        %v1946 = vadd.f32 %v1861, %v1940
        %v1947 = vadd.f32 %v1775, %v1939
        %v1948 = vadd.f32 %v1864, %v1940
        %v1949 = vadd.f32 %v1777, %v1939
        %v1950 = vadd.f32 %v1866, %v1940
        %v1951 = vadd.f32 %v1780, %v1939
        %v1952 = vadd.f32 %v1869, %v1940
        %v1953 = vadd.f32 %v1782, %v1939
        %v1954 = vadd.f32 %v1871, %v1940
        %v1955 = vadd.f32 %v1785, %v1939
        %v1956 = vadd.f32 %v1874, %v1940
        %v1957 = vadd.f32 %v1787, %v1939
        %v1958 = vadd.f32 %v1876, %v1940
        %v1959 = vadd.f32 %v1790, %v1939
        %v1960 = vadd.f32 %v1879, %v1940
        %v1961 = vadd.f32 %v1792, %v1939
        %v1962 = vadd.f32 %v1881, %v1940
        %v1963 = vadd.f32 %v1795, %v1939
        %v1964 = vadd.f32 %v1884, %v1940
        %v1965 = vadd.f32 %v1797, %v1939
        %v1966 = vadd.f32 %v1886, %v1940
        %v1967 = vadd.f32 %v1800, %v1939
        %v1968 = vadd.f32 %v1889, %v1940
        %v1969 = vadd.f32 %v1802, %v1939
        %v1970 = vadd.f32 %v1891, %v1940
        %v1971 = vadd.f32 %v1805, %v1939
        %v1972 = vadd.f32 %v1894, %v1940
        %v1973 = vadd.f32 %v1807, %v1939
        %v1974 = vadd.f32 %v1896, %v1940
        %v1975 = vadd.f32 %v1810, %v1939
        %v1976 = vadd.f32 %v1899, %v1940
        %v1977 = vadd.f32 %v1812, %v1939
        %v1978 = vadd.f32 %v1901, %v1940
        %v1979 = vadd.f32 %v1815, %v1939
        %v1980 = vadd.f32 %v1904, %v1940
        %v1981 = vadd.f32 %v1817, %v1939
        %v1982 = vadd.f32 %v1906, %v1940
        %v1983 = vadd.f32 %v1820, %v1939
        %v1984 = vadd.f32 %v1909, %v1940
        %v1985 = vadd.f32 %v1822, %v1939
        %v1986 = vadd.f32 %v1911, %v1940
        %v1987 = vadd.f32 %v1825, %v1939
        %v1988 = vadd.f32 %v1914, %v1940
        %v1989 = vadd.f32 %v1827, %v1939
        %v1990 = vadd.f32 %v1916, %v1940
        %v1991 = vadd.f32 %v1830, %v1939
        %v1992 = vadd.f32 %v1919, %v1940
        %v1993 = vadd.f32 %v1832, %v1939
        %v1994 = vadd.f32 %v1921, %v1940
        %v1995 = vadd.f32 %v1835, %v1939
        %v1996 = vadd.f32 %v1924, %v1940
        %v1997 = vadd.f32 %v1837, %v1939
        %v1998 = vadd.f32 %v1926, %v1940
        %v1999 = vadd.f32 %v1840, %v1939
        %v2000 = vadd.f32 %v1929, %v1940
        %v2001 = vadd.f32 %v1842, %v1939
        %v2002 = vadd.f32 %v1931, %v1940
        %v2003 = vadd.f32 %v1845, %v1939
        %v2004 = vadd.f32 %v1934, %v1940
        %v2005 = vadd.f32 %v1847, %v1939
        %v2006 = vadd.f32 %v1936, %v1940
        %v2007 = vmax.f32 %v1943, 0.0
        %v2008 = vmax.f32 %v1944, 0.0
        %v2009 = vmax.f32 %v1945, 0.0
        %v2010 = vmax.f32 %v1946, 0.0
        %v2011 = vmax.f32 %v1947, 0.0
        %v2012 = vmax.f32 %v1948, 0.0
        %v2013 = vmax.f32 %v1949, 0.0
        %v2014 = vmax.f32 %v1950, 0.0
        %v2015 = vmax.f32 %v1951, 0.0
        %v2016 = vmax.f32 %v1952, 0.0
        %v2017 = vmax.f32 %v1953, 0.0
        %v2018 = vmax.f32 %v1954, 0.0
        %v2019 = vmax.f32 %v1955, 0.0
        %v2020 = vmax.f32 %v1956, 0.0
        %v2021 = vmax.f32 %v1957, 0.0
        %v2022 = vmax.f32 %v1958, 0.0
        %v2023 = vmax.f32 %v1959, 0.0
        %v2024 = vmax.f32 %v1960, 0.0
        %v2025 = vmax.f32 %v1961, 0.0
        %v2026 = vmax.f32 %v1962, 0.0
        %v2027 = vmax.f32 %v1963, 0.0
        %v2028 = vmax.f32 %v1964, 0.0
        %v2029 = vmax.f32 %v1965, 0.0
        %v2030 = vmax.f32 %v1966, 0.0
        %v2031 = vmax.f32 %v1967, 0.0
        %v2032 = vmax.f32 %v1968, 0.0
        %v2033 = vmax.f32 %v1969, 0.0
        %v2034 = vmax.f32 %v1970, 0.0
        %v2035 = vmax.f32 %v1971, 0.0
        %v2036 = vmax.f32 %v1972, 0.0
        %v2037 = vmax.f32 %v1973, 0.0
        %v2038 = vmax.f32 %v1974, 0.0
        %v2039 = vmax.f32 %v1975, 0.0
        %v2040 = vmax.f32 %v1976, 0.0
        %v2041 = vmax.f32 %v1977, 0.0
        %v2042 = vmax.f32 %v1978, 0.0
        %v2043 = vmax.f32 %v1979, 0.0
        %v2044 = vmax.f32 %v1980, 0.0
        %v2045 = vmax.f32 %v1981, 0.0
        %v2046 = vmax.f32 %v1982, 0.0
        %v2047 = vmax.f32 %v1983, 0.0
        %v2048 = vmax.f32 %v1984, 0.0
        %v2049 = vmax.f32 %v1985, 0.0
        %v2050 = vmax.f32 %v1986, 0.0
        %v2051 = vmax.f32 %v1987, 0.0
        %v2052 = vmax.f32 %v1988, 0.0
        %v2053 = vmax.f32 %v1989, 0.0
        %v2054 = vmax.f32 %v1990, 0.0
        %v2055 = vmax.f32 %v1991, 0.0
        %v2056 = vmax.f32 %v1992, 0.0
        %v2057 = vmax.f32 %v1993, 0.0
        %v2058 = vmax.f32 %v1994, 0.0
        %v2059 = vmax.f32 %v1995, 0.0
        %v2060 = vmax.f32 %v1996, 0.0
        %v2061 = vmax.f32 %v1997, 0.0
        %v2062 = vmax.f32 %v1998, 0.0
        %v2063 = vmax.f32 %v1999, 0.0
        %v2064 = vmax.f32 %v2000, 0.0
        %v2065 = vmax.f32 %v2001, 0.0
        %v2066 = vmax.f32 %v2002, 0.0
        %v2067 = vmax.f32 %v2003, 0.0
        %v2068 = vmax.f32 %v2004, 0.0
        %v2069 = vmax.f32 %v2005, 0.0
        %v2070 = vmax.f32 %v2006, 0.0
        %v2071 = vsel %vm1387, %v1271, 0.0
        %2072 = vadd.xlane.f32.xlu0 %v2071
        %v2073 = vpop.xlane.xlu0 %2072
        %v2074 = vsel %vm1387, %v1272, 0.0
        %2075 = vadd.xlane.f32.xlu0 %v2074
        %v2076 = vpop.xlane.xlu0 %2075
        %v2077 = vsel %vm1387, %v1273, 0.0
        %2078 = vadd.xlane.f32.xlu0 %v2077
        %v2079 = vpop.xlane.xlu0 %2078
        %v2080 = vsel %vm1387, %v1274, 0.0
        %2081 = vadd.xlane.f32.xlu0 %v2080
        %v2082 = vpop.xlane.xlu0 %2081
        %v2083 = vsel %vm1387, %v1275, 0.0
        %2084 = vadd.xlane.f32.xlu0 %v2083
        %v2085 = vpop.xlane.xlu0 %2084
        %v2086 = vsel %vm1387, %v1276, 0.0
        %2087 = vadd.xlane.f32.xlu0 %v2086
        %v2088 = vpop.xlane.xlu0 %2087
        %v2089 = vsel %vm1387, %v1277, 0.0
        %2090 = vadd.xlane.f32.xlu0 %v2089
        %v2091 = vpop.xlane.xlu0 %2090
        %v2092 = vsel %vm1387, %v1278, 0.0
        %2093 = vadd.xlane.f32.xlu0 %v2092
        %v2094 = vpop.xlane.xlu0 %2093
        %v2095 = vsel %vm1387, %v1279, 0.0
        %2096 = vadd.xlane.f32.xlu0 %v2095
        %v2097 = vpop.xlane.xlu0 %2096
        %v2098 = vsel %vm1387, %v1280, 0.0
        %2099 = vadd.xlane.f32.xlu0 %v2098
        %v2100 = vpop.xlane.xlu0 %2099
        %v2101 = vsel %vm1387, %v1281, 0.0
        %2102 = vadd.xlane.f32.xlu0 %v2101
        %v2103 = vpop.xlane.xlu0 %2102
        %v2104 = vsel %vm1387, %v1282, 0.0
        %2105 = vadd.xlane.f32.xlu0 %v2104
        %v2106 = vpop.xlane.xlu0 %2105
        %v2107 = vsel %vm1387, %v1283, 0.0
        %2108 = vadd.xlane.f32.xlu0 %v2107
        %v2109 = vpop.xlane.xlu0 %2108
        %v2110 = vsel %vm1387, %v1284, 0.0
        %2111 = vadd.xlane.f32.xlu0 %v2110
        %v2112 = vpop.xlane.xlu0 %2111
        %v2113 = vsel %vm1387, %v1285, 0.0
        %2114 = vadd.xlane.f32.xlu0 %v2113
        %v2115 = vpop.xlane.xlu0 %2114
        %v2116 = vsel %vm1387, %v1286, 0.0
        %2117 = vadd.xlane.f32.xlu0 %v2116
        %v2118 = vpop.xlane.xlu0 %2117
        %v2119 = vsel %vm1387, %v1287, 0.0
        %2120 = vadd.xlane.f32.xlu0 %v2119
        %v2121 = vpop.xlane.xlu0 %2120
        %v2122 = vsel %vm1387, %v1288, 0.0
        %2123 = vadd.xlane.f32.xlu0 %v2122
        %v2124 = vpop.xlane.xlu0 %2123
        %v2125 = vsel %vm1387, %v1289, 0.0
        %2126 = vadd.xlane.f32.xlu0 %v2125
        %v2127 = vpop.xlane.xlu0 %2126
        %v2128 = vsel %vm1387, %v1290, 0.0
        %2129 = vadd.xlane.f32.xlu0 %v2128
        %v2130 = vpop.xlane.xlu0 %2129
        %v2131 = vsel %vm1387, %v1291, 0.0
        %2132 = vadd.xlane.f32.xlu0 %v2131
        %v2133 = vpop.xlane.xlu0 %2132
        %v2134 = vsel %vm1387, %v1292, 0.0
        %2135 = vadd.xlane.f32.xlu0 %v2134
        %v2136 = vpop.xlane.xlu0 %2135
        %v2137 = vsel %vm1387, %v1293, 0.0
        %2138 = vadd.xlane.f32.xlu0 %v2137
        %v2139 = vpop.xlane.xlu0 %2138
        %v2140 = vsel %vm1387, %v1294, 0.0
        %2141 = vadd.xlane.f32.xlu0 %v2140
        %v2142 = vpop.xlane.xlu0 %2141
        %v2143 = vsel %vm1387, %v1295, 0.0
        %2144 = vadd.xlane.f32.xlu0 %v2143
        %v2145 = vpop.xlane.xlu0 %2144
        %v2146 = vsel %vm1387, %v1296, 0.0
        %2147 = vadd.xlane.f32.xlu0 %v2146
        %v2148 = vpop.xlane.xlu0 %2147
        %v2149 = vsel %vm1387, %v1297, 0.0
        %2150 = vadd.xlane.f32.xlu0 %v2149
        %v2151 = vpop.xlane.xlu0 %2150
        %v2152 = vsel %vm1387, %v1298, 0.0
        %2153 = vadd.xlane.f32.xlu0 %v2152
        %v2154 = vpop.xlane.xlu0 %2153
        %v2155 = vsel %vm1387, %v1299, 0.0
        %2156 = vadd.xlane.f32.xlu0 %v2155
        %v2157 = vpop.xlane.xlu0 %2156
        %v2158 = vsel %vm1387, %v1300, 0.0
        %2159 = vadd.xlane.f32.xlu0 %v2158
        %v2160 = vpop.xlane.xlu0 %2159
        %v2161 = vsel %vm1387, %v1301, 0.0
        %2162 = vadd.xlane.f32.xlu0 %v2161
        %v2163 = vpop.xlane.xlu0 %2162
        %v2164 = vsel %vm1387, %v1302, 0.0
        %2165 = vadd.xlane.f32.xlu0 %v2164
        %v2166 = vpop.xlane.xlu0 %2165
        %vm2167 = vcmp.le.f32.partialorder %v2073, 0.5
        %vm2168 = vcmp.le.f32.partialorder %v2076, 0.5
        %vm2169 = vcmp.le.f32.partialorder %v2079, 0.5
        %vm2170 = vcmp.le.f32.partialorder %v2082, 0.5
        %vm2171 = vcmp.le.f32.partialorder %v2085, 0.5
        %vm2172 = vcmp.le.f32.partialorder %v2088, 0.5
        %vm2173 = vcmp.le.f32.partialorder %v2091, 0.5
        %vm2174 = vcmp.le.f32.partialorder %v2094, 0.5
        %vm2175 = vcmp.le.f32.partialorder %v2097, 0.5
        %vm2176 = vcmp.le.f32.partialorder %v2100, 0.5
        %vm2177 = vcmp.le.f32.partialorder %v2103, 0.5
        %vm2178 = vcmp.le.f32.partialorder %v2106, 0.5
        %vm2179 = vcmp.le.f32.partialorder %v2109, 0.5
        %vm2180 = vcmp.le.f32.partialorder %v2112, 0.5
        %vm2181 = vcmp.le.f32.partialorder %v2115, 0.5
        %vm2182 = vcmp.le.f32.partialorder %v2118, 0.5
        %vm2183 = vcmp.le.f32.partialorder %v2121, 0.5
        %vm2184 = vcmp.le.f32.partialorder %v2124, 0.5
        %vm2185 = vcmp.le.f32.partialorder %v2127, 0.5
        %vm2186 = vcmp.le.f32.partialorder %v2130, 0.5
        %vm2187 = vcmp.le.f32.partialorder %v2133, 0.5
        %vm2188 = vcmp.le.f32.partialorder %v2136, 0.5
        %vm2189 = vcmp.le.f32.partialorder %v2139, 0.5
        %vm2190 = vcmp.le.f32.partialorder %v2142, 0.5
        %vm2191 = vcmp.le.f32.partialorder %v2145, 0.5
        %vm2192 = vcmp.le.f32.partialorder %v2148, 0.5
        %vm2193 = vcmp.le.f32.partialorder %v2151, 0.5
        %vm2194 = vcmp.le.f32.partialorder %v2154, 0.5
        %vm2195 = vcmp.le.f32.partialorder %v2157, 0.5
        %vm2196 = vcmp.le.f32.partialorder %v2160, 0.5
        %vm2197 = vcmp.le.f32.partialorder %v2163, 0.5
        %vm2198 = vcmp.le.f32.partialorder %v2166, 0.5
        %vm2199 = vcmp.gt.f32.partialorder %v1271, 0.5
        %vm2200 = vcmp.gt.f32.partialorder %v1272, 0.5
        %vm2201 = vcmp.gt.f32.partialorder %v1273, 0.5
        %vm2202 = vcmp.gt.f32.partialorder %v1274, 0.5
        %vm2203 = vcmp.gt.f32.partialorder %v1275, 0.5
        %vm2204 = vcmp.gt.f32.partialorder %v1276, 0.5
        %vm2205 = vcmp.gt.f32.partialorder %v1277, 0.5
        %vm2206 = vcmp.gt.f32.partialorder %v1278, 0.5
        %vm2207 = vcmp.gt.f32.partialorder %v1279, 0.5
        %vm2208 = vcmp.gt.f32.partialorder %v1280, 0.5
        %vm2209 = vcmp.gt.f32.partialorder %v1281, 0.5
        %vm2210 = vcmp.gt.f32.partialorder %v1282, 0.5
        %vm2211 = vcmp.gt.f32.partialorder %v1283, 0.5
        %vm2212 = vcmp.gt.f32.partialorder %v1284, 0.5
        %vm2213 = vcmp.gt.f32.partialorder %v1285, 0.5
        %vm2214 = vcmp.gt.f32.partialorder %v1286, 0.5
        %vm2215 = vcmp.gt.f32.partialorder %v1287, 0.5
        %vm2216 = vcmp.gt.f32.partialorder %v1288, 0.5
        %vm2217 = vcmp.gt.f32.partialorder %v1289, 0.5
        %vm2218 = vcmp.gt.f32.partialorder %v1290, 0.5
        %vm2219 = vcmp.gt.f32.partialorder %v1291, 0.5
        %vm2220 = vcmp.gt.f32.partialorder %v1292, 0.5
        %vm2221 = vcmp.gt.f32.partialorder %v1293, 0.5
        %vm2222 = vcmp.gt.f32.partialorder %v1294, 0.5
        %vm2223 = vcmp.gt.f32.partialorder %v1295, 0.5
        %vm2224 = vcmp.gt.f32.partialorder %v1296, 0.5
        %vm2225 = vcmp.gt.f32.partialorder %v1297, 0.5
        %vm2226 = vcmp.gt.f32.partialorder %v1298, 0.5
        %vm2227 = vcmp.gt.f32.partialorder %v1299, 0.5
        %vm2228 = vcmp.gt.f32.partialorder %v1300, 0.5
        %vm2229 = vcmp.gt.f32.partialorder %v1301, 0.5
        %vm2230 = vcmp.gt.f32.partialorder %v1302, 0.5
        %2231 = vst [vmem:[#allocation2] sm:$0xff] 0.0
        %2232 = vst [vmem:[#allocation2 + $0x8] sm:$0xff] 0.0
        %2233 = vst [vmem:[#allocation2 + $0x10] sm:$0xff] 0.0
        %2234 = vst [vmem:[#allocation2 + $0x18] sm:$0xff] 0.0
        %v2235 = vld [vmem:[%s926] sm:$0x1]
        %v2236 = vld [vmem:[%s926 + $0x1] sm:$0x1]
        %v2237 = vld [vmem:[%s926 + $0x2] sm:$0x1]
        %v2238 = vld [vmem:[%s926 + $0x3] sm:$0x1]
        %v2240 = vperm.slane %v1053, 0
        %2246 = vst [vmem:[#allocation1] ss:$9 sm:$0xff] %v2235
        %s2247 = scalar_lea.vmem [#allocation1], 1
        %2248 = vst [vmem:[%s2247] ss:$9 sm:$0xff] %v2236
        %s2249 = scalar_lea.vmem [#allocation1], 2
        %2250 = vst [vmem:[%s2249] ss:$9 sm:$0xff] %v2237
        %s2251 = scalar_lea.vmem [#allocation1], 3
        %2252 = vst [vmem:[%s2251] ss:$9 sm:$0xff] %v2238
        %v2253 = vld [vmem:[#allocation1] sm:$0xff]
        %2255 = vmatpush.msra.mxu0 %v1052
        %2256 = vmatpush.msra.mxu0 %v1051
        %2257 = vmatpush.msra.mxu0 %v1050
        %2258 = vmatpush.msra.mxu0 %v1049
        %2259 = vmatpush.msra.mxu0 %v1048
        %2260 = vmatpush.msra.mxu0 %v1047
        %2261 = vmatpush.msra.mxu0 %v1046
        %2262 = vmatpush.msra.mxu0 %v1045
        %2263 = vmatpush.msra.mxu0 %v1044
        %2264 = vmatpush.msra.mxu0 %v1043
        %2265 = vmatpush.msra.mxu0 %v1042
        %2266 = vmatpush.msra.mxu0 %v1041
        %2267 = vmatpush.msra.mxu0 %v1040
        %2268 = vmatpush.msra.mxu0 %v1039
        %2269 = vmatpush.msra.mxu0 %v1038
        %2270 = vmatpush.msra.mxu0 %v1037
        %2271 = vmatmul.f32.gmra.mxu0 %v2253
        %v2272 = vpop.f32.mrf.mxu0
        %v2273 = vadd.f32 %v2240, %v2272
        %2274 = vdwg.mxu0
        %v2275 = vmax.f32 %v2273, 0.0
        %v2277 = vrot.slane %v2275, 1
        %v2278 = vrot.slane %v2275, 2
        %v2279 = vrot.slane %v2275, 3
        %2283 = vst [vmem:[#allocation2] sm:$0x1] %v2275
        %2284 = vst [vmem:[#allocation2 + $0x8] sm:$0x1] %v2277
        %2285 = vst [vmem:[#allocation2 + $0x10] sm:$0x1] %v2278
        %2286 = vst [vmem:[#allocation2 + $0x18] sm:$0x1] %v2279
        %v2287 = vpack.c.bf16 %v2009, %v2007
        %v2288 = vpack.c.bf16 %v2013, %v2011
        %v2289 = vpack.c.bf16 %v2017, %v2015
        %v2290 = vpack.c.bf16 %v2021, %v2019
        %v2291 = vpack.c.bf16 %v2025, %v2023
        %v2292 = vpack.c.bf16 %v2029, %v2027
        %v2293 = vpack.c.bf16 %v2033, %v2031
        %v2294 = vpack.c.bf16 %v2037, %v2035
        %v2295 = vpack.c.bf16 %v2041, %v2039
        %v2296 = vpack.c.bf16 %v2045, %v2043
        %v2297 = vpack.c.bf16 %v2049, %v2047
        %v2298 = vpack.c.bf16 %v2053, %v2051
        %v2299 = vpack.c.bf16 %v2057, %v2055
        %v2300 = vpack.c.bf16 %v2061, %v2059
        %v2301 = vpack.c.bf16 %v2065, %v2063
        %v2302 = vpack.c.bf16 %v2069, %v2067
        %v2304 = vperm.slane %v965, 0
        %v2314 = vunpack.c.l.b16 %v933
        %v2315 = vunpack.c.l.b16 %v934
        %v2316 = vunpack.c.l.b16 %v935
        %v2317 = vunpack.c.l.b16 %v936
        %v2318 = vunpack.c.l.b16 %v937
        %v2319 = vunpack.c.l.b16 %v938
        %v2320 = vunpack.c.l.b16 %v939
        %v2321 = vunpack.c.l.b16 %v940
        %v2322 = vpack.c.b16 %v2315, %v2314
        %v2323 = vpack.c.b16 %v2317, %v2316
        %v2324 = vpack.c.b16 %v2319, %v2318
        %v2325 = vpack.c.b16 %v2321, %v2320
        %vm2330 = vcmask 523264
        %v2332 = vsel %vm2330, %v2287, 0
        %v2335 = vsel %vm2330, %v2288, 0
        %v2338 = vsel %vm2330, %v2289, 0
        %v2341 = vsel %vm2330, %v2290, 0
        %v2344 = vsel %vm2330, %v2291, 0
        %v2347 = vsel %vm2330, %v2292, 0
        %v2350 = vsel %vm2330, %v2293, 0
        %v2353 = vsel %vm2330, %v2294, 0
        %v2356 = vsel %vm2330, %v2295, 0
        %v2359 = vsel %vm2330, %v2296, 0
        %v2362 = vsel %vm2330, %v2297, 0
        %v2365 = vsel %vm2330, %v2298, 0
        %v2368 = vsel %vm2330, %v2299, 0
        %v2371 = vsel %vm2330, %v2300, 0
        %v2374 = vsel %vm2330, %v2301, 0
        %v2377 = vsel %vm2330, %v2302, 0
        %2379 = vmatpush.bf16.msra.mxu0 0
        %2380 = vmatpush.bf16.msra.mxu0 0
        %2381 = vmatpush.bf16.msra.mxu0 0
        %2382 = vmatpush.bf16.msra.mxu0 0
        %2383 = vmatpush.bf16.msra.mxu0 %v2325
        %2384 = vmatpush.bf16.msra.mxu0 %v2324
        %2385 = vmatpush.bf16.msra.mxu0 %v2323
        %2386 = vmatpush.bf16.msra.mxu0 %v2322
        %2387 = vmatmul.bf16.gmra.mxu0 %v2332
        %v2388 = vpop.f32.mrf.mxu0
        %v2389 = vadd.f32 %v2304, %v2388
        %v2390 = vpop.f32.mrf.mxu0
        %v2391 = vadd.f32 %v2304, %v2390
        %2392 = vmatmul.bf16.gmra.mxu0 %v2335
        %v2393 = vpop.f32.mrf.mxu0
        %v2394 = vadd.f32 %v2304, %v2393
        %v2395 = vpop.f32.mrf.mxu0
        %v2396 = vadd.f32 %v2304, %v2395
        %2397 = vmatmul.bf16.gmra.mxu0 %v2338
        %v2398 = vpop.f32.mrf.mxu0
        %v2399 = vadd.f32 %v2304, %v2398
        %v2400 = vpop.f32.mrf.mxu0
        %v2401 = vadd.f32 %v2304, %v2400
        %2402 = vmatmul.bf16.gmra.mxu0 %v2341
        %v2403 = vpop.f32.mrf.mxu0
        %v2404 = vadd.f32 %v2304, %v2403
        %v2405 = vpop.f32.mrf.mxu0
        %v2406 = vadd.f32 %v2304, %v2405
        %2407 = vmatmul.bf16.gmra.mxu0 %v2344
        %v2408 = vpop.f32.mrf.mxu0
        %v2409 = vadd.f32 %v2304, %v2408
        %v2410 = vpop.f32.mrf.mxu0
        %v2411 = vadd.f32 %v2304, %v2410
        %2412 = vmatmul.bf16.gmra.mxu0 %v2347
        %v2413 = vpop.f32.mrf.mxu0
        %v2414 = vadd.f32 %v2304, %v2413
        %v2415 = vpop.f32.mrf.mxu0
        %v2416 = vadd.f32 %v2304, %v2415
        %2417 = vmatmul.bf16.gmra.mxu0 %v2350
        %v2418 = vpop.f32.mrf.mxu0
        %v2419 = vadd.f32 %v2304, %v2418
        %v2420 = vpop.f32.mrf.mxu0
        %v2421 = vadd.f32 %v2304, %v2420
        %2422 = vmatmul.bf16.gmra.mxu0 %v2353
        %v2423 = vpop.f32.mrf.mxu0
        %v2424 = vadd.f32 %v2304, %v2423
        %v2425 = vpop.f32.mrf.mxu0
        %v2426 = vadd.f32 %v2304, %v2425
        %2427 = vmatmul.bf16.gmra.mxu0 %v2356
        %v2428 = vpop.f32.mrf.mxu0
        %v2429 = vadd.f32 %v2304, %v2428
        %v2430 = vpop.f32.mrf.mxu0
        %v2431 = vadd.f32 %v2304, %v2430
        %2432 = vmatmul.bf16.gmra.mxu0 %v2359
        %v2433 = vpop.f32.mrf.mxu0
        %v2434 = vadd.f32 %v2304, %v2433
        %v2435 = vpop.f32.mrf.mxu0
        %v2436 = vadd.f32 %v2304, %v2435
        %2437 = vmatmul.bf16.gmra.mxu0 %v2362
        %v2438 = vpop.f32.mrf.mxu0
        %v2439 = vadd.f32 %v2304, %v2438
        %v2440 = vpop.f32.mrf.mxu0
        %v2441 = vadd.f32 %v2304, %v2440
        %2442 = vmatmul.bf16.gmra.mxu0 %v2365
        %v2443 = vpop.f32.mrf.mxu0
        %v2444 = vadd.f32 %v2304, %v2443
        %v2445 = vpop.f32.mrf.mxu0
        %v2446 = vadd.f32 %v2304, %v2445
        %2447 = vmatmul.bf16.gmra.mxu0 %v2368
        %v2448 = vpop.f32.mrf.mxu0
        %v2449 = vadd.f32 %v2304, %v2448
        %v2450 = vpop.f32.mrf.mxu0
        %v2451 = vadd.f32 %v2304, %v2450
        %2452 = vmatmul.bf16.gmra.mxu0 %v2371
        %v2453 = vpop.f32.mrf.mxu0
        %v2454 = vadd.f32 %v2304, %v2453
        %v2455 = vpop.f32.mrf.mxu0
        %v2456 = vadd.f32 %v2304, %v2455
        %2457 = vmatmul.bf16.gmra.mxu0 %v2374
        %v2458 = vpop.f32.mrf.mxu0
        %v2459 = vadd.f32 %v2304, %v2458
        %v2460 = vpop.f32.mrf.mxu0
        %v2461 = vadd.f32 %v2304, %v2460
        %2462 = vmatmul.bf16.gmra.mxu0 %v2377
        %v2463 = vpop.f32.mrf.mxu0
        %v2464 = vadd.f32 %v2304, %v2463
        %v2465 = vpop.f32.mrf.mxu0
        %v2466 = vadd.f32 %v2304, %v2465
        %2467 = vdwg.mxu0
        %v2468 = vmax.f32 %v2389, 0.0
        %v2469 = vmax.f32 %v2391, 0.0
        %v2470 = vmax.f32 %v2394, 0.0
        %v2471 = vmax.f32 %v2396, 0.0
        %v2472 = vmax.f32 %v2399, 0.0
        %v2473 = vmax.f32 %v2401, 0.0
        %v2474 = vmax.f32 %v2404, 0.0
        %v2475 = vmax.f32 %v2406, 0.0
        %v2476 = vmax.f32 %v2409, 0.0
        %v2477 = vmax.f32 %v2411, 0.0
        %v2478 = vmax.f32 %v2414, 0.0
        %v2479 = vmax.f32 %v2416, 0.0
        %v2480 = vmax.f32 %v2419, 0.0
        %v2481 = vmax.f32 %v2421, 0.0
        %v2482 = vmax.f32 %v2424, 0.0
        %v2483 = vmax.f32 %v2426, 0.0
        %v2484 = vmax.f32 %v2429, 0.0
        %v2485 = vmax.f32 %v2431, 0.0
        %v2486 = vmax.f32 %v2434, 0.0
        %v2487 = vmax.f32 %v2436, 0.0
        %v2488 = vmax.f32 %v2439, 0.0
        %v2489 = vmax.f32 %v2441, 0.0
        %v2490 = vmax.f32 %v2444, 0.0
        %v2491 = vmax.f32 %v2446, 0.0
        %v2492 = vmax.f32 %v2449, 0.0
        %v2493 = vmax.f32 %v2451, 0.0
        %v2494 = vmax.f32 %v2454, 0.0
        %v2495 = vmax.f32 %v2456, 0.0
        %v2496 = vmax.f32 %v2459, 0.0
        %v2497 = vmax.f32 %v2461, 0.0
        %v2498 = vmax.f32 %v2464, 0.0
        %v2499 = vmax.f32 %v2466, 0.0
        %v2500 = vpack.c.bf16 %v2469, %v2468
        %v2501 = vpack.c.bf16 %v2471, %v2470
        %v2502 = vpack.c.bf16 %v2473, %v2472
        %v2503 = vpack.c.bf16 %v2475, %v2474
        %v2504 = vpack.c.bf16 %v2477, %v2476
        %v2505 = vpack.c.bf16 %v2479, %v2478
        %v2506 = vpack.c.bf16 %v2481, %v2480
        %v2507 = vpack.c.bf16 %v2483, %v2482
        %v2508 = vpack.c.bf16 %v2485, %v2484
        %v2509 = vpack.c.bf16 %v2487, %v2486
        %v2510 = vpack.c.bf16 %v2489, %v2488
        %v2511 = vpack.c.bf16 %v2491, %v2490
        %v2512 = vpack.c.bf16 %v2493, %v2492
        %v2513 = vpack.c.bf16 %v2495, %v2494
        %v2514 = vpack.c.bf16 %v2497, %v2496
        %v2515 = vpack.c.bf16 %v2499, %v2498
        %v2517 = vperm.slane %v1033, 0
        %v2535 = vunpack.c.l.b16 %v969
        %v2536 = vunpack.c.l.b16 %v970
        %v2537 = vunpack.c.l.b16 %v971
        %v2538 = vunpack.c.l.b16 %v972
        %v2539 = vunpack.c.l.b16 %v973
        %v2540 = vunpack.c.l.b16 %v974
        %v2541 = vunpack.c.l.b16 %v975
        %v2542 = vunpack.c.l.b16 %v976
        %v2543 = vunpack.c.l.b16 %v977
        %v2544 = vunpack.c.l.b16 %v978
        %v2545 = vunpack.c.l.b16 %v979
        %v2546 = vunpack.c.l.b16 %v980
        %v2547 = vunpack.c.l.b16 %v981
        %v2548 = vunpack.c.l.b16 %v982
        %v2549 = vunpack.c.l.b16 %v983
        %v2550 = vunpack.c.l.b16 %v984
        %v2551 = vpack.c.b16 %v2536, %v2535
        %v2552 = vpack.c.b16 %v2538, %v2537
        %v2553 = vpack.c.b16 %v2540, %v2539
        %v2554 = vpack.c.b16 %v2542, %v2541
        %v2555 = vpack.c.b16 %v2544, %v2543
        %v2556 = vpack.c.b16 %v2546, %v2545
        %v2557 = vpack.c.b16 %v2548, %v2547
        %v2558 = vpack.c.b16 %v2550, %v2549
        %2567 = vmatpush.bf16.msra.mxu0 %v2558
        %2568 = vmatpush.bf16.msra.mxu0 %v2557
        %2569 = vmatpush.bf16.msra.mxu0 %v2556
        %2570 = vmatpush.bf16.msra.mxu0 %v2555
        %2571 = vmatpush.bf16.msra.mxu0 %v2554
        %2572 = vmatpush.bf16.msra.mxu0 %v2553
        %2573 = vmatpush.bf16.msra.mxu0 %v2552
        %2574 = vmatpush.bf16.msra.mxu0 %v2551
        %2575 = vmatmul.bf16.gmra.mxu0 %v2500
        %v2576 = vpop.f32.mrf.mxu0
        %v2577 = vadd.f32 %v2517, %v2576
        %v2578 = vpop.f32.mrf.mxu0
        %v2579 = vadd.f32 %v2517, %v2578
        %2580 = vmatmul.bf16.gmra.mxu0 %v2501
        %v2581 = vpop.f32.mrf.mxu0
        %v2582 = vadd.f32 %v2517, %v2581
        %v2583 = vpop.f32.mrf.mxu0
        %v2584 = vadd.f32 %v2517, %v2583
        %2585 = vmatmul.bf16.gmra.mxu0 %v2502
        %v2586 = vpop.f32.mrf.mxu0
        %v2587 = vadd.f32 %v2517, %v2586
        %v2588 = vpop.f32.mrf.mxu0
        %v2589 = vadd.f32 %v2517, %v2588
        %2590 = vmatmul.bf16.gmra.mxu0 %v2503
        %v2591 = vpop.f32.mrf.mxu0
        %v2592 = vadd.f32 %v2517, %v2591
        %v2593 = vpop.f32.mrf.mxu0
        %v2594 = vadd.f32 %v2517, %v2593
        %2595 = vmatmul.bf16.gmra.mxu0 %v2504
        %v2596 = vpop.f32.mrf.mxu0
        %v2597 = vadd.f32 %v2517, %v2596
        %v2598 = vpop.f32.mrf.mxu0
        %v2599 = vadd.f32 %v2517, %v2598
        %2600 = vmatmul.bf16.gmra.mxu0 %v2505
        %v2601 = vpop.f32.mrf.mxu0
        %v2602 = vadd.f32 %v2517, %v2601
        %v2603 = vpop.f32.mrf.mxu0
        %v2604 = vadd.f32 %v2517, %v2603
        %2605 = vmatmul.bf16.gmra.mxu0 %v2506
        %v2606 = vpop.f32.mrf.mxu0
        %v2607 = vadd.f32 %v2517, %v2606
        %v2608 = vpop.f32.mrf.mxu0
        %v2609 = vadd.f32 %v2517, %v2608
        %2610 = vmatmul.bf16.gmra.mxu0 %v2507
        %v2611 = vpop.f32.mrf.mxu0
        %v2612 = vadd.f32 %v2517, %v2611
        %v2613 = vpop.f32.mrf.mxu0
        %v2614 = vadd.f32 %v2517, %v2613
        %2615 = vmatmul.bf16.gmra.mxu0 %v2508
        %v2616 = vpop.f32.mrf.mxu0
        %v2617 = vadd.f32 %v2517, %v2616
        %v2618 = vpop.f32.mrf.mxu0
        %v2619 = vadd.f32 %v2517, %v2618
        %2620 = vmatmul.bf16.gmra.mxu0 %v2509
        %v2621 = vpop.f32.mrf.mxu0
        %v2622 = vadd.f32 %v2517, %v2621
        %v2623 = vpop.f32.mrf.mxu0
        %v2624 = vadd.f32 %v2517, %v2623
        %2625 = vmatmul.bf16.gmra.mxu0 %v2510
        %v2626 = vpop.f32.mrf.mxu0
        %v2627 = vadd.f32 %v2517, %v2626
        %v2628 = vpop.f32.mrf.mxu0
        %v2629 = vadd.f32 %v2517, %v2628
        %2630 = vmatmul.bf16.gmra.mxu0 %v2511
        %v2631 = vpop.f32.mrf.mxu0
        %v2632 = vadd.f32 %v2517, %v2631
        %v2633 = vpop.f32.mrf.mxu0
        %v2634 = vadd.f32 %v2517, %v2633
        %2635 = vmatmul.bf16.gmra.mxu0 %v2512
        %v2636 = vpop.f32.mrf.mxu0
        %v2637 = vadd.f32 %v2517, %v2636
        %v2638 = vpop.f32.mrf.mxu0
        %v2639 = vadd.f32 %v2517, %v2638
        %2640 = vmatmul.bf16.gmra.mxu0 %v2513
        %v2641 = vpop.f32.mrf.mxu0
        %v2642 = vadd.f32 %v2517, %v2641
        %v2643 = vpop.f32.mrf.mxu0
        %v2644 = vadd.f32 %v2517, %v2643
        %2645 = vmatmul.bf16.gmra.mxu0 %v2514
        %v2646 = vpop.f32.mrf.mxu0
        %v2647 = vadd.f32 %v2517, %v2646
        %v2648 = vpop.f32.mrf.mxu0
        %v2649 = vadd.f32 %v2517, %v2648
        %2650 = vmatmul.bf16.gmra.mxu0 %v2515
        %v2651 = vpop.f32.mrf.mxu0
        %v2652 = vadd.f32 %v2517, %v2651
        %v2653 = vpop.f32.mrf.mxu0
        %v2654 = vadd.f32 %v2517, %v2653
        %2655 = vdwg.mxu0
        %v2656 = vsel %vm2167, 1, 0
        %v2657 = vsel %vm2168, 1, 0
        %v2658 = vsel %vm2169, 1, 0
        %v2659 = vsel %vm2170, 1, 0
        %v2660 = vsel %vm2171, 1, 0
        %v2661 = vsel %vm2172, 1, 0
        %v2662 = vsel %vm2173, 1, 0
        %v2663 = vsel %vm2174, 1, 0
        %v2664 = vsel %vm2175, 1, 0
        %v2665 = vsel %vm2176, 1, 0
        %v2666 = vsel %vm2177, 1, 0
        %v2667 = vsel %vm2178, 1, 0
        %v2668 = vsel %vm2179, 1, 0
        %v2669 = vsel %vm2180, 1, 0
        %v2670 = vsel %vm2181, 1, 0
        %v2671 = vsel %vm2182, 1, 0
        %v2672 = vsel %vm2183, 1, 0
        %v2673 = vsel %vm2184, 1, 0
        %v2674 = vsel %vm2185, 1, 0
        %v2675 = vsel %vm2186, 1, 0
        %v2676 = vsel %vm2187, 1, 0
        %v2677 = vsel %vm2188, 1, 0
        %v2678 = vsel %vm2189, 1, 0
        %v2679 = vsel %vm2190, 1, 0
        %v2680 = vsel %vm2191, 1, 0
        %v2681 = vsel %vm2192, 1, 0
        %v2682 = vsel %vm2193, 1, 0
        %v2683 = vsel %vm2194, 1, 0
        %v2684 = vsel %vm2195, 1, 0
        %v2685 = vsel %vm2196, 1, 0
        %v2686 = vsel %vm2197, 1, 0
        %v2687 = vsel %vm2198, 1, 0
        %vm2688 = vcmp.eq.s32.totalorder %v2656, 1
        %vm2689 = vcmp.eq.s32.totalorder %v2657, 1
        %vm2690 = vcmp.eq.s32.totalorder %v2658, 1
        %vm2691 = vcmp.eq.s32.totalorder %v2659, 1
        %vm2692 = vcmp.eq.s32.totalorder %v2660, 1
        %vm2693 = vcmp.eq.s32.totalorder %v2661, 1
        %vm2694 = vcmp.eq.s32.totalorder %v2662, 1
        %vm2695 = vcmp.eq.s32.totalorder %v2663, 1
        %vm2696 = vcmp.eq.s32.totalorder %v2664, 1
        %vm2697 = vcmp.eq.s32.totalorder %v2665, 1
        %vm2698 = vcmp.eq.s32.totalorder %v2666, 1
        %vm2699 = vcmp.eq.s32.totalorder %v2667, 1
        %vm2700 = vcmp.eq.s32.totalorder %v2668, 1
        %vm2701 = vcmp.eq.s32.totalorder %v2669, 1
        %vm2702 = vcmp.eq.s32.totalorder %v2670, 1
        %vm2703 = vcmp.eq.s32.totalorder %v2671, 1
        %vm2704 = vcmp.eq.s32.totalorder %v2672, 1
        %vm2705 = vcmp.eq.s32.totalorder %v2673, 1
        %vm2706 = vcmp.eq.s32.totalorder %v2674, 1
        %vm2707 = vcmp.eq.s32.totalorder %v2675, 1
        %vm2708 = vcmp.eq.s32.totalorder %v2676, 1
        %vm2709 = vcmp.eq.s32.totalorder %v2677, 1
        %vm2710 = vcmp.eq.s32.totalorder %v2678, 1
        %vm2711 = vcmp.eq.s32.totalorder %v2679, 1
        %vm2712 = vcmp.eq.s32.totalorder %v2680, 1
        %vm2713 = vcmp.eq.s32.totalorder %v2681, 1
        %vm2714 = vcmp.eq.s32.totalorder %v2682, 1
        %vm2715 = vcmp.eq.s32.totalorder %v2683, 1
        %vm2716 = vcmp.eq.s32.totalorder %v2684, 1
        %vm2717 = vcmp.eq.s32.totalorder %v2685, 1
        %vm2718 = vcmp.eq.s32.totalorder %v2686, 1
        %vm2719 = vcmp.eq.s32.totalorder %v2687, 1
        %v2720 = vsel %vm2688, %v2577, -1e+10
        %v2721 = vsel %vm2689, %v2579, -1e+10
        %v2722 = vsel %vm2690, %v2582, -1e+10
        %v2723 = vsel %vm2691, %v2584, -1e+10
        %v2724 = vsel %vm2692, %v2587, -1e+10
        %v2725 = vsel %vm2693, %v2589, -1e+10
        %v2726 = vsel %vm2694, %v2592, -1e+10
        %v2727 = vsel %vm2695, %v2594, -1e+10
        %v2728 = vsel %vm2696, %v2597, -1e+10
        %v2729 = vsel %vm2697, %v2599, -1e+10
        %v2730 = vsel %vm2698, %v2602, -1e+10
        %v2731 = vsel %vm2699, %v2604, -1e+10
        %v2732 = vsel %vm2700, %v2607, -1e+10
        %v2733 = vsel %vm2701, %v2609, -1e+10
        %v2734 = vsel %vm2702, %v2612, -1e+10
        %v2735 = vsel %vm2703, %v2614, -1e+10
        %v2736 = vsel %vm2704, %v2617, -1e+10
        %v2737 = vsel %vm2705, %v2619, -1e+10
        %v2738 = vsel %vm2706, %v2622, -1e+10
        %v2739 = vsel %vm2707, %v2624, -1e+10
        %v2740 = vsel %vm2708, %v2627, -1e+10
        %v2741 = vsel %vm2709, %v2629, -1e+10
        %v2742 = vsel %vm2710, %v2632, -1e+10
        %v2743 = vsel %vm2711, %v2634, -1e+10
        %v2744 = vsel %vm2712, %v2637, -1e+10
        %v2745 = vsel %vm2713, %v2639, -1e+10
        %v2746 = vsel %vm2714, %v2642, -1e+10
        %v2747 = vsel %vm2715, %v2644, -1e+10
        %v2748 = vsel %vm2716, %v2647, -1e+10
        %v2749 = vsel %vm2717, %v2649, -1e+10
        %v2750 = vsel %vm2718, %v2652, -1e+10
        %v2751 = vsel %vm2719, %v2654, -1e+10
        %v2752 = vmax.f32 %v2720, %v2721
        %v2753 = vmax.f32 %v2752, %v2722
        %v2754 = vmax.f32 %v2753, %v2723
        %v2755 = vmax.f32 %v2754, %v2724
        %v2756 = vmax.f32 %v2755, %v2725
        %v2757 = vmax.f32 %v2756, %v2726
        %v2758 = vmax.f32 %v2757, %v2727
        %v2759 = vrot.slane %v2758, 4
        %v2760 = vmax.f32 %v2758, %v2759
        %v2761 = vrot.slane %v2760, 2
        %v2762 = vmax.f32 %v2760, %v2761
        %v2763 = vrot.slane %v2762, 1
        %v2764 = vmax.f32 %v2762, %v2763
        %v2765 = vmax.f32 %v2728, %v2729
        %v2766 = vmax.f32 %v2765, %v2730
        %v2767 = vmax.f32 %v2766, %v2731
        %v2768 = vmax.f32 %v2767, %v2732
        %v2769 = vmax.f32 %v2768, %v2733
        %v2770 = vmax.f32 %v2769, %v2734
        %v2771 = vmax.f32 %v2770, %v2735
        %v2772 = vrot.slane %v2771, 4
        %v2773 = vmax.f32 %v2771, %v2772
        %v2774 = vrot.slane %v2773, 2
        %v2775 = vmax.f32 %v2773, %v2774
        %v2776 = vrot.slane %v2775, 1
        %v2777 = vmax.f32 %v2775, %v2776
        %v2778 = vmax.f32 %v2736, %v2737
        %v2779 = vmax.f32 %v2778, %v2738
        %v2780 = vmax.f32 %v2779, %v2739
        %v2781 = vmax.f32 %v2780, %v2740
        %v2782 = vmax.f32 %v2781, %v2741
        %v2783 = vmax.f32 %v2782, %v2742
        %v2784 = vmax.f32 %v2783, %v2743
        %v2785 = vrot.slane %v2784, 4
        %v2786 = vmax.f32 %v2784, %v2785
        %v2787 = vrot.slane %v2786, 2
        %v2788 = vmax.f32 %v2786, %v2787
        %v2789 = vrot.slane %v2788, 1
        %v2790 = vmax.f32 %v2788, %v2789
        %v2791 = vmax.f32 %v2744, %v2745
        %v2792 = vmax.f32 %v2791, %v2746
        %v2793 = vmax.f32 %v2792, %v2747
        %v2794 = vmax.f32 %v2793, %v2748
        %v2795 = vmax.f32 %v2794, %v2749
        %v2796 = vmax.f32 %v2795, %v2750
        %v2797 = vmax.f32 %v2796, %v2751
        %v2798 = vrot.slane %v2797, 4
        %v2799 = vmax.f32 %v2797, %v2798
        %v2800 = vrot.slane %v2799, 2
        %v2801 = vmax.f32 %v2799, %v2800
        %v2802 = vrot.slane %v2801, 1
        %v2803 = vmax.f32 %v2801, %v2802
        %2804 = vst [vmem:[#allocation2 + $0x1] sm:$0x1] %v2764
        %2805 = vst [vmem:[#allocation2 + $0x9] sm:$0x1] %v2777
        %2806 = vst [vmem:[#allocation2 + $0x11] sm:$0x1] %v2790
        %2807 = vst [vmem:[#allocation2 + $0x19] sm:$0x1] %v2803
        %v2809 = vperm.slane %v966, 0
        %2827 = vrot.lane.b32.xlu0 %v2287, 64
        %v2828 = vpop.permute.xlu0 %2827
        %2829 = vrot.lane.b32.xlu0 %v2288, 64
        %v2830 = vpop.permute.xlu0 %2829
        %2831 = vrot.lane.b32.xlu0 %v2289, 64
        %v2832 = vpop.permute.xlu0 %2831
        %2833 = vrot.lane.b32.xlu0 %v2290, 64
        %v2834 = vpop.permute.xlu0 %2833
        %2835 = vrot.lane.b32.xlu0 %v2291, 64
        %v2836 = vpop.permute.xlu0 %2835
        %2837 = vrot.lane.b32.xlu0 %v2292, 64
        %v2838 = vpop.permute.xlu0 %2837
        %2839 = vrot.lane.b32.xlu0 %v2293, 64
        %v2840 = vpop.permute.xlu0 %2839
        %2841 = vrot.lane.b32.xlu0 %v2294, 64
        %v2842 = vpop.permute.xlu0 %2841
        %2843 = vrot.lane.b32.xlu0 %v2295, 64
        %v2844 = vpop.permute.xlu0 %2843
        %2845 = vrot.lane.b32.xlu0 %v2296, 64
        %v2846 = vpop.permute.xlu0 %2845
        %2847 = vrot.lane.b32.xlu0 %v2297, 64
        %v2848 = vpop.permute.xlu0 %2847
        %2849 = vrot.lane.b32.xlu0 %v2298, 64
        %v2850 = vpop.permute.xlu0 %2849
        %2851 = vrot.lane.b32.xlu0 %v2299, 64
        %v2852 = vpop.permute.xlu0 %2851
        %2853 = vrot.lane.b32.xlu0 %v2300, 64
        %v2854 = vpop.permute.xlu0 %2853
        %2855 = vrot.lane.b32.xlu0 %v2301, 64
        %v2856 = vpop.permute.xlu0 %2855
        %2857 = vrot.lane.b32.xlu0 %v2302, 64
        %v2858 = vpop.permute.xlu0 %2857
        %v2867 = vunpack.c.l.b16 %v941
        %v2868 = vunpack.c.l.b16 %v942
        %v2869 = vunpack.c.l.b16 %v943
        %v2870 = vunpack.c.l.b16 %v944
        %v2871 = vunpack.c.l.b16 %v945
        %v2872 = vunpack.c.l.b16 %v946
        %v2873 = vunpack.c.l.b16 %v947
        %v2874 = vunpack.c.l.b16 %v948
        %v2875 = vpack.c.b16 %v2868, %v2867
        %v2876 = vpack.c.b16 %v2870, %v2869
        %v2877 = vpack.c.b16 %v2872, %v2871
        %v2878 = vpack.c.b16 %v2874, %v2873
        %v2884 = vsel %vm2330, %v2828, 0
        %v2887 = vsel %vm2330, %v2830, 0
        %v2890 = vsel %vm2330, %v2832, 0
        %v2893 = vsel %vm2330, %v2834, 0
        %v2896 = vsel %vm2330, %v2836, 0
        %v2899 = vsel %vm2330, %v2838, 0
        %v2902 = vsel %vm2330, %v2840, 0
        %v2905 = vsel %vm2330, %v2842, 0
        %v2908 = vsel %vm2330, %v2844, 0
        %v2911 = vsel %vm2330, %v2846, 0
        %v2914 = vsel %vm2330, %v2848, 0
        %v2917 = vsel %vm2330, %v2850, 0
        %v2920 = vsel %vm2330, %v2852, 0
        %v2923 = vsel %vm2330, %v2854, 0
        %v2926 = vsel %vm2330, %v2856, 0
        %v2929 = vsel %vm2330, %v2858, 0
        %2931 = vmatpush.bf16.msra.mxu0 0
        %2932 = vmatpush.bf16.msra.mxu0 0
        %2933 = vmatpush.bf16.msra.mxu0 0
        %2934 = vmatpush.bf16.msra.mxu0 0
        %2935 = vmatpush.bf16.msra.mxu0 %v2878
        %2936 = vmatpush.bf16.msra.mxu0 %v2877
        %2937 = vmatpush.bf16.msra.mxu0 %v2876
        %2938 = vmatpush.bf16.msra.mxu0 %v2875
        %2939 = vmatmul.bf16.gmra.mxu0 %v2884
        %v2940 = vpop.f32.mrf.mxu0
        %v2941 = vadd.f32 %v2809, %v2940
        %v2942 = vpop.f32.mrf.mxu0
        %v2943 = vadd.f32 %v2809, %v2942
        %2944 = vmatmul.bf16.gmra.mxu0 %v2887
        %v2945 = vpop.f32.mrf.mxu0
        %v2946 = vadd.f32 %v2809, %v2945
        %v2947 = vpop.f32.mrf.mxu0
        %v2948 = vadd.f32 %v2809, %v2947
        %2949 = vmatmul.bf16.gmra.mxu0 %v2890
        %v2950 = vpop.f32.mrf.mxu0
        %v2951 = vadd.f32 %v2809, %v2950
        %v2952 = vpop.f32.mrf.mxu0
        %v2953 = vadd.f32 %v2809, %v2952
        %2954 = vmatmul.bf16.gmra.mxu0 %v2893
        %v2955 = vpop.f32.mrf.mxu0
        %v2956 = vadd.f32 %v2809, %v2955
        %v2957 = vpop.f32.mrf.mxu0
        %v2958 = vadd.f32 %v2809, %v2957
        %2959 = vmatmul.bf16.gmra.mxu0 %v2896
        %v2960 = vpop.f32.mrf.mxu0
        %v2961 = vadd.f32 %v2809, %v2960
        %v2962 = vpop.f32.mrf.mxu0
        %v2963 = vadd.f32 %v2809, %v2962
        %2964 = vmatmul.bf16.gmra.mxu0 %v2899
        %v2965 = vpop.f32.mrf.mxu0
        %v2966 = vadd.f32 %v2809, %v2965
        %v2967 = vpop.f32.mrf.mxu0
        %v2968 = vadd.f32 %v2809, %v2967
        %2969 = vmatmul.bf16.gmra.mxu0 %v2902
        %v2970 = vpop.f32.mrf.mxu0
        %v2971 = vadd.f32 %v2809, %v2970
        %v2972 = vpop.f32.mrf.mxu0
        %v2973 = vadd.f32 %v2809, %v2972
        %2974 = vmatmul.bf16.gmra.mxu0 %v2905
        %v2975 = vpop.f32.mrf.mxu0
        %v2976 = vadd.f32 %v2809, %v2975
        %v2977 = vpop.f32.mrf.mxu0
        %v2978 = vadd.f32 %v2809, %v2977
        %2979 = vmatmul.bf16.gmra.mxu0 %v2908
        %v2980 = vpop.f32.mrf.mxu0
        %v2981 = vadd.f32 %v2809, %v2980
        %v2982 = vpop.f32.mrf.mxu0
        %v2983 = vadd.f32 %v2809, %v2982
        %2984 = vmatmul.bf16.gmra.mxu0 %v2911
        %v2985 = vpop.f32.mrf.mxu0
        %v2986 = vadd.f32 %v2809, %v2985
        %v2987 = vpop.f32.mrf.mxu0
        %v2988 = vadd.f32 %v2809, %v2987
        %2989 = vmatmul.bf16.gmra.mxu0 %v2914
        %v2990 = vpop.f32.mrf.mxu0
        %v2991 = vadd.f32 %v2809, %v2990
        %v2992 = vpop.f32.mrf.mxu0
        %v2993 = vadd.f32 %v2809, %v2992
        %2994 = vmatmul.bf16.gmra.mxu0 %v2917
        %v2995 = vpop.f32.mrf.mxu0
        %v2996 = vadd.f32 %v2809, %v2995
        %v2997 = vpop.f32.mrf.mxu0
        %v2998 = vadd.f32 %v2809, %v2997
        %2999 = vmatmul.bf16.gmra.mxu0 %v2920
        %v3000 = vpop.f32.mrf.mxu0
        %v3001 = vadd.f32 %v2809, %v3000
        %v3002 = vpop.f32.mrf.mxu0
        %v3003 = vadd.f32 %v2809, %v3002
        %3004 = vmatmul.bf16.gmra.mxu0 %v2923
        %v3005 = vpop.f32.mrf.mxu0
        %v3006 = vadd.f32 %v2809, %v3005
        %v3007 = vpop.f32.mrf.mxu0
        %v3008 = vadd.f32 %v2809, %v3007
        %3009 = vmatmul.bf16.gmra.mxu0 %v2926
        %v3010 = vpop.f32.mrf.mxu0
        %v3011 = vadd.f32 %v2809, %v3010
        %v3012 = vpop.f32.mrf.mxu0
        %v3013 = vadd.f32 %v2809, %v3012
        %3014 = vmatmul.bf16.gmra.mxu0 %v2929
        %v3015 = vpop.f32.mrf.mxu0
        %v3016 = vadd.f32 %v2809, %v3015
        %v3017 = vpop.f32.mrf.mxu0
        %v3018 = vadd.f32 %v2809, %v3017
        %3019 = vdwg.mxu0
        %v3020 = vmax.f32 %v2941, 0.0
        %v3021 = vmax.f32 %v2943, 0.0
        %v3022 = vmax.f32 %v2946, 0.0
        %v3023 = vmax.f32 %v2948, 0.0
        %v3024 = vmax.f32 %v2951, 0.0
        %v3025 = vmax.f32 %v2953, 0.0
        %v3026 = vmax.f32 %v2956, 0.0
        %v3027 = vmax.f32 %v2958, 0.0
        %v3028 = vmax.f32 %v2961, 0.0
        %v3029 = vmax.f32 %v2963, 0.0
        %v3030 = vmax.f32 %v2966, 0.0
        %v3031 = vmax.f32 %v2968, 0.0
        %v3032 = vmax.f32 %v2971, 0.0
        %v3033 = vmax.f32 %v2973, 0.0
        %v3034 = vmax.f32 %v2976, 0.0
        %v3035 = vmax.f32 %v2978, 0.0
        %v3036 = vmax.f32 %v2981, 0.0
        %v3037 = vmax.f32 %v2983, 0.0
        %v3038 = vmax.f32 %v2986, 0.0
        %v3039 = vmax.f32 %v2988, 0.0
        %v3040 = vmax.f32 %v2991, 0.0
        %v3041 = vmax.f32 %v2993, 0.0
        %v3042 = vmax.f32 %v2996, 0.0
        %v3043 = vmax.f32 %v2998, 0.0
        %v3044 = vmax.f32 %v3001, 0.0
        %v3045 = vmax.f32 %v3003, 0.0
        %v3046 = vmax.f32 %v3006, 0.0
        %v3047 = vmax.f32 %v3008, 0.0
        %v3048 = vmax.f32 %v3011, 0.0
        %v3049 = vmax.f32 %v3013, 0.0
        %v3050 = vmax.f32 %v3016, 0.0
        %v3051 = vmax.f32 %v3018, 0.0
        %v3052 = vpack.c.bf16 %v3021, %v3020
        %v3053 = vpack.c.bf16 %v3023, %v3022
        %v3054 = vpack.c.bf16 %v3025, %v3024
        %v3055 = vpack.c.bf16 %v3027, %v3026
        %v3056 = vpack.c.bf16 %v3029, %v3028
        %v3057 = vpack.c.bf16 %v3031, %v3030
        %v3058 = vpack.c.bf16 %v3033, %v3032
        %v3059 = vpack.c.bf16 %v3035, %v3034
        %v3060 = vpack.c.bf16 %v3037, %v3036
        %v3061 = vpack.c.bf16 %v3039, %v3038
        %v3062 = vpack.c.bf16 %v3041, %v3040
        %v3063 = vpack.c.bf16 %v3043, %v3042
        %v3064 = vpack.c.bf16 %v3045, %v3044
        %v3065 = vpack.c.bf16 %v3047, %v3046
        %v3066 = vpack.c.bf16 %v3049, %v3048
        %v3067 = vpack.c.bf16 %v3051, %v3050
        %v3069 = vperm.slane %v1034, 0
        %v3087 = vunpack.c.l.b16 %v985
        %v3088 = vunpack.c.l.b16 %v986
        %v3089 = vunpack.c.l.b16 %v987
        %v3090 = vunpack.c.l.b16 %v988
        %v3091 = vunpack.c.l.b16 %v989
        %v3092 = vunpack.c.l.b16 %v990
        %v3093 = vunpack.c.l.b16 %v991
        %v3094 = vunpack.c.l.b16 %v992
        %v3095 = vunpack.c.l.b16 %v993
        %v3096 = vunpack.c.l.b16 %v994
        %v3097 = vunpack.c.l.b16 %v995
        %v3098 = vunpack.c.l.b16 %v996
        %v3099 = vunpack.c.l.b16 %v997
        %v3100 = vunpack.c.l.b16 %v998
        %v3101 = vunpack.c.l.b16 %v999
        %v3102 = vunpack.c.l.b16 %v1000
        %v3103 = vpack.c.b16 %v3088, %v3087
        %v3104 = vpack.c.b16 %v3090, %v3089
        %v3105 = vpack.c.b16 %v3092, %v3091
        %v3106 = vpack.c.b16 %v3094, %v3093
        %v3107 = vpack.c.b16 %v3096, %v3095
        %v3108 = vpack.c.b16 %v3098, %v3097
        %v3109 = vpack.c.b16 %v3100, %v3099
        %v3110 = vpack.c.b16 %v3102, %v3101
        %3119 = vmatpush.bf16.msra.mxu0 %v3110
        %3120 = vmatpush.bf16.msra.mxu0 %v3109
        %3121 = vmatpush.bf16.msra.mxu0 %v3108
        %3122 = vmatpush.bf16.msra.mxu0 %v3107
        %3123 = vmatpush.bf16.msra.mxu0 %v3106
        %3124 = vmatpush.bf16.msra.mxu0 %v3105
        %3125 = vmatpush.bf16.msra.mxu0 %v3104
        %3126 = vmatpush.bf16.msra.mxu0 %v3103
        %3127 = vmatmul.bf16.gmra.mxu0 %v3052
        %v3128 = vpop.f32.mrf.mxu0
        %v3129 = vadd.f32 %v3069, %v3128
        %v3130 = vpop.f32.mrf.mxu0
        %v3131 = vadd.f32 %v3069, %v3130
        %3132 = vmatmul.bf16.gmra.mxu0 %v3053
        %v3133 = vpop.f32.mrf.mxu0
        %v3134 = vadd.f32 %v3069, %v3133
        %v3135 = vpop.f32.mrf.mxu0
        %v3136 = vadd.f32 %v3069, %v3135
        %3137 = vmatmul.bf16.gmra.mxu0 %v3054
        %v3138 = vpop.f32.mrf.mxu0
        %v3139 = vadd.f32 %v3069, %v3138
        %v3140 = vpop.f32.mrf.mxu0
        %v3141 = vadd.f32 %v3069, %v3140
        %3142 = vmatmul.bf16.gmra.mxu0 %v3055
        %v3143 = vpop.f32.mrf.mxu0
        %v3144 = vadd.f32 %v3069, %v3143
        %v3145 = vpop.f32.mrf.mxu0
        %v3146 = vadd.f32 %v3069, %v3145
        %3147 = vmatmul.bf16.gmra.mxu0 %v3056
        %v3148 = vpop.f32.mrf.mxu0
        %v3149 = vadd.f32 %v3069, %v3148
        %v3150 = vpop.f32.mrf.mxu0
        %v3151 = vadd.f32 %v3069, %v3150
        %3152 = vmatmul.bf16.gmra.mxu0 %v3057
        %v3153 = vpop.f32.mrf.mxu0
        %v3154 = vadd.f32 %v3069, %v3153
        %v3155 = vpop.f32.mrf.mxu0
        %v3156 = vadd.f32 %v3069, %v3155
        %3157 = vmatmul.bf16.gmra.mxu0 %v3058
        %v3158 = vpop.f32.mrf.mxu0
        %v3159 = vadd.f32 %v3069, %v3158
        %v3160 = vpop.f32.mrf.mxu0
        %v3161 = vadd.f32 %v3069, %v3160
        %3162 = vmatmul.bf16.gmra.mxu0 %v3059
        %v3163 = vpop.f32.mrf.mxu0
        %v3164 = vadd.f32 %v3069, %v3163
        %v3165 = vpop.f32.mrf.mxu0
        %v3166 = vadd.f32 %v3069, %v3165
        %3167 = vmatmul.bf16.gmra.mxu0 %v3060
        %v3168 = vpop.f32.mrf.mxu0
        %v3169 = vadd.f32 %v3069, %v3168
        %v3170 = vpop.f32.mrf.mxu0
        %v3171 = vadd.f32 %v3069, %v3170
        %3172 = vmatmul.bf16.gmra.mxu0 %v3061
        %v3173 = vpop.f32.mrf.mxu0
        %v3174 = vadd.f32 %v3069, %v3173
        %v3175 = vpop.f32.mrf.mxu0
        %v3176 = vadd.f32 %v3069, %v3175
        %3177 = vmatmul.bf16.gmra.mxu0 %v3062
        %v3178 = vpop.f32.mrf.mxu0
        %v3179 = vadd.f32 %v3069, %v3178
        %v3180 = vpop.f32.mrf.mxu0
        %v3181 = vadd.f32 %v3069, %v3180
        %3182 = vmatmul.bf16.gmra.mxu0 %v3063
        %v3183 = vpop.f32.mrf.mxu0
        %v3184 = vadd.f32 %v3069, %v3183
        %v3185 = vpop.f32.mrf.mxu0
        %v3186 = vadd.f32 %v3069, %v3185
        %3187 = vmatmul.bf16.gmra.mxu0 %v3064
        %v3188 = vpop.f32.mrf.mxu0
        %v3189 = vadd.f32 %v3069, %v3188
        %v3190 = vpop.f32.mrf.mxu0
        %v3191 = vadd.f32 %v3069, %v3190
        %3192 = vmatmul.bf16.gmra.mxu0 %v3065
        %v3193 = vpop.f32.mrf.mxu0
        %v3194 = vadd.f32 %v3069, %v3193
        %v3195 = vpop.f32.mrf.mxu0
        %v3196 = vadd.f32 %v3069, %v3195
        %3197 = vmatmul.bf16.gmra.mxu0 %v3066
        %v3198 = vpop.f32.mrf.mxu0
        %v3199 = vadd.f32 %v3069, %v3198
        %v3200 = vpop.f32.mrf.mxu0
        %v3201 = vadd.f32 %v3069, %v3200
        %3202 = vmatmul.bf16.gmra.mxu0 %v3067
        %v3203 = vpop.f32.mrf.mxu0
        %v3204 = vadd.f32 %v3069, %v3203
        %v3205 = vpop.f32.mrf.mxu0
        %v3206 = vadd.f32 %v3069, %v3205
        %3207 = vdwg.mxu0
        %v3208 = vsel %vm2199, 1, 0
        %v3209 = vsel %vm2200, 1, 0
        %v3210 = vsel %vm2201, 1, 0
        %v3211 = vsel %vm2202, 1, 0
        %v3212 = vsel %vm2203, 1, 0
        %v3213 = vsel %vm2204, 1, 0
        %v3214 = vsel %vm2205, 1, 0
        %v3215 = vsel %vm2206, 1, 0
        %v3216 = vsel %vm2207, 1, 0
        %v3217 = vsel %vm2208, 1, 0
        %v3218 = vsel %vm2209, 1, 0
        %v3219 = vsel %vm2210, 1, 0
        %v3220 = vsel %vm2211, 1, 0
        %v3221 = vsel %vm2212, 1, 0
        %v3222 = vsel %vm2213, 1, 0
        %v3223 = vsel %vm2214, 1, 0
        %v3224 = vsel %vm2215, 1, 0
        %v3225 = vsel %vm2216, 1, 0
        %v3226 = vsel %vm2217, 1, 0
        %v3227 = vsel %vm2218, 1, 0
        %v3228 = vsel %vm2219, 1, 0
        %v3229 = vsel %vm2220, 1, 0
        %v3230 = vsel %vm2221, 1, 0
        %v3231 = vsel %vm2222, 1, 0
        %v3232 = vsel %vm2223, 1, 0
        %v3233 = vsel %vm2224, 1, 0
        %v3234 = vsel %vm2225, 1, 0
        %v3235 = vsel %vm2226, 1, 0
        %v3236 = vsel %vm2227, 1, 0
        %v3237 = vsel %vm2228, 1, 0
        %v3238 = vsel %vm2229, 1, 0
        %v3239 = vsel %vm2230, 1, 0
        %3240 = vset.pattern.permute.xlu0 0
        %3241 = vperm.xlu0 %3240, %v3208
        %v3242 = vpop.permute.xlu0 %3241
        %3243 = vset.pattern.permute.xlu0 0
        %3244 = vperm.xlu0 %3243, %v3209
        %v3245 = vpop.permute.xlu0 %3244
        %3246 = vset.pattern.permute.xlu0 0
        %3247 = vperm.xlu0 %3246, %v3210
        %v3248 = vpop.permute.xlu0 %3247
        %3249 = vset.pattern.permute.xlu0 0
        %3250 = vperm.xlu0 %3249, %v3211
        %v3251 = vpop.permute.xlu0 %3250
        %3252 = vset.pattern.permute.xlu0 0
        %3253 = vperm.xlu0 %3252, %v3212
        %v3254 = vpop.permute.xlu0 %3253
        %3255 = vset.pattern.permute.xlu0 0
        %3256 = vperm.xlu0 %3255, %v3213
        %v3257 = vpop.permute.xlu0 %3256
        %3258 = vset.pattern.permute.xlu0 0
        %3259 = vperm.xlu0 %3258, %v3214
        %v3260 = vpop.permute.xlu0 %3259
        %3261 = vset.pattern.permute.xlu0 0
        %3262 = vperm.xlu0 %3261, %v3215
        %v3263 = vpop.permute.xlu0 %3262
        %3264 = vset.pattern.permute.xlu0 0
        %3265 = vperm.xlu0 %3264, %v3216
        %v3266 = vpop.permute.xlu0 %3265
        %3267 = vset.pattern.permute.xlu0 0
        %3268 = vperm.xlu0 %3267, %v3217
        %v3269 = vpop.permute.xlu0 %3268
        %3270 = vset.pattern.permute.xlu0 0
        %3271 = vperm.xlu0 %3270, %v3218
        %v3272 = vpop.permute.xlu0 %3271
        %3273 = vset.pattern.permute.xlu0 0
        %3274 = vperm.xlu0 %3273, %v3219
        %v3275 = vpop.permute.xlu0 %3274
        %3276 = vset.pattern.permute.xlu0 0
        %3277 = vperm.xlu0 %3276, %v3220
        %v3278 = vpop.permute.xlu0 %3277
        %3279 = vset.pattern.permute.xlu0 0
        %3280 = vperm.xlu0 %3279, %v3221
        %v3281 = vpop.permute.xlu0 %3280
        %3282 = vset.pattern.permute.xlu0 0
        %3283 = vperm.xlu0 %3282, %v3222
        %v3284 = vpop.permute.xlu0 %3283
        %3285 = vset.pattern.permute.xlu0 0
        %3286 = vperm.xlu0 %3285, %v3223
        %v3287 = vpop.permute.xlu0 %3286
        %3288 = vset.pattern.permute.xlu0 0
        %3289 = vperm.xlu0 %3288, %v3224
        %v3290 = vpop.permute.xlu0 %3289
        %3291 = vset.pattern.permute.xlu0 0
        %3292 = vperm.xlu0 %3291, %v3225
        %v3293 = vpop.permute.xlu0 %3292
        %3294 = vset.pattern.permute.xlu0 0
        %3295 = vperm.xlu0 %3294, %v3226
        %v3296 = vpop.permute.xlu0 %3295
        %3297 = vset.pattern.permute.xlu0 0
        %3298 = vperm.xlu0 %3297, %v3227
        %v3299 = vpop.permute.xlu0 %3298
        %3300 = vset.pattern.permute.xlu0 0
        %3301 = vperm.xlu0 %3300, %v3228
        %v3302 = vpop.permute.xlu0 %3301
        %3303 = vset.pattern.permute.xlu0 0
        %3304 = vperm.xlu0 %3303, %v3229
        %v3305 = vpop.permute.xlu0 %3304
        %3306 = vset.pattern.permute.xlu0 0
        %3307 = vperm.xlu0 %3306, %v3230
        %v3308 = vpop.permute.xlu0 %3307
        %3309 = vset.pattern.permute.xlu0 0
        %3310 = vperm.xlu0 %3309, %v3231
        %v3311 = vpop.permute.xlu0 %3310
        %3312 = vset.pattern.permute.xlu0 0
        %3313 = vperm.xlu0 %3312, %v3232
        %v3314 = vpop.permute.xlu0 %3313
        %3315 = vset.pattern.permute.xlu0 0
        %3316 = vperm.xlu0 %3315, %v3233
        %v3317 = vpop.permute.xlu0 %3316
        %3318 = vset.pattern.permute.xlu0 0
        %3319 = vperm.xlu0 %3318, %v3234
        %v3320 = vpop.permute.xlu0 %3319
        %3321 = vset.pattern.permute.xlu0 0
        %3322 = vperm.xlu0 %3321, %v3235
        %v3323 = vpop.permute.xlu0 %3322
        %3324 = vset.pattern.permute.xlu0 0
        %3325 = vperm.xlu0 %3324, %v3236
        %v3326 = vpop.permute.xlu0 %3325
        %3327 = vset.pattern.permute.xlu0 0
        %3328 = vperm.xlu0 %3327, %v3237
        %v3329 = vpop.permute.xlu0 %3328
        %3330 = vset.pattern.permute.xlu0 0
        %3331 = vperm.xlu0 %3330, %v3238
        %v3332 = vpop.permute.xlu0 %3331
        %3333 = vset.pattern.permute.xlu0 0
        %3334 = vperm.xlu0 %3333, %v3239
        %v3335 = vpop.permute.xlu0 %3334
        %vm3336 = vcmp.eq.s32.totalorder %v3242, 1
        %vm3337 = vcmp.eq.s32.totalorder %v3245, 1
        %vm3338 = vcmp.eq.s32.totalorder %v3248, 1
        %vm3339 = vcmp.eq.s32.totalorder %v3251, 1
        %vm3340 = vcmp.eq.s32.totalorder %v3254, 1
        %vm3341 = vcmp.eq.s32.totalorder %v3257, 1
        %vm3342 = vcmp.eq.s32.totalorder %v3260, 1
        %vm3343 = vcmp.eq.s32.totalorder %v3263, 1
        %vm3344 = vcmp.eq.s32.totalorder %v3266, 1
        %vm3345 = vcmp.eq.s32.totalorder %v3269, 1
        %vm3346 = vcmp.eq.s32.totalorder %v3272, 1
        %vm3347 = vcmp.eq.s32.totalorder %v3275, 1
        %vm3348 = vcmp.eq.s32.totalorder %v3278, 1
        %vm3349 = vcmp.eq.s32.totalorder %v3281, 1
        %vm3350 = vcmp.eq.s32.totalorder %v3284, 1
        %vm3351 = vcmp.eq.s32.totalorder %v3287, 1
        %vm3352 = vcmp.eq.s32.totalorder %v3290, 1
        %vm3353 = vcmp.eq.s32.totalorder %v3293, 1
        %vm3354 = vcmp.eq.s32.totalorder %v3296, 1
        %vm3355 = vcmp.eq.s32.totalorder %v3299, 1
        %vm3356 = vcmp.eq.s32.totalorder %v3302, 1
        %vm3357 = vcmp.eq.s32.totalorder %v3305, 1
        %vm3358 = vcmp.eq.s32.totalorder %v3308, 1
        %vm3359 = vcmp.eq.s32.totalorder %v3311, 1
        %vm3360 = vcmp.eq.s32.totalorder %v3314, 1
        %vm3361 = vcmp.eq.s32.totalorder %v3317, 1
        %vm3362 = vcmp.eq.s32.totalorder %v3320, 1
        %vm3363 = vcmp.eq.s32.totalorder %v3323, 1
        %vm3364 = vcmp.eq.s32.totalorder %v3326, 1
        %vm3365 = vcmp.eq.s32.totalorder %v3329, 1
        %vm3366 = vcmp.eq.s32.totalorder %v3332, 1
        %vm3367 = vcmp.eq.s32.totalorder %v3335, 1
        %v3368 = vsel %vm3336, %v3129, -1e+10
        %v3369 = vsel %vm3337, %v3131, -1e+10
        %v3370 = vsel %vm3338, %v3134, -1e+10
        %v3371 = vsel %vm3339, %v3136, -1e+10
        %v3372 = vsel %vm3340, %v3139, -1e+10
        %v3373 = vsel %vm3341, %v3141, -1e+10
        %v3374 = vsel %vm3342, %v3144, -1e+10
        %v3375 = vsel %vm3343, %v3146, -1e+10
        %v3376 = vsel %vm3344, %v3149, -1e+10
        %v3377 = vsel %vm3345, %v3151, -1e+10
        %v3378 = vsel %vm3346, %v3154, -1e+10
        %v3379 = vsel %vm3347, %v3156, -1e+10
        %v3380 = vsel %vm3348, %v3159, -1e+10
        %v3381 = vsel %vm3349, %v3161, -1e+10
        %v3382 = vsel %vm3350, %v3164, -1e+10
        %v3383 = vsel %vm3351, %v3166, -1e+10
        %v3384 = vsel %vm3352, %v3169, -1e+10
        %v3385 = vsel %vm3353, %v3171, -1e+10
        %v3386 = vsel %vm3354, %v3174, -1e+10
        %v3387 = vsel %vm3355, %v3176, -1e+10
        %v3388 = vsel %vm3356, %v3179, -1e+10
        %v3389 = vsel %vm3357, %v3181, -1e+10
        %v3390 = vsel %vm3358, %v3184, -1e+10
        %v3391 = vsel %vm3359, %v3186, -1e+10
        %v3392 = vsel %vm3360, %v3189, -1e+10
        %v3393 = vsel %vm3361, %v3191, -1e+10
        %v3394 = vsel %vm3362, %v3194, -1e+10
        %v3395 = vsel %vm3363, %v3196, -1e+10
        %v3396 = vsel %vm3364, %v3199, -1e+10
        %v3397 = vsel %vm3365, %v3201, -1e+10
        %v3398 = vsel %vm3366, %v3204, -1e+10
        %v3399 = vsel %vm3367, %v3206, -1e+10
        %v3400 = vmax.f32 %v3368, %v3369
        %v3401 = vmax.f32 %v3400, %v3370
        %v3402 = vmax.f32 %v3401, %v3371
        %v3403 = vmax.f32 %v3402, %v3372
        %v3404 = vmax.f32 %v3403, %v3373
        %v3405 = vmax.f32 %v3404, %v3374
        %v3406 = vmax.f32 %v3405, %v3375
        %v3407 = vrot.slane %v3406, 4
        %v3408 = vmax.f32 %v3406, %v3407
        %v3409 = vrot.slane %v3408, 2
        %v3410 = vmax.f32 %v3408, %v3409
        %v3411 = vrot.slane %v3410, 1
        %v3412 = vmax.f32 %v3410, %v3411
        %v3413 = vmax.f32 %v3376, %v3377
        %v3414 = vmax.f32 %v3413, %v3378
        %v3415 = vmax.f32 %v3414, %v3379
        %v3416 = vmax.f32 %v3415, %v3380
        %v3417 = vmax.f32 %v3416, %v3381
        %v3418 = vmax.f32 %v3417, %v3382
        %v3419 = vmax.f32 %v3418, %v3383
        %v3420 = vrot.slane %v3419, 4
        %v3421 = vmax.f32 %v3419, %v3420
        %v3422 = vrot.slane %v3421, 2
        %v3423 = vmax.f32 %v3421, %v3422
        %v3424 = vrot.slane %v3423, 1
        %v3425 = vmax.f32 %v3423, %v3424
        %v3426 = vmax.f32 %v3384, %v3385
        %v3427 = vmax.f32 %v3426, %v3386
        %v3428 = vmax.f32 %v3427, %v3387
        %v3429 = vmax.f32 %v3428, %v3388
        %v3430 = vmax.f32 %v3429, %v3389
        %v3431 = vmax.f32 %v3430, %v3390
        %v3432 = vmax.f32 %v3431, %v3391
        %v3433 = vrot.slane %v3432, 4
        %v3434 = vmax.f32 %v3432, %v3433
        %v3435 = vrot.slane %v3434, 2
        %v3436 = vmax.f32 %v3434, %v3435
        %v3437 = vrot.slane %v3436, 1
        %v3438 = vmax.f32 %v3436, %v3437
        %v3439 = vmax.f32 %v3392, %v3393
        %v3440 = vmax.f32 %v3439, %v3394
        %v3441 = vmax.f32 %v3440, %v3395
        %v3442 = vmax.f32 %v3441, %v3396
        %v3443 = vmax.f32 %v3442, %v3397
        %v3444 = vmax.f32 %v3443, %v3398
        %v3445 = vmax.f32 %v3444, %v3399
        %v3446 = vrot.slane %v3445, 4
        %v3447 = vmax.f32 %v3445, %v3446
        %v3448 = vrot.slane %v3447, 2
        %v3449 = vmax.f32 %v3447, %v3448
        %v3450 = vrot.slane %v3449, 1
        %v3451 = vmax.f32 %v3449, %v3450
        %3452 = vst [vmem:[#allocation2 + $0x2] sm:$0x1] %v3412
        %3453 = vst [vmem:[#allocation2 + $0xa] sm:$0x1] %v3425
        %3454 = vst [vmem:[#allocation2 + $0x12] sm:$0x1] %v3438
        %3455 = vst [vmem:[#allocation2 + $0x1a] sm:$0x1] %v3451
        %v3456 = vpack.c.bf16 %v2010, %v2008
        %v3457 = vpack.c.bf16 %v2014, %v2012
        %v3458 = vpack.c.bf16 %v2018, %v2016
        %v3459 = vpack.c.bf16 %v2022, %v2020
        %v3460 = vpack.c.bf16 %v2026, %v2024
        %v3461 = vpack.c.bf16 %v2030, %v2028
        %v3462 = vpack.c.bf16 %v2034, %v2032
        %v3463 = vpack.c.bf16 %v2038, %v2036
        %v3464 = vpack.c.bf16 %v2042, %v2040
        %v3465 = vpack.c.bf16 %v2046, %v2044
        %v3466 = vpack.c.bf16 %v2050, %v2048
        %v3467 = vpack.c.bf16 %v2054, %v2052
        %v3468 = vpack.c.bf16 %v2058, %v2056
        %v3469 = vpack.c.bf16 %v2062, %v2060
        %v3470 = vpack.c.bf16 %v2066, %v2064
        %v3471 = vpack.c.bf16 %v2070, %v2068
        %v3473 = vperm.slane %v967, 0
        %v3483 = vunpack.c.l.b16 %v949
        %v3484 = vunpack.c.l.b16 %v950
        %v3485 = vunpack.c.l.b16 %v951
        %v3486 = vunpack.c.l.b16 %v952
        %v3487 = vunpack.c.l.b16 %v953
        %v3488 = vunpack.c.l.b16 %v954
        %v3489 = vunpack.c.l.b16 %v955
        %v3490 = vunpack.c.l.b16 %v956
        %v3491 = vpack.c.b16 %v3484, %v3483
        %v3492 = vpack.c.b16 %v3486, %v3485
        %v3493 = vpack.c.b16 %v3488, %v3487
        %v3494 = vpack.c.b16 %v3490, %v3489
        %v3500 = vsel %vm2330, %v3456, 0
        %v3503 = vsel %vm2330, %v3457, 0
        %v3506 = vsel %vm2330, %v3458, 0
        %v3509 = vsel %vm2330, %v3459, 0
        %v3512 = vsel %vm2330, %v3460, 0
        %v3515 = vsel %vm2330, %v3461, 0
        %v3518 = vsel %vm2330, %v3462, 0
        %v3521 = vsel %vm2330, %v3463, 0
        %v3524 = vsel %vm2330, %v3464, 0
        %v3527 = vsel %vm2330, %v3465, 0
        %v3530 = vsel %vm2330, %v3466, 0
        %v3533 = vsel %vm2330, %v3467, 0
        %v3536 = vsel %vm2330, %v3468, 0
        %v3539 = vsel %vm2330, %v3469, 0
        %v3542 = vsel %vm2330, %v3470, 0
        %v3545 = vsel %vm2330, %v3471, 0
        %3547 = vmatpush.bf16.msra.mxu0 0
        %3548 = vmatpush.bf16.msra.mxu0 0
        %3549 = vmatpush.bf16.msra.mxu0 0
        %3550 = vmatpush.bf16.msra.mxu0 0
        %3551 = vmatpush.bf16.msra.mxu0 %v3494
        %3552 = vmatpush.bf16.msra.mxu0 %v3493
        %3553 = vmatpush.bf16.msra.mxu0 %v3492
        %3554 = vmatpush.bf16.msra.mxu0 %v3491
        %3555 = vmatmul.bf16.gmra.mxu0 %v3500
        %v3556 = vpop.f32.mrf.mxu0
        %v3557 = vadd.f32 %v3473, %v3556
        %v3558 = vpop.f32.mrf.mxu0
        %v3559 = vadd.f32 %v3473, %v3558
        %3560 = vmatmul.bf16.gmra.mxu0 %v3503
        %v3561 = vpop.f32.mrf.mxu0
        %v3562 = vadd.f32 %v3473, %v3561
        %v3563 = vpop.f32.mrf.mxu0
        %v3564 = vadd.f32 %v3473, %v3563
        %3565 = vmatmul.bf16.gmra.mxu0 %v3506
        %v3566 = vpop.f32.mrf.mxu0
        %v3567 = vadd.f32 %v3473, %v3566
        %v3568 = vpop.f32.mrf.mxu0
        %v3569 = vadd.f32 %v3473, %v3568
        %3570 = vmatmul.bf16.gmra.mxu0 %v3509
        %v3571 = vpop.f32.mrf.mxu0
        %v3572 = vadd.f32 %v3473, %v3571
        %v3573 = vpop.f32.mrf.mxu0
        %v3574 = vadd.f32 %v3473, %v3573
        %3575 = vmatmul.bf16.gmra.mxu0 %v3512
        %v3576 = vpop.f32.mrf.mxu0
        %v3577 = vadd.f32 %v3473, %v3576
        %v3578 = vpop.f32.mrf.mxu0
        %v3579 = vadd.f32 %v3473, %v3578
        %3580 = vmatmul.bf16.gmra.mxu0 %v3515
        %v3581 = vpop.f32.mrf.mxu0
        %v3582 = vadd.f32 %v3473, %v3581
        %v3583 = vpop.f32.mrf.mxu0
        %v3584 = vadd.f32 %v3473, %v3583
        %3585 = vmatmul.bf16.gmra.mxu0 %v3518
        %v3586 = vpop.f32.mrf.mxu0
        %v3587 = vadd.f32 %v3473, %v3586
        %v3588 = vpop.f32.mrf.mxu0
        %v3589 = vadd.f32 %v3473, %v3588
        %3590 = vmatmul.bf16.gmra.mxu0 %v3521
        %v3591 = vpop.f32.mrf.mxu0
        %v3592 = vadd.f32 %v3473, %v3591
        %v3593 = vpop.f32.mrf.mxu0
        %v3594 = vadd.f32 %v3473, %v3593
        %3595 = vmatmul.bf16.gmra.mxu0 %v3524
        %v3596 = vpop.f32.mrf.mxu0
        %v3597 = vadd.f32 %v3473, %v3596
        %v3598 = vpop.f32.mrf.mxu0
        %v3599 = vadd.f32 %v3473, %v3598
        %3600 = vmatmul.bf16.gmra.mxu0 %v3527
        %v3601 = vpop.f32.mrf.mxu0
        %v3602 = vadd.f32 %v3473, %v3601
        %v3603 = vpop.f32.mrf.mxu0
        %v3604 = vadd.f32 %v3473, %v3603
        %3605 = vmatmul.bf16.gmra.mxu0 %v3530
        %v3606 = vpop.f32.mrf.mxu0
        %v3607 = vadd.f32 %v3473, %v3606
        %v3608 = vpop.f32.mrf.mxu0
        %v3609 = vadd.f32 %v3473, %v3608
        %3610 = vmatmul.bf16.gmra.mxu0 %v3533
        %v3611 = vpop.f32.mrf.mxu0
        %v3612 = vadd.f32 %v3473, %v3611
        %v3613 = vpop.f32.mrf.mxu0
        %v3614 = vadd.f32 %v3473, %v3613
        %3615 = vmatmul.bf16.gmra.mxu0 %v3536
        %v3616 = vpop.f32.mrf.mxu0
        %v3617 = vadd.f32 %v3473, %v3616
        %v3618 = vpop.f32.mrf.mxu0
        %v3619 = vadd.f32 %v3473, %v3618
        %3620 = vmatmul.bf16.gmra.mxu0 %v3539
        %v3621 = vpop.f32.mrf.mxu0
        %v3622 = vadd.f32 %v3473, %v3621
        %v3623 = vpop.f32.mrf.mxu0
        %v3624 = vadd.f32 %v3473, %v3623
        %3625 = vmatmul.bf16.gmra.mxu0 %v3542
        %v3626 = vpop.f32.mrf.mxu0
        %v3627 = vadd.f32 %v3473, %v3626
        %v3628 = vpop.f32.mrf.mxu0
        %v3629 = vadd.f32 %v3473, %v3628
        %3630 = vmatmul.bf16.gmra.mxu0 %v3545
        %v3631 = vpop.f32.mrf.mxu0
        %v3632 = vadd.f32 %v3473, %v3631
        %v3633 = vpop.f32.mrf.mxu0
        %v3634 = vadd.f32 %v3473, %v3633
        %3635 = vdwg.mxu0
        %v3636 = vmax.f32 %v3557, 0.0
        %v3637 = vmax.f32 %v3559, 0.0
        %v3638 = vmax.f32 %v3562, 0.0
        %v3639 = vmax.f32 %v3564, 0.0
        %v3640 = vmax.f32 %v3567, 0.0
        %v3641 = vmax.f32 %v3569, 0.0
        %v3642 = vmax.f32 %v3572, 0.0
        %v3643 = vmax.f32 %v3574, 0.0
        %v3644 = vmax.f32 %v3577, 0.0
        %v3645 = vmax.f32 %v3579, 0.0
        %v3646 = vmax.f32 %v3582, 0.0
        %v3647 = vmax.f32 %v3584, 0.0
        %v3648 = vmax.f32 %v3587, 0.0
        %v3649 = vmax.f32 %v3589, 0.0
        %v3650 = vmax.f32 %v3592, 0.0
        %v3651 = vmax.f32 %v3594, 0.0
        %v3652 = vmax.f32 %v3597, 0.0
        %v3653 = vmax.f32 %v3599, 0.0
        %v3654 = vmax.f32 %v3602, 0.0
        %v3655 = vmax.f32 %v3604, 0.0
        %v3656 = vmax.f32 %v3607, 0.0
        %v3657 = vmax.f32 %v3609, 0.0
        %v3658 = vmax.f32 %v3612, 0.0
        %v3659 = vmax.f32 %v3614, 0.0
        %v3660 = vmax.f32 %v3617, 0.0
        %v3661 = vmax.f32 %v3619, 0.0
        %v3662 = vmax.f32 %v3622, 0.0
        %v3663 = vmax.f32 %v3624, 0.0
        %v3664 = vmax.f32 %v3627, 0.0
        %v3665 = vmax.f32 %v3629, 0.0
        %v3666 = vmax.f32 %v3632, 0.0
        %v3667 = vmax.f32 %v3634, 0.0
        %v3668 = vpack.c.bf16 %v3637, %v3636
        %v3669 = vpack.c.bf16 %v3639, %v3638
        %v3670 = vpack.c.bf16 %v3641, %v3640
        %v3671 = vpack.c.bf16 %v3643, %v3642
        %v3672 = vpack.c.bf16 %v3645, %v3644
        %v3673 = vpack.c.bf16 %v3647, %v3646
        %v3674 = vpack.c.bf16 %v3649, %v3648
        %v3675 = vpack.c.bf16 %v3651, %v3650
        %v3676 = vpack.c.bf16 %v3653, %v3652
        %v3677 = vpack.c.bf16 %v3655, %v3654
        %v3678 = vpack.c.bf16 %v3657, %v3656
        %v3679 = vpack.c.bf16 %v3659, %v3658
        %v3680 = vpack.c.bf16 %v3661, %v3660
        %v3681 = vpack.c.bf16 %v3663, %v3662
        %v3682 = vpack.c.bf16 %v3665, %v3664
        %v3683 = vpack.c.bf16 %v3667, %v3666
        %v3685 = vperm.slane %v1035, 0
        %v3703 = vunpack.c.l.b16 %v1001
        %v3704 = vunpack.c.l.b16 %v1002
        %v3705 = vunpack.c.l.b16 %v1003
        %v3706 = vunpack.c.l.b16 %v1004
        %v3707 = vunpack.c.l.b16 %v1005
        %v3708 = vunpack.c.l.b16 %v1006
        %v3709 = vunpack.c.l.b16 %v1007
        %v3710 = vunpack.c.l.b16 %v1008
        %v3711 = vunpack.c.l.b16 %v1009
        %v3712 = vunpack.c.l.b16 %v1010
        %v3713 = vunpack.c.l.b16 %v1011
        %v3714 = vunpack.c.l.b16 %v1012
        %v3715 = vunpack.c.l.b16 %v1013
        %v3716 = vunpack.c.l.b16 %v1014
        %v3717 = vunpack.c.l.b16 %v1015
        %v3718 = vunpack.c.l.b16 %v1016
        %v3719 = vpack.c.b16 %v3704, %v3703
        %v3720 = vpack.c.b16 %v3706, %v3705
        %v3721 = vpack.c.b16 %v3708, %v3707
        %v3722 = vpack.c.b16 %v3710, %v3709
        %v3723 = vpack.c.b16 %v3712, %v3711
        %v3724 = vpack.c.b16 %v3714, %v3713
        %v3725 = vpack.c.b16 %v3716, %v3715
        %v3726 = vpack.c.b16 %v3718, %v3717
        %3735 = vmatpush.bf16.msra.mxu0 %v3726
        %3736 = vmatpush.bf16.msra.mxu0 %v3725
        %3737 = vmatpush.bf16.msra.mxu0 %v3724
        %3738 = vmatpush.bf16.msra.mxu0 %v3723
        %3739 = vmatpush.bf16.msra.mxu0 %v3722
        %3740 = vmatpush.bf16.msra.mxu0 %v3721
        %3741 = vmatpush.bf16.msra.mxu0 %v3720
        %3742 = vmatpush.bf16.msra.mxu0 %v3719
        %3743 = vmatmul.bf16.gmra.mxu0 %v3668
        %v3744 = vpop.f32.mrf.mxu0
        %v3745 = vadd.f32 %v3685, %v3744
        %v3746 = vpop.f32.mrf.mxu0
        %v3747 = vadd.f32 %v3685, %v3746
        %3748 = vmatmul.bf16.gmra.mxu0 %v3669
        %v3749 = vpop.f32.mrf.mxu0
        %v3750 = vadd.f32 %v3685, %v3749
        %v3751 = vpop.f32.mrf.mxu0
        %v3752 = vadd.f32 %v3685, %v3751
        %3753 = vmatmul.bf16.gmra.mxu0 %v3670
        %v3754 = vpop.f32.mrf.mxu0
        %v3755 = vadd.f32 %v3685, %v3754
        %v3756 = vpop.f32.mrf.mxu0
        %v3757 = vadd.f32 %v3685, %v3756
        %3758 = vmatmul.bf16.gmra.mxu0 %v3671
        %v3759 = vpop.f32.mrf.mxu0
        %v3760 = vadd.f32 %v3685, %v3759
        %v3761 = vpop.f32.mrf.mxu0
        %v3762 = vadd.f32 %v3685, %v3761
        %3763 = vmatmul.bf16.gmra.mxu0 %v3672
        %v3764 = vpop.f32.mrf.mxu0
        %v3765 = vadd.f32 %v3685, %v3764
        %v3766 = vpop.f32.mrf.mxu0
        %v3767 = vadd.f32 %v3685, %v3766
        %3768 = vmatmul.bf16.gmra.mxu0 %v3673
        %v3769 = vpop.f32.mrf.mxu0
        %v3770 = vadd.f32 %v3685, %v3769
        %v3771 = vpop.f32.mrf.mxu0
        %v3772 = vadd.f32 %v3685, %v3771
        %3773 = vmatmul.bf16.gmra.mxu0 %v3674
        %v3774 = vpop.f32.mrf.mxu0
        %v3775 = vadd.f32 %v3685, %v3774
        %v3776 = vpop.f32.mrf.mxu0
        %v3777 = vadd.f32 %v3685, %v3776
        %3778 = vmatmul.bf16.gmra.mxu0 %v3675
        %v3779 = vpop.f32.mrf.mxu0
        %v3780 = vadd.f32 %v3685, %v3779
        %v3781 = vpop.f32.mrf.mxu0
        %v3782 = vadd.f32 %v3685, %v3781
        %3783 = vmatmul.bf16.gmra.mxu0 %v3676
        %v3784 = vpop.f32.mrf.mxu0
        %v3785 = vadd.f32 %v3685, %v3784
        %v3786 = vpop.f32.mrf.mxu0
        %v3787 = vadd.f32 %v3685, %v3786
        %3788 = vmatmul.bf16.gmra.mxu0 %v3677
        %v3789 = vpop.f32.mrf.mxu0
        %v3790 = vadd.f32 %v3685, %v3789
        %v3791 = vpop.f32.mrf.mxu0
        %v3792 = vadd.f32 %v3685, %v3791
        %3793 = vmatmul.bf16.gmra.mxu0 %v3678
        %v3794 = vpop.f32.mrf.mxu0
        %v3795 = vadd.f32 %v3685, %v3794
        %v3796 = vpop.f32.mrf.mxu0
        %v3797 = vadd.f32 %v3685, %v3796
        %3798 = vmatmul.bf16.gmra.mxu0 %v3679
        %v3799 = vpop.f32.mrf.mxu0
        %v3800 = vadd.f32 %v3685, %v3799
        %v3801 = vpop.f32.mrf.mxu0
        %v3802 = vadd.f32 %v3685, %v3801
        %3803 = vmatmul.bf16.gmra.mxu0 %v3680
        %v3804 = vpop.f32.mrf.mxu0
        %v3805 = vadd.f32 %v3685, %v3804
        %v3806 = vpop.f32.mrf.mxu0
        %v3807 = vadd.f32 %v3685, %v3806
        %3808 = vmatmul.bf16.gmra.mxu0 %v3681
        %v3809 = vpop.f32.mrf.mxu0
        %v3810 = vadd.f32 %v3685, %v3809
        %v3811 = vpop.f32.mrf.mxu0
        %v3812 = vadd.f32 %v3685, %v3811
        %3813 = vmatmul.bf16.gmra.mxu0 %v3682
        %v3814 = vpop.f32.mrf.mxu0
        %v3815 = vadd.f32 %v3685, %v3814
        %v3816 = vpop.f32.mrf.mxu0
        %v3817 = vadd.f32 %v3685, %v3816
        %3818 = vmatmul.bf16.gmra.mxu0 %v3683
        %v3819 = vpop.f32.mrf.mxu0
        %v3820 = vadd.f32 %v3685, %v3819
        %v3821 = vpop.f32.mrf.mxu0
        %v3822 = vadd.f32 %v3685, %v3821
        %3823 = vdwg.mxu0
        %3824 = vset.pattern.permute.xlu0 1
        %3825 = vperm.xlu0 %3824, %v3208
        %v3826 = vpop.permute.xlu0 %3825
        %3827 = vset.pattern.permute.xlu0 1
        %3828 = vperm.xlu0 %3827, %v3209
        %v3829 = vpop.permute.xlu0 %3828
        %3830 = vset.pattern.permute.xlu0 1
        %3831 = vperm.xlu0 %3830, %v3210
        %v3832 = vpop.permute.xlu0 %3831
        %3833 = vset.pattern.permute.xlu0 1
        %3834 = vperm.xlu0 %3833, %v3211
        %v3835 = vpop.permute.xlu0 %3834
        %3836 = vset.pattern.permute.xlu0 1
        %3837 = vperm.xlu0 %3836, %v3212
        %v3838 = vpop.permute.xlu0 %3837
        %3839 = vset.pattern.permute.xlu0 1
        %3840 = vperm.xlu0 %3839, %v3213
        %v3841 = vpop.permute.xlu0 %3840
        %3842 = vset.pattern.permute.xlu0 1
        %3843 = vperm.xlu0 %3842, %v3214
        %v3844 = vpop.permute.xlu0 %3843
        %3845 = vset.pattern.permute.xlu0 1
        %3846 = vperm.xlu0 %3845, %v3215
        %v3847 = vpop.permute.xlu0 %3846
        %3848 = vset.pattern.permute.xlu0 1
        %3849 = vperm.xlu0 %3848, %v3216
        %v3850 = vpop.permute.xlu0 %3849
        %3851 = vset.pattern.permute.xlu0 1
        %3852 = vperm.xlu0 %3851, %v3217
        %v3853 = vpop.permute.xlu0 %3852
        %3854 = vset.pattern.permute.xlu0 1
        %3855 = vperm.xlu0 %3854, %v3218
        %v3856 = vpop.permute.xlu0 %3855
        %3857 = vset.pattern.permute.xlu0 1
        %3858 = vperm.xlu0 %3857, %v3219
        %v3859 = vpop.permute.xlu0 %3858
        %3860 = vset.pattern.permute.xlu0 1
        %3861 = vperm.xlu0 %3860, %v3220
        %v3862 = vpop.permute.xlu0 %3861
        %3863 = vset.pattern.permute.xlu0 1
        %3864 = vperm.xlu0 %3863, %v3221
        %v3865 = vpop.permute.xlu0 %3864
        %3866 = vset.pattern.permute.xlu0 1
        %3867 = vperm.xlu0 %3866, %v3222
        %v3868 = vpop.permute.xlu0 %3867
        %3869 = vset.pattern.permute.xlu0 1
        %3870 = vperm.xlu0 %3869, %v3223
        %v3871 = vpop.permute.xlu0 %3870
        %3872 = vset.pattern.permute.xlu0 1
        %3873 = vperm.xlu0 %3872, %v3224
        %v3874 = vpop.permute.xlu0 %3873
        %3875 = vset.pattern.permute.xlu0 1
        %3876 = vperm.xlu0 %3875, %v3225
        %v3877 = vpop.permute.xlu0 %3876
        %3878 = vset.pattern.permute.xlu0 1
        %3879 = vperm.xlu0 %3878, %v3226
        %v3880 = vpop.permute.xlu0 %3879
        %3881 = vset.pattern.permute.xlu0 1
        %3882 = vperm.xlu0 %3881, %v3227
        %v3883 = vpop.permute.xlu0 %3882
        %3884 = vset.pattern.permute.xlu0 1
        %3885 = vperm.xlu0 %3884, %v3228
        %v3886 = vpop.permute.xlu0 %3885
        %3887 = vset.pattern.permute.xlu0 1
        %3888 = vperm.xlu0 %3887, %v3229
        %v3889 = vpop.permute.xlu0 %3888
        %3890 = vset.pattern.permute.xlu0 1
        %3891 = vperm.xlu0 %3890, %v3230
        %v3892 = vpop.permute.xlu0 %3891
        %3893 = vset.pattern.permute.xlu0 1
        %3894 = vperm.xlu0 %3893, %v3231
        %v3895 = vpop.permute.xlu0 %3894
        %3896 = vset.pattern.permute.xlu0 1
        %3897 = vperm.xlu0 %3896, %v3232
        %v3898 = vpop.permute.xlu0 %3897
        %3899 = vset.pattern.permute.xlu0 1
        %3900 = vperm.xlu0 %3899, %v3233
        %v3901 = vpop.permute.xlu0 %3900
        %3902 = vset.pattern.permute.xlu0 1
        %3903 = vperm.xlu0 %3902, %v3234
        %v3904 = vpop.permute.xlu0 %3903
        %3905 = vset.pattern.permute.xlu0 1
        %3906 = vperm.xlu0 %3905, %v3235
        %v3907 = vpop.permute.xlu0 %3906
        %3908 = vset.pattern.permute.xlu0 1
        %3909 = vperm.xlu0 %3908, %v3236
        %v3910 = vpop.permute.xlu0 %3909
        %3911 = vset.pattern.permute.xlu0 1
        %3912 = vperm.xlu0 %3911, %v3237
        %v3913 = vpop.permute.xlu0 %3912
        %3914 = vset.pattern.permute.xlu0 1
        %3915 = vperm.xlu0 %3914, %v3238
        %v3916 = vpop.permute.xlu0 %3915
        %3917 = vset.pattern.permute.xlu0 1
        %3918 = vperm.xlu0 %3917, %v3239
        %v3919 = vpop.permute.xlu0 %3918
        %vm3920 = vcmp.eq.s32.totalorder %v3826, 1
        %vm3921 = vcmp.eq.s32.totalorder %v3829, 1
        %vm3922 = vcmp.eq.s32.totalorder %v3832, 1
        %vm3923 = vcmp.eq.s32.totalorder %v3835, 1
        %vm3924 = vcmp.eq.s32.totalorder %v3838, 1
        %vm3925 = vcmp.eq.s32.totalorder %v3841, 1
        %vm3926 = vcmp.eq.s32.totalorder %v3844, 1
        %vm3927 = vcmp.eq.s32.totalorder %v3847, 1
        %vm3928 = vcmp.eq.s32.totalorder %v3850, 1
        %vm3929 = vcmp.eq.s32.totalorder %v3853, 1
        %vm3930 = vcmp.eq.s32.totalorder %v3856, 1
        %vm3931 = vcmp.eq.s32.totalorder %v3859, 1
        %vm3932 = vcmp.eq.s32.totalorder %v3862, 1
        %vm3933 = vcmp.eq.s32.totalorder %v3865, 1
        %vm3934 = vcmp.eq.s32.totalorder %v3868, 1
        %vm3935 = vcmp.eq.s32.totalorder %v3871, 1
        %vm3936 = vcmp.eq.s32.totalorder %v3874, 1
        %vm3937 = vcmp.eq.s32.totalorder %v3877, 1
        %vm3938 = vcmp.eq.s32.totalorder %v3880, 1
        %vm3939 = vcmp.eq.s32.totalorder %v3883, 1
        %vm3940 = vcmp.eq.s32.totalorder %v3886, 1
        %vm3941 = vcmp.eq.s32.totalorder %v3889, 1
        %vm3942 = vcmp.eq.s32.totalorder %v3892, 1
        %vm3943 = vcmp.eq.s32.totalorder %v3895, 1
        %vm3944 = vcmp.eq.s32.totalorder %v3898, 1
        %vm3945 = vcmp.eq.s32.totalorder %v3901, 1
        %vm3946 = vcmp.eq.s32.totalorder %v3904, 1
        %vm3947 = vcmp.eq.s32.totalorder %v3907, 1
        %vm3948 = vcmp.eq.s32.totalorder %v3910, 1
        %vm3949 = vcmp.eq.s32.totalorder %v3913, 1
        %vm3950 = vcmp.eq.s32.totalorder %v3916, 1
        %vm3951 = vcmp.eq.s32.totalorder %v3919, 1
        %v3952 = vsel %vm3920, %v3745, -1e+10
        %v3953 = vsel %vm3921, %v3747, -1e+10
        %v3954 = vsel %vm3922, %v3750, -1e+10
        %v3955 = vsel %vm3923, %v3752, -1e+10
        %v3956 = vsel %vm3924, %v3755, -1e+10
        %v3957 = vsel %vm3925, %v3757, -1e+10
        %v3958 = vsel %vm3926, %v3760, -1e+10
        %v3959 = vsel %vm3927, %v3762, -1e+10
        %v3960 = vsel %vm3928, %v3765, -1e+10
        %v3961 = vsel %vm3929, %v3767, -1e+10
        %v3962 = vsel %vm3930, %v3770, -1e+10
        %v3963 = vsel %vm3931, %v3772, -1e+10
        %v3964 = vsel %vm3932, %v3775, -1e+10
        %v3965 = vsel %vm3933, %v3777, -1e+10
        %v3966 = vsel %vm3934, %v3780, -1e+10
        %v3967 = vsel %vm3935, %v3782, -1e+10
        %v3968 = vsel %vm3936, %v3785, -1e+10
        %v3969 = vsel %vm3937, %v3787, -1e+10
        %v3970 = vsel %vm3938, %v3790, -1e+10
        %v3971 = vsel %vm3939, %v3792, -1e+10
        %v3972 = vsel %vm3940, %v3795, -1e+10
        %v3973 = vsel %vm3941, %v3797, -1e+10
        %v3974 = vsel %vm3942, %v3800, -1e+10
        %v3975 = vsel %vm3943, %v3802, -1e+10
        %v3976 = vsel %vm3944, %v3805, -1e+10
        %v3977 = vsel %vm3945, %v3807, -1e+10
        %v3978 = vsel %vm3946, %v3810, -1e+10
        %v3979 = vsel %vm3947, %v3812, -1e+10
        %v3980 = vsel %vm3948, %v3815, -1e+10
        %v3981 = vsel %vm3949, %v3817, -1e+10
        %v3982 = vsel %vm3950, %v3820, -1e+10
        %v3983 = vsel %vm3951, %v3822, -1e+10
        %v3984 = vmax.f32 %v3952, %v3953
        %v3985 = vmax.f32 %v3984, %v3954
        %v3986 = vmax.f32 %v3985, %v3955
        %v3987 = vmax.f32 %v3986, %v3956
        %v3988 = vmax.f32 %v3987, %v3957
        %v3989 = vmax.f32 %v3988, %v3958
        %v3990 = vmax.f32 %v3989, %v3959
        %v3991 = vrot.slane %v3990, 4
        %v3992 = vmax.f32 %v3990, %v3991
        %v3993 = vrot.slane %v3992, 2
        %v3994 = vmax.f32 %v3992, %v3993
        %v3995 = vrot.slane %v3994, 1
        %v3996 = vmax.f32 %v3994, %v3995
        %v3997 = vmax.f32 %v3960, %v3961
        %v3998 = vmax.f32 %v3997, %v3962
        %v3999 = vmax.f32 %v3998, %v3963
        %v4000 = vmax.f32 %v3999, %v3964
        %v4001 = vmax.f32 %v4000, %v3965
        %v4002 = vmax.f32 %v4001, %v3966
        %v4003 = vmax.f32 %v4002, %v3967
        %v4004 = vrot.slane %v4003, 4
        %v4005 = vmax.f32 %v4003, %v4004
        %v4006 = vrot.slane %v4005, 2
        %v4007 = vmax.f32 %v4005, %v4006
        %v4008 = vrot.slane %v4007, 1
        %v4009 = vmax.f32 %v4007, %v4008
        %v4010 = vmax.f32 %v3968, %v3969
        %v4011 = vmax.f32 %v4010, %v3970
        %v4012 = vmax.f32 %v4011, %v3971
        %v4013 = vmax.f32 %v4012, %v3972
        %v4014 = vmax.f32 %v4013, %v3973
        %v4015 = vmax.f32 %v4014, %v3974
        %v4016 = vmax.f32 %v4015, %v3975
        %v4017 = vrot.slane %v4016, 4
        %v4018 = vmax.f32 %v4016, %v4017
        %v4019 = vrot.slane %v4018, 2
        %v4020 = vmax.f32 %v4018, %v4019
        %v4021 = vrot.slane %v4020, 1
        %v4022 = vmax.f32 %v4020, %v4021
        %v4023 = vmax.f32 %v3976, %v3977
        %v4024 = vmax.f32 %v4023, %v3978
        %v4025 = vmax.f32 %v4024, %v3979
        %v4026 = vmax.f32 %v4025, %v3980
        %v4027 = vmax.f32 %v4026, %v3981
        %v4028 = vmax.f32 %v4027, %v3982
        %v4029 = vmax.f32 %v4028, %v3983
        %v4030 = vrot.slane %v4029, 4
        %v4031 = vmax.f32 %v4029, %v4030
        %v4032 = vrot.slane %v4031, 2
        %v4033 = vmax.f32 %v4031, %v4032
        %v4034 = vrot.slane %v4033, 1
        %v4035 = vmax.f32 %v4033, %v4034
        %4036 = vst [vmem:[#allocation2 + $0x3] sm:$0x1] %v3996
        %4037 = vst [vmem:[#allocation2 + $0xb] sm:$0x1] %v4009
        %4038 = vst [vmem:[#allocation2 + $0x13] sm:$0x1] %v4022
        %4039 = vst [vmem:[#allocation2 + $0x1b] sm:$0x1] %v4035
        %v4041 = vperm.slane %v968, 0
        %4059 = vrot.lane.b32.xlu0 %v3456, 64
        %v4060 = vpop.permute.xlu0 %4059
        %4061 = vrot.lane.b32.xlu0 %v3457, 64
        %v4062 = vpop.permute.xlu0 %4061
        %4063 = vrot.lane.b32.xlu0 %v3458, 64
        %v4064 = vpop.permute.xlu0 %4063
        %4065 = vrot.lane.b32.xlu0 %v3459, 64
        %v4066 = vpop.permute.xlu0 %4065
        %4067 = vrot.lane.b32.xlu0 %v3460, 64
        %v4068 = vpop.permute.xlu0 %4067
        %4069 = vrot.lane.b32.xlu0 %v3461, 64
        %v4070 = vpop.permute.xlu0 %4069
        %4071 = vrot.lane.b32.xlu0 %v3462, 64
        %v4072 = vpop.permute.xlu0 %4071
        %4073 = vrot.lane.b32.xlu0 %v3463, 64
        %v4074 = vpop.permute.xlu0 %4073
        %4075 = vrot.lane.b32.xlu0 %v3464, 64
        %v4076 = vpop.permute.xlu0 %4075
        %4077 = vrot.lane.b32.xlu0 %v3465, 64
        %v4078 = vpop.permute.xlu0 %4077
        %4079 = vrot.lane.b32.xlu0 %v3466, 64
        %v4080 = vpop.permute.xlu0 %4079
        %4081 = vrot.lane.b32.xlu0 %v3467, 64
        %v4082 = vpop.permute.xlu0 %4081
        %4083 = vrot.lane.b32.xlu0 %v3468, 64
        %v4084 = vpop.permute.xlu0 %4083
        %4085 = vrot.lane.b32.xlu0 %v3469, 64
        %v4086 = vpop.permute.xlu0 %4085
        %4087 = vrot.lane.b32.xlu0 %v3470, 64
        %v4088 = vpop.permute.xlu0 %4087
        %4089 = vrot.lane.b32.xlu0 %v3471, 64
        %v4090 = vpop.permute.xlu0 %4089
        %v4099 = vunpack.c.l.b16 %v957
        %v4100 = vunpack.c.l.b16 %v958
        %v4101 = vunpack.c.l.b16 %v959
        %v4102 = vunpack.c.l.b16 %v960
        %v4103 = vunpack.c.l.b16 %v961
        %v4104 = vunpack.c.l.b16 %v962
        %v4105 = vunpack.c.l.b16 %v963
        %v4106 = vunpack.c.l.b16 %v964
        %v4107 = vpack.c.b16 %v4100, %v4099
        %v4108 = vpack.c.b16 %v4102, %v4101
        %v4109 = vpack.c.b16 %v4104, %v4103
        %v4110 = vpack.c.b16 %v4106, %v4105
        %v4116 = vsel %vm2330, %v4060, 0
        %v4119 = vsel %vm2330, %v4062, 0
        %v4122 = vsel %vm2330, %v4064, 0
        %v4125 = vsel %vm2330, %v4066, 0
        %v4128 = vsel %vm2330, %v4068, 0
        %v4131 = vsel %vm2330, %v4070, 0
        %v4134 = vsel %vm2330, %v4072, 0
        %v4137 = vsel %vm2330, %v4074, 0
        %v4140 = vsel %vm2330, %v4076, 0
        %v4143 = vsel %vm2330, %v4078, 0
        %v4146 = vsel %vm2330, %v4080, 0
        %v4149 = vsel %vm2330, %v4082, 0
        %v4152 = vsel %vm2330, %v4084, 0
        %v4155 = vsel %vm2330, %v4086, 0
        %v4158 = vsel %vm2330, %v4088, 0
        %v4161 = vsel %vm2330, %v4090, 0
        %4163 = vmatpush.bf16.msra.mxu0 0
        %4164 = vmatpush.bf16.msra.mxu0 0
        %4165 = vmatpush.bf16.msra.mxu0 0
        %4166 = vmatpush.bf16.msra.mxu0 0
        %4167 = vmatpush.bf16.msra.mxu0 %v4110
        %4168 = vmatpush.bf16.msra.mxu0 %v4109
        %4169 = vmatpush.bf16.msra.mxu0 %v4108
        %4170 = vmatpush.bf16.msra.mxu0 %v4107
        %4171 = vmatmul.bf16.gmra.mxu0 %v4116
        %v4172 = vpop.f32.mrf.mxu0
        %v4173 = vadd.f32 %v4041, %v4172
        %v4174 = vpop.f32.mrf.mxu0
        %v4175 = vadd.f32 %v4041, %v4174
        %4176 = vmatmul.bf16.gmra.mxu0 %v4119
        %v4177 = vpop.f32.mrf.mxu0
        %v4178 = vadd.f32 %v4041, %v4177
        %v4179 = vpop.f32.mrf.mxu0
        %v4180 = vadd.f32 %v4041, %v4179
        %4181 = vmatmul.bf16.gmra.mxu0 %v4122
        %v4182 = vpop.f32.mrf.mxu0
        %v4183 = vadd.f32 %v4041, %v4182
        %v4184 = vpop.f32.mrf.mxu0
        %v4185 = vadd.f32 %v4041, %v4184
        %4186 = vmatmul.bf16.gmra.mxu0 %v4125
        %v4187 = vpop.f32.mrf.mxu0
        %v4188 = vadd.f32 %v4041, %v4187
        %v4189 = vpop.f32.mrf.mxu0
        %v4190 = vadd.f32 %v4041, %v4189
        %4191 = vmatmul.bf16.gmra.mxu0 %v4128
        %v4192 = vpop.f32.mrf.mxu0
        %v4193 = vadd.f32 %v4041, %v4192
        %v4194 = vpop.f32.mrf.mxu0
        %v4195 = vadd.f32 %v4041, %v4194
        %4196 = vmatmul.bf16.gmra.mxu0 %v4131
        %v4197 = vpop.f32.mrf.mxu0
        %v4198 = vadd.f32 %v4041, %v4197
        %v4199 = vpop.f32.mrf.mxu0
        %v4200 = vadd.f32 %v4041, %v4199
        %4201 = vmatmul.bf16.gmra.mxu0 %v4134
        %v4202 = vpop.f32.mrf.mxu0
        %v4203 = vadd.f32 %v4041, %v4202
        %v4204 = vpop.f32.mrf.mxu0
        %v4205 = vadd.f32 %v4041, %v4204
        %4206 = vmatmul.bf16.gmra.mxu0 %v4137
        %v4207 = vpop.f32.mrf.mxu0
        %v4208 = vadd.f32 %v4041, %v4207
        %v4209 = vpop.f32.mrf.mxu0
        %v4210 = vadd.f32 %v4041, %v4209
        %4211 = vmatmul.bf16.gmra.mxu0 %v4140
        %v4212 = vpop.f32.mrf.mxu0
        %v4213 = vadd.f32 %v4041, %v4212
        %v4214 = vpop.f32.mrf.mxu0
        %v4215 = vadd.f32 %v4041, %v4214
        %4216 = vmatmul.bf16.gmra.mxu0 %v4143
        %v4217 = vpop.f32.mrf.mxu0
        %v4218 = vadd.f32 %v4041, %v4217
        %v4219 = vpop.f32.mrf.mxu0
        %v4220 = vadd.f32 %v4041, %v4219
        %4221 = vmatmul.bf16.gmra.mxu0 %v4146
        %v4222 = vpop.f32.mrf.mxu0
        %v4223 = vadd.f32 %v4041, %v4222
        %v4224 = vpop.f32.mrf.mxu0
        %v4225 = vadd.f32 %v4041, %v4224
        %4226 = vmatmul.bf16.gmra.mxu0 %v4149
        %v4227 = vpop.f32.mrf.mxu0
        %v4228 = vadd.f32 %v4041, %v4227
        %v4229 = vpop.f32.mrf.mxu0
        %v4230 = vadd.f32 %v4041, %v4229
        %4231 = vmatmul.bf16.gmra.mxu0 %v4152
        %v4232 = vpop.f32.mrf.mxu0
        %v4233 = vadd.f32 %v4041, %v4232
        %v4234 = vpop.f32.mrf.mxu0
        %v4235 = vadd.f32 %v4041, %v4234
        %4236 = vmatmul.bf16.gmra.mxu0 %v4155
        %v4237 = vpop.f32.mrf.mxu0
        %v4238 = vadd.f32 %v4041, %v4237
        %v4239 = vpop.f32.mrf.mxu0
        %v4240 = vadd.f32 %v4041, %v4239
        %4241 = vmatmul.bf16.gmra.mxu0 %v4158
        %v4242 = vpop.f32.mrf.mxu0
        %v4243 = vadd.f32 %v4041, %v4242
        %v4244 = vpop.f32.mrf.mxu0
        %v4245 = vadd.f32 %v4041, %v4244
        %4246 = vmatmul.bf16.gmra.mxu0 %v4161
        %v4247 = vpop.f32.mrf.mxu0
        %v4248 = vadd.f32 %v4041, %v4247
        %v4249 = vpop.f32.mrf.mxu0
        %v4250 = vadd.f32 %v4041, %v4249
        %4251 = vdwg.mxu0
        %v4252 = vmax.f32 %v4173, 0.0
        %v4253 = vmax.f32 %v4175, 0.0
        %v4254 = vmax.f32 %v4178, 0.0
        %v4255 = vmax.f32 %v4180, 0.0
        %v4256 = vmax.f32 %v4183, 0.0
        %v4257 = vmax.f32 %v4185, 0.0
        %v4258 = vmax.f32 %v4188, 0.0
        %v4259 = vmax.f32 %v4190, 0.0
        %v4260 = vmax.f32 %v4193, 0.0
        %v4261 = vmax.f32 %v4195, 0.0
        %v4262 = vmax.f32 %v4198, 0.0
        %v4263 = vmax.f32 %v4200, 0.0
        %v4264 = vmax.f32 %v4203, 0.0
        %v4265 = vmax.f32 %v4205, 0.0
        %v4266 = vmax.f32 %v4208, 0.0
        %v4267 = vmax.f32 %v4210, 0.0
        %v4268 = vmax.f32 %v4213, 0.0
        %v4269 = vmax.f32 %v4215, 0.0
        %v4270 = vmax.f32 %v4218, 0.0
        %v4271 = vmax.f32 %v4220, 0.0
        %v4272 = vmax.f32 %v4223, 0.0
        %v4273 = vmax.f32 %v4225, 0.0
        %v4274 = vmax.f32 %v4228, 0.0
        %v4275 = vmax.f32 %v4230, 0.0
        %v4276 = vmax.f32 %v4233, 0.0
        %v4277 = vmax.f32 %v4235, 0.0
        %v4278 = vmax.f32 %v4238, 0.0
        %v4279 = vmax.f32 %v4240, 0.0
        %v4280 = vmax.f32 %v4243, 0.0
        %v4281 = vmax.f32 %v4245, 0.0
        %v4282 = vmax.f32 %v4248, 0.0
        %v4283 = vmax.f32 %v4250, 0.0
        %v4284 = vpack.c.bf16 %v4253, %v4252
        %v4285 = vpack.c.bf16 %v4255, %v4254
        %v4286 = vpack.c.bf16 %v4257, %v4256
        %v4287 = vpack.c.bf16 %v4259, %v4258
        %v4288 = vpack.c.bf16 %v4261, %v4260
        %v4289 = vpack.c.bf16 %v4263, %v4262
        %v4290 = vpack.c.bf16 %v4265, %v4264
        %v4291 = vpack.c.bf16 %v4267, %v4266
        %v4292 = vpack.c.bf16 %v4269, %v4268
        %v4293 = vpack.c.bf16 %v4271, %v4270
        %v4294 = vpack.c.bf16 %v4273, %v4272
        %v4295 = vpack.c.bf16 %v4275, %v4274
        %v4296 = vpack.c.bf16 %v4277, %v4276
        %v4297 = vpack.c.bf16 %v4279, %v4278
        %v4298 = vpack.c.bf16 %v4281, %v4280
        %v4299 = vpack.c.bf16 %v4283, %v4282
        %v4301 = vperm.slane %v1036, 0
        %v4319 = vunpack.c.l.b16 %v1017
        %v4320 = vunpack.c.l.b16 %v1018
        %v4321 = vunpack.c.l.b16 %v1019
        %v4322 = vunpack.c.l.b16 %v1020
        %v4323 = vunpack.c.l.b16 %v1021
        %v4324 = vunpack.c.l.b16 %v1022
        %v4325 = vunpack.c.l.b16 %v1023
        %v4326 = vunpack.c.l.b16 %v1024
        %v4327 = vunpack.c.l.b16 %v1025
        %v4328 = vunpack.c.l.b16 %v1026
        %v4329 = vunpack.c.l.b16 %v1027
        %v4330 = vunpack.c.l.b16 %v1028
        %v4331 = vunpack.c.l.b16 %v1029
        %v4332 = vunpack.c.l.b16 %v1030
        %v4333 = vunpack.c.l.b16 %v1031
        %v4334 = vunpack.c.l.b16 %v1032
        %v4335 = vpack.c.b16 %v4320, %v4319
        %v4336 = vpack.c.b16 %v4322, %v4321
        %v4337 = vpack.c.b16 %v4324, %v4323
        %v4338 = vpack.c.b16 %v4326, %v4325
        %v4339 = vpack.c.b16 %v4328, %v4327
        %v4340 = vpack.c.b16 %v4330, %v4329
        %v4341 = vpack.c.b16 %v4332, %v4331
        %v4342 = vpack.c.b16 %v4334, %v4333
        %4351 = vmatpush.bf16.msra.mxu0 %v4342
        %4352 = vmatpush.bf16.msra.mxu0 %v4341
        %4353 = vmatpush.bf16.msra.mxu0 %v4340
        %4354 = vmatpush.bf16.msra.mxu0 %v4339
        %4355 = vmatpush.bf16.msra.mxu0 %v4338
        %4356 = vmatpush.bf16.msra.mxu0 %v4337
        %4357 = vmatpush.bf16.msra.mxu0 %v4336
        %4358 = vmatpush.bf16.msra.mxu0 %v4335
        %4359 = vmatmul.bf16.gmra.mxu0 %v4284
        %v4360 = vpop.f32.mrf.mxu0
        %v4361 = vadd.f32 %v4301, %v4360
        %v4362 = vpop.f32.mrf.mxu0
        %v4363 = vadd.f32 %v4301, %v4362
        %4364 = vmatmul.bf16.gmra.mxu0 %v4285
        %v4365 = vpop.f32.mrf.mxu0
        %v4366 = vadd.f32 %v4301, %v4365
        %v4367 = vpop.f32.mrf.mxu0
        %v4368 = vadd.f32 %v4301, %v4367
        %4369 = vmatmul.bf16.gmra.mxu0 %v4286
        %v4370 = vpop.f32.mrf.mxu0
        %v4371 = vadd.f32 %v4301, %v4370
        %v4372 = vpop.f32.mrf.mxu0
        %v4373 = vadd.f32 %v4301, %v4372
        %4374 = vmatmul.bf16.gmra.mxu0 %v4287
        %v4375 = vpop.f32.mrf.mxu0
        %v4376 = vadd.f32 %v4301, %v4375
        %v4377 = vpop.f32.mrf.mxu0
        %v4378 = vadd.f32 %v4301, %v4377
        %4379 = vmatmul.bf16.gmra.mxu0 %v4288
        %v4380 = vpop.f32.mrf.mxu0
        %v4381 = vadd.f32 %v4301, %v4380
        %v4382 = vpop.f32.mrf.mxu0
        %v4383 = vadd.f32 %v4301, %v4382
        %4384 = vmatmul.bf16.gmra.mxu0 %v4289
        %v4385 = vpop.f32.mrf.mxu0
        %v4386 = vadd.f32 %v4301, %v4385
        %v4387 = vpop.f32.mrf.mxu0
        %v4388 = vadd.f32 %v4301, %v4387
        %4389 = vmatmul.bf16.gmra.mxu0 %v4290
        %v4390 = vpop.f32.mrf.mxu0
        %v4391 = vadd.f32 %v4301, %v4390
        %v4392 = vpop.f32.mrf.mxu0
        %v4393 = vadd.f32 %v4301, %v4392
        %4394 = vmatmul.bf16.gmra.mxu0 %v4291
        %v4395 = vpop.f32.mrf.mxu0
        %v4396 = vadd.f32 %v4301, %v4395
        %v4397 = vpop.f32.mrf.mxu0
        %v4398 = vadd.f32 %v4301, %v4397
        %4399 = vmatmul.bf16.gmra.mxu0 %v4292
        %v4400 = vpop.f32.mrf.mxu0
        %v4401 = vadd.f32 %v4301, %v4400
        %v4402 = vpop.f32.mrf.mxu0
        %v4403 = vadd.f32 %v4301, %v4402
        %4404 = vmatmul.bf16.gmra.mxu0 %v4293
        %v4405 = vpop.f32.mrf.mxu0
        %v4406 = vadd.f32 %v4301, %v4405
        %v4407 = vpop.f32.mrf.mxu0
        %v4408 = vadd.f32 %v4301, %v4407
        %4409 = vmatmul.bf16.gmra.mxu0 %v4294
        %v4410 = vpop.f32.mrf.mxu0
        %v4411 = vadd.f32 %v4301, %v4410
        %v4412 = vpop.f32.mrf.mxu0
        %v4413 = vadd.f32 %v4301, %v4412
        %4414 = vmatmul.bf16.gmra.mxu0 %v4295
        %v4415 = vpop.f32.mrf.mxu0
        %v4416 = vadd.f32 %v4301, %v4415
        %v4417 = vpop.f32.mrf.mxu0
        %v4418 = vadd.f32 %v4301, %v4417
        %4419 = vmatmul.bf16.gmra.mxu0 %v4296
        %v4420 = vpop.f32.mrf.mxu0
        %v4421 = vadd.f32 %v4301, %v4420
        %v4422 = vpop.f32.mrf.mxu0
        %v4423 = vadd.f32 %v4301, %v4422
        %4424 = vmatmul.bf16.gmra.mxu0 %v4297
        %v4425 = vpop.f32.mrf.mxu0
        %v4426 = vadd.f32 %v4301, %v4425
        %v4427 = vpop.f32.mrf.mxu0
        %v4428 = vadd.f32 %v4301, %v4427
        %4429 = vmatmul.bf16.gmra.mxu0 %v4298
        %v4430 = vpop.f32.mrf.mxu0
        %v4431 = vadd.f32 %v4301, %v4430
        %v4432 = vpop.f32.mrf.mxu0
        %v4433 = vadd.f32 %v4301, %v4432
        %4434 = vmatmul.bf16.gmra.mxu0 %v4299
        %v4435 = vpop.f32.mrf.mxu0
        %v4436 = vadd.f32 %v4301, %v4435
        %v4437 = vpop.f32.mrf.mxu0
        %v4438 = vadd.f32 %v4301, %v4437
        %4439 = vdwg.mxu0
        %v4440 = vmax.f32 %v4361, %v4363
        %v4441 = vmax.f32 %v4440, %v4366
        %v4442 = vmax.f32 %v4441, %v4368
        %v4443 = vmax.f32 %v4442, %v4371
        %v4444 = vmax.f32 %v4443, %v4373
        %v4445 = vmax.f32 %v4444, %v4376
        %v4446 = vmax.f32 %v4445, %v4378
        %v4447 = vrot.slane %v4446, 4
        %v4448 = vmax.f32 %v4446, %v4447
        %v4449 = vrot.slane %v4448, 2
        %v4450 = vmax.f32 %v4448, %v4449
        %v4451 = vrot.slane %v4450, 1
        %v4452 = vmax.f32 %v4450, %v4451
        %v4453 = vmax.f32 %v4381, %v4383
        %v4454 = vmax.f32 %v4453, %v4386
        %v4455 = vmax.f32 %v4454, %v4388
        %v4456 = vmax.f32 %v4455, %v4391
        %v4457 = vmax.f32 %v4456, %v4393
        %v4458 = vmax.f32 %v4457, %v4396
        %v4459 = vmax.f32 %v4458, %v4398
        %v4460 = vrot.slane %v4459, 4
        %v4461 = vmax.f32 %v4459, %v4460
        %v4462 = vrot.slane %v4461, 2
        %v4463 = vmax.f32 %v4461, %v4462
        %v4464 = vrot.slane %v4463, 1
        %v4465 = vmax.f32 %v4463, %v4464
        %v4466 = vmax.f32 %v4401, %v4403
        %v4467 = vmax.f32 %v4466, %v4406
        %v4468 = vmax.f32 %v4467, %v4408
        %v4469 = vmax.f32 %v4468, %v4411
        %v4470 = vmax.f32 %v4469, %v4413
        %v4471 = vmax.f32 %v4470, %v4416
        %v4472 = vmax.f32 %v4471, %v4418
        %v4473 = vrot.slane %v4472, 4
        %v4474 = vmax.f32 %v4472, %v4473
        %v4475 = vrot.slane %v4474, 2
        %v4476 = vmax.f32 %v4474, %v4475
        %v4477 = vrot.slane %v4476, 1
        %v4478 = vmax.f32 %v4476, %v4477
        %v4479 = vmax.f32 %v4421, %v4423
        %v4480 = vmax.f32 %v4479, %v4426
        %v4481 = vmax.f32 %v4480, %v4428
        %v4482 = vmax.f32 %v4481, %v4431
        %v4483 = vmax.f32 %v4482, %v4433
        %v4484 = vmax.f32 %v4483, %v4436
        %v4485 = vmax.f32 %v4484, %v4438
        %v4486 = vrot.slane %v4485, 4
        %v4487 = vmax.f32 %v4485, %v4486
        %v4488 = vrot.slane %v4487, 2
        %v4489 = vmax.f32 %v4487, %v4488
        %v4490 = vrot.slane %v4489, 1
        %v4491 = vmax.f32 %v4489, %v4490
        %4492 = vst [vmem:[#allocation2 + $0x4] sm:$0x1] %v4452
        %4493 = vst [vmem:[#allocation2 + $0xc] sm:$0x1] %v4465
        %4494 = vst [vmem:[#allocation2 + $0x14] sm:$0x1] %v4478
        %4495 = vst [vmem:[#allocation2 + $0x1c] sm:$0x1] %v4491
        %v4496 = vld [vmem:[#allocation2] sm:$0xff]
        %v4497 = vld [vmem:[#allocation2 + $0x8] sm:$0xff]
        %v4498 = vld [vmem:[#allocation2 + $0x10] sm:$0xff]
        %v4499 = vld [vmem:[#allocation2 + $0x18] sm:$0xff]
        %v4501 = vperm.slane %v1102, 0
        %v4502 = vperm.slane %v1102, 1
        %v4503 = vperm.slane %v1102, 2
        %4507 = vmatpush.msra.mxu0 %v1099
        %4508 = vmatpush.msra.mxu0 %v1096
        %4509 = vmatpush.msra.mxu0 %v1093
        %4510 = vmatpush.msra.mxu0 %v1090
        %4511 = vmatpush.msra.mxu0 %v1087
        %4512 = vmatpush.msra.mxu0 %v1084
        %4513 = vmatpush.msra.mxu0 %v1081
        %4514 = vmatpush.msra.mxu0 %v1078
        %4515 = vmatpush.msra.mxu0 %v1075
        %4516 = vmatpush.msra.mxu0 %v1072
        %4517 = vmatpush.msra.mxu0 %v1069
        %4518 = vmatpush.msra.mxu0 %v1066
        %4519 = vmatpush.msra.mxu0 %v1063
        %4520 = vmatpush.msra.mxu0 %v1060
        %4521 = vmatpush.msra.mxu0 %v1057
        %4522 = vmatpush.msra.mxu0 %v1054
        %4523 = vmatmul.f32.gmra.mxu0 %v4496
        %v4524 = vpop.f32.mrf.mxu0
        %v4525 = vadd.f32 %v4501, %v4524
        %4526 = vmatmul.f32.gmra.mxu0 %v4497
        %v4527 = vpop.f32.mrf.mxu0
        %v4528 = vadd.f32 %v4501, %v4527
        %4529 = vmatmul.f32.gmra.mxu0 %v4498
        %v4530 = vpop.f32.mrf.mxu0
        %v4531 = vadd.f32 %v4501, %v4530
        %4532 = vmatmul.f32.gmra.mxu0 %v4499
        %v4533 = vpop.f32.mrf.mxu0
        %v4534 = vadd.f32 %v4501, %v4533
        %4535 = vdwg.mxu0
        %4536 = vmatpush.msra.mxu0 %v1100
        %4537 = vmatpush.msra.mxu0 %v1097
        %4538 = vmatpush.msra.mxu0 %v1094
        %4539 = vmatpush.msra.mxu0 %v1091
        %4540 = vmatpush.msra.mxu0 %v1088
        %4541 = vmatpush.msra.mxu0 %v1085
        %4542 = vmatpush.msra.mxu0 %v1082
        %4543 = vmatpush.msra.mxu0 %v1079
        %4544 = vmatpush.msra.mxu0 %v1076
        %4545 = vmatpush.msra.mxu0 %v1073
        %4546 = vmatpush.msra.mxu0 %v1070
        %4547 = vmatpush.msra.mxu0 %v1067
        %4548 = vmatpush.msra.mxu0 %v1064
        %4549 = vmatpush.msra.mxu0 %v1061
        %4550 = vmatpush.msra.mxu0 %v1058
        %4551 = vmatpush.msra.mxu0 %v1055
        %4552 = vmatmul.f32.gmra.mxu0 %v4496
        %v4553 = vpop.f32.mrf.mxu0
        %v4554 = vadd.f32 %v4502, %v4553
        %4555 = vmatmul.f32.gmra.mxu0 %v4497
        %v4556 = vpop.f32.mrf.mxu0
        %v4557 = vadd.f32 %v4502, %v4556
        %4558 = vmatmul.f32.gmra.mxu0 %v4498
        %v4559 = vpop.f32.mrf.mxu0
        %v4560 = vadd.f32 %v4502, %v4559
        %4561 = vmatmul.f32.gmra.mxu0 %v4499
        %v4562 = vpop.f32.mrf.mxu0
        %v4563 = vadd.f32 %v4502, %v4562
        %4564 = vdwg.mxu0
        %4565 = vmatpush.msra.mxu0 %v1101
        %4566 = vmatpush.msra.mxu0 %v1098
        %4567 = vmatpush.msra.mxu0 %v1095
        %4568 = vmatpush.msra.mxu0 %v1092
        %4569 = vmatpush.msra.mxu0 %v1089
        %4570 = vmatpush.msra.mxu0 %v1086
        %4571 = vmatpush.msra.mxu0 %v1083
        %4572 = vmatpush.msra.mxu0 %v1080
        %4573 = vmatpush.msra.mxu0 %v1077
        %4574 = vmatpush.msra.mxu0 %v1074
        %4575 = vmatpush.msra.mxu0 %v1071
        %4576 = vmatpush.msra.mxu0 %v1068
        %4577 = vmatpush.msra.mxu0 %v1065
        %4578 = vmatpush.msra.mxu0 %v1062
        %4579 = vmatpush.msra.mxu0 %v1059
        %4580 = vmatpush.msra.mxu0 %v1056
        %4581 = vmatmul.f32.gmra.mxu0 %v4496
        %v4582 = vpop.f32.mrf.mxu0
        %v4583 = vadd.f32 %v4503, %v4582
        %4584 = vmatmul.f32.gmra.mxu0 %v4497
        %v4585 = vpop.f32.mrf.mxu0
        %v4586 = vadd.f32 %v4503, %v4585
        %4587 = vmatmul.f32.gmra.mxu0 %v4498
        %v4588 = vpop.f32.mrf.mxu0
        %v4589 = vadd.f32 %v4503, %v4588
        %4590 = vmatmul.f32.gmra.mxu0 %v4499
        %v4591 = vpop.f32.mrf.mxu0
        %v4592 = vadd.f32 %v4503, %v4591
        %4593 = vdwg.mxu0
        %4594 = vmatpush.xpose.msra.mxu0 0.0
        %4595 = vmatpush.xpose.msra.mxu0 0.0
        %4596 = vmatpush.xpose.msra.mxu0 0.0
        %4597 = vmatpush.xpose.msra.mxu0 0.0
        %4598 = vmatpush.xpose.msra.mxu0 0.0
        %4599 = vmatpush.xpose.msra.mxu0 0.0
        %4600 = vmatpush.xpose.msra.mxu0 0.0
        %4601 = vmatpush.xpose.msra.mxu0 0.0
        %4602 = vmatpush.xpose.msra.mxu0 0.0
        %4603 = vmatpush.xpose.msra.mxu0 0.0
        %4604 = vmatpush.xpose.msra.mxu0 0.0
        %4605 = vmatpush.xpose.msra.mxu0 0.0
        %4606 = vmatpush.xpose.msra.mxu0 0.0
        %4607 = vmatpush.xpose.msra.mxu0 0.0
        %4608 = vmatpush.xpose.msra.mxu0 0.0
        %4609 = vmatpush.xpose.msra.mxu0 %v4554
        %4610 = vmatmul.f32.gmra.mxu0 %v4525
        %v4611 = vpop.f32.mrf.mxu0
        %v4612 = vadd.f32 0.0, %v4611
        %4613 = vdwg.mxu0
        %4614 = vmatpush.xpose.msra.mxu0 0.0
        %4615 = vmatpush.xpose.msra.mxu0 0.0
        %4616 = vmatpush.xpose.msra.mxu0 0.0
        %4617 = vmatpush.xpose.msra.mxu0 0.0
        %4618 = vmatpush.xpose.msra.mxu0 0.0
        %4619 = vmatpush.xpose.msra.mxu0 0.0
        %4620 = vmatpush.xpose.msra.mxu0 0.0
        %4621 = vmatpush.xpose.msra.mxu0 0.0
        %4622 = vmatpush.xpose.msra.mxu0 0.0
        %4623 = vmatpush.xpose.msra.mxu0 0.0
        %4624 = vmatpush.xpose.msra.mxu0 0.0
        %4625 = vmatpush.xpose.msra.mxu0 0.0
        %4626 = vmatpush.xpose.msra.mxu0 0.0
        %4627 = vmatpush.xpose.msra.mxu0 0.0
        %4628 = vmatpush.xpose.msra.mxu0 0.0
        %4629 = vmatpush.xpose.msra.mxu0 %v4557
        %4630 = vmatmul.f32.gmra.mxu0 %v4528
        %v4631 = vpop.f32.mrf.mxu0
        %v4632 = vadd.f32 0.0, %v4631
        %4633 = vdwg.mxu0
        %4634 = vmatpush.xpose.msra.mxu0 0.0
        %4635 = vmatpush.xpose.msra.mxu0 0.0
        %4636 = vmatpush.xpose.msra.mxu0 0.0
        %4637 = vmatpush.xpose.msra.mxu0 0.0
        %4638 = vmatpush.xpose.msra.mxu0 0.0
        %4639 = vmatpush.xpose.msra.mxu0 0.0
        %4640 = vmatpush.xpose.msra.mxu0 0.0
        %4641 = vmatpush.xpose.msra.mxu0 0.0
        %4642 = vmatpush.xpose.msra.mxu0 0.0
        %4643 = vmatpush.xpose.msra.mxu0 0.0
        %4644 = vmatpush.xpose.msra.mxu0 0.0
        %4645 = vmatpush.xpose.msra.mxu0 0.0
        %4646 = vmatpush.xpose.msra.mxu0 0.0
        %4647 = vmatpush.xpose.msra.mxu0 0.0
        %4648 = vmatpush.xpose.msra.mxu0 0.0
        %4649 = vmatpush.xpose.msra.mxu0 %v4560
        %4650 = vmatmul.f32.gmra.mxu0 %v4531
        %v4651 = vpop.f32.mrf.mxu0
        %v4652 = vadd.f32 0.0, %v4651
        %4653 = vdwg.mxu0
        %4654 = vmatpush.xpose.msra.mxu0 0.0
        %4655 = vmatpush.xpose.msra.mxu0 0.0
        %4656 = vmatpush.xpose.msra.mxu0 0.0
        %4657 = vmatpush.xpose.msra.mxu0 0.0
        %4658 = vmatpush.xpose.msra.mxu0 0.0
        %4659 = vmatpush.xpose.msra.mxu0 0.0
        %4660 = vmatpush.xpose.msra.mxu0 0.0
        %4661 = vmatpush.xpose.msra.mxu0 0.0
        %4662 = vmatpush.xpose.msra.mxu0 0.0
        %4663 = vmatpush.xpose.msra.mxu0 0.0
        %4664 = vmatpush.xpose.msra.mxu0 0.0
        %4665 = vmatpush.xpose.msra.mxu0 0.0
        %4666 = vmatpush.xpose.msra.mxu0 0.0
        %4667 = vmatpush.xpose.msra.mxu0 0.0
        %4668 = vmatpush.xpose.msra.mxu0 0.0
        %4669 = vmatpush.xpose.msra.mxu0 %v4563
        %4670 = vmatmul.f32.gmra.mxu0 %v4534
        %v4671 = vpop.f32.mrf.mxu0
        %v4672 = vadd.f32 0.0, %v4671
        %4673 = vdwg.mxu0
        %v4674 = vmul.f32 %v4612, 0.088388346
        %v4675 = vmul.f32 %v4632, 0.088388346
        %v4676 = vmul.f32 %v4652, 0.088388346
        %v4677 = vmul.f32 %v4672, 0.088388346
        %v4678 = vlaneseq
        %v4679 = vand.u32 %v4678, 127
        %vm4680 = vcmp.lt.s32.totalorder %v4679, 5
        %v4681 = vsel %vm4680, 1, 0
        %vm4682 = vcmp.eq.s32.totalorder %v4681, 1
        %v4683 = vsel %vm4682, %v4674, -1e+30
        %v4684 = vsel %vm4682, %v4675, -1e+30
        %v4685 = vsel %vm4682, %v4676, -1e+30
        %v4686 = vsel %vm4682, %v4677, -1e+30
        %vm4687 = vcmask 64512
        %v4688 = vsel %vm4687, %v4683, -inf
        %4689 = vmax.xlane.f32.xlu0 %v4688
        %v4690 = vpop.xlane.xlu0 %4689
        %v4691 = vsel %vm4687, %v4684, -inf
        %4692 = vmax.xlane.f32.xlu0 %v4691
        %v4693 = vpop.xlane.xlu0 %4692
        %v4694 = vsel %vm4687, %v4685, -inf
        %4695 = vmax.xlane.f32.xlu0 %v4694
        %v4696 = vpop.xlane.xlu0 %4695
        %v4697 = vsel %vm4687, %v4686, -inf
        %4698 = vmax.xlane.f32.xlu0 %v4697
        %v4699 = vpop.xlane.xlu0 %4698
        %v4700 = vsub.f32 %v4683, %v4690
        %v4701 = vsub.f32 %v4684, %v4693
        %v4702 = vsub.f32 %v4685, %v4696
        %v4703 = vsub.f32 %v4686, %v4699
        %v4704 = vmul.f32 %v4700, 1.442695
        %v4705 = vpow.pop %v4704
        %v4706 = vmul.f32 %v4701, 1.442695
        %v4707 = vpow.pop %v4706
        %v4708 = vmul.f32 %v4702, 1.442695
        %v4709 = vpow.pop %v4708
        %v4710 = vmul.f32 %v4703, 1.442695
        %v4711 = vpow.pop %v4710
        %v4712 = vsel %vm4687, %v4705, 0.0
        %4713 = vadd.xlane.f32.xlu0 %v4712
        %v4714 = vpop.xlane.xlu0 %4713
        %v4715 = vsel %vm4687, %v4707, 0.0
        %4716 = vadd.xlane.f32.xlu0 %v4715
        %v4717 = vpop.xlane.xlu0 %4716
        %v4718 = vsel %vm4687, %v4709, 0.0
        %4719 = vadd.xlane.f32.xlu0 %v4718
        %v4720 = vpop.xlane.xlu0 %4719
        %v4721 = vsel %vm4687, %v4711, 0.0
        %4722 = vadd.xlane.f32.xlu0 %v4721
        %v4723 = vpop.xlane.xlu0 %4722
        %v4724 = vrcp.pop %v4714
        %v4725 = vmul.f32 %v4714, %v4724
        %v4726 = vsub.f32 1.0, %v4725
        %v4727 = vmul.f32 %v4724, %v4726
        %v4728 = vadd.f32 %v4724, %v4727
        %vm4729 = vweird.f32 %v4714
        %vm4730 = vweird.f32 %v4724
        %vm4731 = vmor %vm4729, %vm4730
        %v4732 = vsel %vm4731, %v4724, %v4728
        %v4733 = vand.u32 2147483647, %v4714
        %vm4734 = vcmp.eq.f32.partialorder %v4733, 8.507059e+37
        %v4735 = vand.u32 %v4714, 2147483648
        %v4736 = vor.u32 1.1754944e-38, %v4735
        %v4737 = vsel %vm4734, %v4736, %v4732
        %v4738 = vmul.f32 %v4705, %v4737
        %v4739 = vrcp.pop %v4717
        %v4740 = vmul.f32 %v4717, %v4739
        %v4741 = vsub.f32 1.0, %v4740
        %v4742 = vmul.f32 %v4739, %v4741
        %v4743 = vadd.f32 %v4739, %v4742
        %vm4744 = vweird.f32 %v4717
        %vm4745 = vweird.f32 %v4739
        %vm4746 = vmor %vm4744, %vm4745
        %v4747 = vsel %vm4746, %v4739, %v4743
        %v4748 = vand.u32 2147483647, %v4717
        %vm4749 = vcmp.eq.f32.partialorder %v4748, 8.507059e+37
        %v4750 = vand.u32 %v4717, 2147483648
        %v4751 = vor.u32 1.1754944e-38, %v4750
        %v4752 = vsel %vm4749, %v4751, %v4747
        %v4753 = vmul.f32 %v4707, %v4752
        %v4754 = vrcp.pop %v4720
        %v4755 = vmul.f32 %v4720, %v4754
        %v4756 = vsub.f32 1.0, %v4755
        %v4757 = vmul.f32 %v4754, %v4756
        %v4758 = vadd.f32 %v4754, %v4757
        %vm4759 = vweird.f32 %v4720
        %vm4760 = vweird.f32 %v4754
        %vm4761 = vmor %vm4759, %vm4760
        %v4762 = vsel %vm4761, %v4754, %v4758
        %v4763 = vand.u32 2147483647, %v4720
        %vm4764 = vcmp.eq.f32.partialorder %v4763, 8.507059e+37
        %v4765 = vand.u32 %v4720, 2147483648
        %v4766 = vor.u32 1.1754944e-38, %v4765
        %v4767 = vsel %vm4764, %v4766, %v4762
        %v4768 = vmul.f32 %v4709, %v4767
        %v4769 = vrcp.pop %v4723
        %v4770 = vmul.f32 %v4723, %v4769
        %v4771 = vsub.f32 1.0, %v4770
        %v4772 = vmul.f32 %v4769, %v4771
        %v4773 = vadd.f32 %v4769, %v4772
        %vm4774 = vweird.f32 %v4723
        %vm4775 = vweird.f32 %v4769
        %vm4776 = vmor %vm4774, %vm4775
        %v4777 = vsel %vm4776, %v4769, %v4773
        %v4778 = vand.u32 2147483647, %v4723
        %vm4779 = vcmp.eq.f32.partialorder %v4778, 8.507059e+37
        %v4780 = vand.u32 %v4723, 2147483648
        %v4781 = vor.u32 1.1754944e-38, %v4780
        %v4782 = vsel %vm4779, %v4781, %v4777
        %v4783 = vmul.f32 %v4711, %v4782
        %v4785 = vsel %vm4687, %v4738, 0
        %4787 = vmatpush.msra.mxu0 0.0
        %4788 = vmatpush.msra.mxu0 0.0
        %4789 = vmatpush.msra.mxu0 0.0
        %4790 = vmatpush.msra.mxu0 0.0
        %4791 = vmatpush.msra.mxu0 0.0
        %4792 = vmatpush.msra.mxu0 0.0
        %4793 = vmatpush.msra.mxu0 0.0
        %4794 = vmatpush.msra.mxu0 0.0
        %4795 = vmatpush.msra.mxu0 0.0
        %4796 = vmatpush.msra.mxu0 0.0
        %4797 = vmatpush.msra.mxu0 0.0
        %4798 = vmatpush.msra.mxu0 0.0
        %4799 = vmatpush.msra.mxu0 0.0
        %4800 = vmatpush.msra.mxu0 0.0
        %4801 = vmatpush.msra.mxu0 0.0
        %4802 = vmatpush.msra.mxu0 %v4583
        %4803 = vmatmul.f32.gmra.mxu0 %v4785
        %v4804 = vpop.f32.mrf.mxu0
        %v4805 = vadd.f32 0.0, %v4804
        %4806 = vdwg.mxu0
        %v4808 = vsel %vm4687, %v4753, 0
        %4810 = vmatpush.msra.mxu0 0.0
        %4811 = vmatpush.msra.mxu0 0.0
        %4812 = vmatpush.msra.mxu0 0.0
        %4813 = vmatpush.msra.mxu0 0.0
        %4814 = vmatpush.msra.mxu0 0.0
        %4815 = vmatpush.msra.mxu0 0.0
        %4816 = vmatpush.msra.mxu0 0.0
        %4817 = vmatpush.msra.mxu0 0.0
        %4818 = vmatpush.msra.mxu0 0.0
        %4819 = vmatpush.msra.mxu0 0.0
        %4820 = vmatpush.msra.mxu0 0.0
        %4821 = vmatpush.msra.mxu0 0.0
        %4822 = vmatpush.msra.mxu0 0.0
        %4823 = vmatpush.msra.mxu0 0.0
        %4824 = vmatpush.msra.mxu0 0.0
        %4825 = vmatpush.msra.mxu0 %v4586
        %4826 = vmatmul.f32.gmra.mxu0 %v4808
        %v4827 = vpop.f32.mrf.mxu0
        %v4828 = vadd.f32 0.0, %v4827
        %4829 = vdwg.mxu0
        %v4831 = vsel %vm4687, %v4768, 0
        %4833 = vmatpush.msra.mxu0 0.0
        %4834 = vmatpush.msra.mxu0 0.0
        %4835 = vmatpush.msra.mxu0 0.0
        %4836 = vmatpush.msra.mxu0 0.0
        %4837 = vmatpush.msra.mxu0 0.0
        %4838 = vmatpush.msra.mxu0 0.0
        %4839 = vmatpush.msra.mxu0 0.0
        %4840 = vmatpush.msra.mxu0 0.0
        %4841 = vmatpush.msra.mxu0 0.0
        %4842 = vmatpush.msra.mxu0 0.0
        %4843 = vmatpush.msra.mxu0 0.0
        %4844 = vmatpush.msra.mxu0 0.0
        %4845 = vmatpush.msra.mxu0 0.0
        %4846 = vmatpush.msra.mxu0 0.0
        %4847 = vmatpush.msra.mxu0 0.0
        %4848 = vmatpush.msra.mxu0 %v4589
        %4849 = vmatmul.f32.gmra.mxu0 %v4831
        %v4850 = vpop.f32.mrf.mxu0
        %v4851 = vadd.f32 0.0, %v4850
        %4852 = vdwg.mxu0
        %v4854 = vsel %vm4687, %v4783, 0
        %4856 = vmatpush.msra.mxu0 0.0
        %4857 = vmatpush.msra.mxu0 0.0
        %4858 = vmatpush.msra.mxu0 0.0
        %4859 = vmatpush.msra.mxu0 0.0
        %4860 = vmatpush.msra.mxu0 0.0
        %4861 = vmatpush.msra.mxu0 0.0
        %4862 = vmatpush.msra.mxu0 0.0
        %4863 = vmatpush.msra.mxu0 0.0
        %4864 = vmatpush.msra.mxu0 0.0
        %4865 = vmatpush.msra.mxu0 0.0
        %4866 = vmatpush.msra.mxu0 0.0
        %4867 = vmatpush.msra.mxu0 0.0
        %4868 = vmatpush.msra.mxu0 0.0
        %4869 = vmatpush.msra.mxu0 0.0
        %4870 = vmatpush.msra.mxu0 0.0
        %4871 = vmatpush.msra.mxu0 %v4592
        %4872 = vmatmul.f32.gmra.mxu0 %v4854
        %v4873 = vpop.f32.mrf.mxu0
        %v4874 = vadd.f32 0.0, %v4873
        %4875 = vdwg.mxu0
        %v4877 = vperm.slane %v1119, 0
        %4879 = vmatpush.msra.mxu0 %v1118
        %4880 = vmatpush.msra.mxu0 %v1117
        %4881 = vmatpush.msra.mxu0 %v1116
        %4882 = vmatpush.msra.mxu0 %v1115
        %4883 = vmatpush.msra.mxu0 %v1114
        %4884 = vmatpush.msra.mxu0 %v1113
        %4885 = vmatpush.msra.mxu0 %v1112
        %4886 = vmatpush.msra.mxu0 %v1111
        %4887 = vmatpush.msra.mxu0 %v1110
        %4888 = vmatpush.msra.mxu0 %v1109
        %4889 = vmatpush.msra.mxu0 %v1108
        %4890 = vmatpush.msra.mxu0 %v1107
        %4891 = vmatpush.msra.mxu0 %v1106
        %4892 = vmatpush.msra.mxu0 %v1105
        %4893 = vmatpush.msra.mxu0 %v1104
        %4894 = vmatpush.msra.mxu0 %v1103
        %4895 = vmatmul.f32.gmra.mxu0 %v4805
        %v4896 = vpop.f32.mrf.mxu0
        %v4897 = vadd.f32 %v4877, %v4896
        %4898 = vmatmul.f32.gmra.mxu0 %v4828
        %v4899 = vpop.f32.mrf.mxu0
        %v4900 = vadd.f32 %v4877, %v4899
        %4901 = vmatmul.f32.gmra.mxu0 %v4851
        %v4902 = vpop.f32.mrf.mxu0
        %v4903 = vadd.f32 %v4877, %v4902
        %4904 = vmatmul.f32.gmra.mxu0 %v4874
        %v4905 = vpop.f32.mrf.mxu0
        %v4906 = vadd.f32 %v4877, %v4905
        %4907 = vdwg.mxu0
        %v4908 = vadd.f32 %v4496, %v4897
        %v4909 = vadd.f32 %v4497, %v4900
        %v4910 = vadd.f32 %v4498, %v4903
        %v4911 = vadd.f32 %v4499, %v4906
        %4912 = vadd.xlane.f32.xlu0 %v4908
        %v4913 = vpop.xlane.xlu0 %4912
        %4914 = vadd.xlane.f32.xlu0 %v4909
        %v4915 = vpop.xlane.xlu0 %4914
        %4916 = vadd.xlane.f32.xlu0 %v4910
        %v4917 = vpop.xlane.xlu0 %4916
        %4918 = vadd.xlane.f32.xlu0 %v4911
        %v4919 = vpop.xlane.xlu0 %4918
        %v4920 = vrcp.pop 128.0
        %v4921 = vmul.f32 128.0, %v4920
        %v4922 = vsub.f32 1.0, %v4921
        %v4923 = vmul.f32 %v4920, %v4922
        %v4924 = vadd.f32 %v4920, %v4923
        %vm4925 = vweird.f32 %v4920
        %v4926 = vsel %vm4925, %v4920, %v4924
        %v4927 = vmul.f32 %v4913, %v4926
        %v4928 = vmul.f32 %v4915, %v4926
        %v4929 = vmul.f32 %v4917, %v4926
        %v4930 = vmul.f32 %v4919, %v4926
        %v4931 = vsub.f32 %v4908, %v4927
        %v4932 = vsub.f32 %v4909, %v4928
        %v4933 = vsub.f32 %v4910, %v4929
        %v4934 = vsub.f32 %v4911, %v4930
        %v4935 = vmul.f32 %v4931, %v4931
        %v4936 = vmul.f32 %v4932, %v4932
        %v4937 = vmul.f32 %v4933, %v4933
        %v4938 = vmul.f32 %v4934, %v4934
        %4939 = vadd.xlane.f32.xlu0 %v4935
        %v4940 = vpop.xlane.xlu0 %4939
        %4941 = vadd.xlane.f32.xlu0 %v4936
        %v4942 = vpop.xlane.xlu0 %4941
        %4943 = vadd.xlane.f32.xlu0 %v4937
        %v4944 = vpop.xlane.xlu0 %4943
        %4945 = vadd.xlane.f32.xlu0 %v4938
        %v4946 = vpop.xlane.xlu0 %4945
        %v4947 = vmul.f32 %v4940, %v4926
        %v4948 = vmul.f32 %v4942, %v4926
        %v4949 = vmul.f32 %v4944, %v4926
        %v4950 = vmul.f32 %v4946, %v4926
        %v4951 = vadd.f32 %v4947, 1e-05
        %v4952 = vadd.f32 %v4948, 1e-05
        %v4953 = vadd.f32 %v4949, 1e-05
        %v4954 = vadd.f32 %v4950, 1e-05
        %v4955 = vrsqrt.pop %v4951
        %v4956 = vmul.f32 %v4955, %v4951
        %v4957 = vmul.f32 %v4956, %v4955
        %v4958 = vmul.f32 0.5, %v4957
        %v4959 = vsub.f32 1.5, %v4958
        %v4960 = vmul.f32 %v4955, %v4959
        %vm4961 = vweird.f32 %v4951
        %vm4962 = vweird.f32 %v4955
        %vm4963 = vmor %vm4961, %vm4962
        %v4964 = vsel %vm4963, %v4955, %v4960
        %v4965 = vrsqrt.pop %v4952
        %v4966 = vmul.f32 %v4965, %v4952
        %v4967 = vmul.f32 %v4966, %v4965
        %v4968 = vmul.f32 0.5, %v4967
        %v4969 = vsub.f32 1.5, %v4968
        %v4970 = vmul.f32 %v4965, %v4969
        %vm4971 = vweird.f32 %v4952
        %vm4972 = vweird.f32 %v4965
        %vm4973 = vmor %vm4971, %vm4972
        %v4974 = vsel %vm4973, %v4965, %v4970
        %v4975 = vrsqrt.pop %v4953
        %v4976 = vmul.f32 %v4975, %v4953
        %v4977 = vmul.f32 %v4976, %v4975
        %v4978 = vmul.f32 0.5, %v4977
        %v4979 = vsub.f32 1.5, %v4978
        %v4980 = vmul.f32 %v4975, %v4979
        %vm4981 = vweird.f32 %v4953
        %vm4982 = vweird.f32 %v4975
        %vm4983 = vmor %vm4981, %vm4982
        %v4984 = vsel %vm4983, %v4975, %v4980
        %v4985 = vrsqrt.pop %v4954
        %v4986 = vmul.f32 %v4985, %v4954
        %v4987 = vmul.f32 %v4986, %v4985
        %v4988 = vmul.f32 0.5, %v4987
        %v4989 = vsub.f32 1.5, %v4988
        %v4990 = vmul.f32 %v4985, %v4989
        %vm4991 = vweird.f32 %v4954
        %vm4992 = vweird.f32 %v4985
        %vm4993 = vmor %vm4991, %vm4992
        %v4994 = vsel %vm4993, %v4985, %v4990
        %v4995 = vmul.f32 %v4931, %v4964
        %v4996 = vmul.f32 %v4932, %v4974
        %v4997 = vmul.f32 %v4933, %v4984
        %v4998 = vmul.f32 %v4934, %v4994
        %v5000 = vperm.slane %v1120, 0
        %v5002 = vmul.f32 %v4995, %v5000
        %v5003 = vmul.f32 %v4996, %v5000
        %v5004 = vmul.f32 %v4997, %v5000
        %v5005 = vmul.f32 %v4998, %v5000
        %v5007 = vperm.slane %v1122, 0
        %v5009 = vadd.f32 %v5002, %v5007
        %v5010 = vadd.f32 %v5003, %v5007
        %v5011 = vadd.f32 %v5004, %v5007
        %v5012 = vadd.f32 %v5005, %v5007
        %v5014 = vperm.slane %v1156, 0
        %v5015 = vperm.slane %v1156, 1
        %5018 = vmatpush.msra.mxu0 %v1154
        %5019 = vmatpush.msra.mxu0 %v1152
        %5020 = vmatpush.msra.mxu0 %v1150
        %5021 = vmatpush.msra.mxu0 %v1148
        %5022 = vmatpush.msra.mxu0 %v1146
        %5023 = vmatpush.msra.mxu0 %v1144
        %5024 = vmatpush.msra.mxu0 %v1142
        %5025 = vmatpush.msra.mxu0 %v1140
        %5026 = vmatpush.msra.mxu0 %v1138
        %5027 = vmatpush.msra.mxu0 %v1136
        %5028 = vmatpush.msra.mxu0 %v1134
        %5029 = vmatpush.msra.mxu0 %v1132
        %5030 = vmatpush.msra.mxu0 %v1130
        %5031 = vmatpush.msra.mxu0 %v1128
        %5032 = vmatpush.msra.mxu0 %v1126
        %5033 = vmatpush.msra.mxu0 %v1124
        %5034 = vmatmul.f32.gmra.mxu0 %v5009
        %v5035 = vpop.f32.mrf.mxu0
        %v5036 = vadd.f32 %v5014, %v5035
        %5037 = vmatmul.f32.gmra.mxu0 %v5010
        %v5038 = vpop.f32.mrf.mxu0
        %v5039 = vadd.f32 %v5014, %v5038
        %5040 = vmatmul.f32.gmra.mxu0 %v5011
        %v5041 = vpop.f32.mrf.mxu0
        %v5042 = vadd.f32 %v5014, %v5041
        %5043 = vmatmul.f32.gmra.mxu0 %v5012
        %v5044 = vpop.f32.mrf.mxu0
        %v5045 = vadd.f32 %v5014, %v5044
        %5046 = vdwg.mxu0
        %5047 = vmatpush.msra.mxu0 %v1155
        %5048 = vmatpush.msra.mxu0 %v1153
        %5049 = vmatpush.msra.mxu0 %v1151
        %5050 = vmatpush.msra.mxu0 %v1149
        %5051 = vmatpush.msra.mxu0 %v1147
        %5052 = vmatpush.msra.mxu0 %v1145
        %5053 = vmatpush.msra.mxu0 %v1143
        %5054 = vmatpush.msra.mxu0 %v1141
        %5055 = vmatpush.msra.mxu0 %v1139
        %5056 = vmatpush.msra.mxu0 %v1137
        %5057 = vmatpush.msra.mxu0 %v1135
        %5058 = vmatpush.msra.mxu0 %v1133
        %5059 = vmatpush.msra.mxu0 %v1131
        %5060 = vmatpush.msra.mxu0 %v1129
        %5061 = vmatpush.msra.mxu0 %v1127
        %5062 = vmatpush.msra.mxu0 %v1125
        %5063 = vmatmul.f32.gmra.mxu0 %v5009
        %v5064 = vpop.f32.mrf.mxu0
        %v5065 = vadd.f32 %v5015, %v5064
        %5066 = vmatmul.f32.gmra.mxu0 %v5010
        %v5067 = vpop.f32.mrf.mxu0
        %v5068 = vadd.f32 %v5015, %v5067
        %5069 = vmatmul.f32.gmra.mxu0 %v5011
        %v5070 = vpop.f32.mrf.mxu0
        %v5071 = vadd.f32 %v5015, %v5070
        %5072 = vmatmul.f32.gmra.mxu0 %v5012
        %v5073 = vpop.f32.mrf.mxu0
        %v5074 = vadd.f32 %v5015, %v5073
        %5075 = vdwg.mxu0
        %v5076 = vmax.f32 %v5036, 0.0
        %v5077 = vmax.f32 %v5065, 0.0
        %v5078 = vmax.f32 %v5039, 0.0
        %v5079 = vmax.f32 %v5068, 0.0
        %v5080 = vmax.f32 %v5042, 0.0
        %v5081 = vmax.f32 %v5071, 0.0
        %v5082 = vmax.f32 %v5045, 0.0
        %v5083 = vmax.f32 %v5074, 0.0
        %5084 = vmatpush.msra.mxu0 %v1172
        %5085 = vmatpush.msra.mxu0 %v1171
        %5086 = vmatpush.msra.mxu0 %v1170
        %5087 = vmatpush.msra.mxu0 %v1169
        %5088 = vmatpush.msra.mxu0 %v1168
        %5089 = vmatpush.msra.mxu0 %v1167
        %5090 = vmatpush.msra.mxu0 %v1166
        %5091 = vmatpush.msra.mxu0 %v1165
        %5092 = vmatpush.msra.mxu0 %v1164
        %5093 = vmatpush.msra.mxu0 %v1163
        %5094 = vmatpush.msra.mxu0 %v1162
        %5095 = vmatpush.msra.mxu0 %v1161
        %5096 = vmatpush.msra.mxu0 %v1160
        %5097 = vmatpush.msra.mxu0 %v1159
        %5098 = vmatpush.msra.mxu0 %v1158
        %5099 = vmatpush.msra.mxu0 %v1157
        %5100 = vmatmul.f32.gmra.mxu0 %v5076
        %v5101 = vpop.f32.mrf.mxu0
        %v5102 = vadd.f32 0.0, %v5101
        %5103 = vmatmul.f32.gmra.mxu0 %v5078
        %v5104 = vpop.f32.mrf.mxu0
        %v5105 = vadd.f32 0.0, %v5104
        %5106 = vmatmul.f32.gmra.mxu0 %v5080
        %v5107 = vpop.f32.mrf.mxu0
        %v5108 = vadd.f32 0.0, %v5107
        %5109 = vmatmul.f32.gmra.mxu0 %v5082
        %v5110 = vpop.f32.mrf.mxu0
        %v5111 = vadd.f32 0.0, %v5110
        %5112 = vdwg.mxu0
        %5113 = vmatpush.msra.mxu0 %v1188
        %5114 = vmatpush.msra.mxu0 %v1187
        %5115 = vmatpush.msra.mxu0 %v1186
        %5116 = vmatpush.msra.mxu0 %v1185
        %5117 = vmatpush.msra.mxu0 %v1184
        %5118 = vmatpush.msra.mxu0 %v1183
        %5119 = vmatpush.msra.mxu0 %v1182
        %5120 = vmatpush.msra.mxu0 %v1181
        %5121 = vmatpush.msra.mxu0 %v1180
        %5122 = vmatpush.msra.mxu0 %v1179
        %5123 = vmatpush.msra.mxu0 %v1178
        %5124 = vmatpush.msra.mxu0 %v1177
        %5125 = vmatpush.msra.mxu0 %v1176
        %5126 = vmatpush.msra.mxu0 %v1175
        %5127 = vmatpush.msra.mxu0 %v1174
        %5128 = vmatpush.msra.mxu0 %v1173
        %5129 = vmatmul.f32.gmra.mxu0 %v5077
        %v5130 = vpop.f32.mrf.mxu0
        %v5131 = vadd.f32 %v5102, %v5130
        %5132 = vmatmul.f32.gmra.mxu0 %v5079
        %v5133 = vpop.f32.mrf.mxu0
        %v5134 = vadd.f32 %v5105, %v5133
        %5135 = vmatmul.f32.gmra.mxu0 %v5081
        %v5136 = vpop.f32.mrf.mxu0
        %v5137 = vadd.f32 %v5108, %v5136
        %5138 = vmatmul.f32.gmra.mxu0 %v5083
        %v5139 = vpop.f32.mrf.mxu0
        %v5140 = vadd.f32 %v5111, %v5139
        %5141 = vdwg.mxu0
        %v5142 = vadd.f32 %v5009, %v5131
        %v5143 = vadd.f32 %v5010, %v5134
        %v5144 = vadd.f32 %v5011, %v5137
        %v5145 = vadd.f32 %v5012, %v5140
        %v5147 = vperm.slane %v1189, 0
        %v5149 = vadd.f32 %v5142, %v5147
        %v5150 = vadd.f32 %v5143, %v5147
        %v5151 = vadd.f32 %v5144, %v5147
        %v5152 = vadd.f32 %v5145, %v5147
        %5153 = vadd.xlane.f32.xlu0 %v5149
        %v5154 = vpop.xlane.xlu0 %5153
        %5155 = vadd.xlane.f32.xlu0 %v5150
        %v5156 = vpop.xlane.xlu0 %5155
        %5157 = vadd.xlane.f32.xlu0 %v5151
        %v5158 = vpop.xlane.xlu0 %5157
        %5159 = vadd.xlane.f32.xlu0 %v5152
        %v5160 = vpop.xlane.xlu0 %5159
        %v5161 = vmul.f32 %v5154, %v4926
        %v5162 = vmul.f32 %v5156, %v4926
        %v5163 = vmul.f32 %v5158, %v4926
        %v5164 = vmul.f32 %v5160, %v4926
        %v5165 = vsub.f32 %v5149, %v5161
        %v5166 = vsub.f32 %v5150, %v5162
        %v5167 = vsub.f32 %v5151, %v5163
        %v5168 = vsub.f32 %v5152, %v5164
        %v5169 = vmul.f32 %v5165, %v5165
        %v5170 = vmul.f32 %v5166, %v5166
        %v5171 = vmul.f32 %v5167, %v5167
        %v5172 = vmul.f32 %v5168, %v5168
        %5173 = vadd.xlane.f32.xlu0 %v5169
        %v5174 = vpop.xlane.xlu0 %5173
        %5175 = vadd.xlane.f32.xlu0 %v5170
        %v5176 = vpop.xlane.xlu0 %5175
        %5177 = vadd.xlane.f32.xlu0 %v5171
        %v5178 = vpop.xlane.xlu0 %5177
        %5179 = vadd.xlane.f32.xlu0 %v5172
        %v5180 = vpop.xlane.xlu0 %5179
        %v5181 = vmul.f32 %v5174, %v4926
        %v5182 = vmul.f32 %v5176, %v4926
        %v5183 = vmul.f32 %v5178, %v4926
        %v5184 = vmul.f32 %v5180, %v4926
        %v5185 = vadd.f32 %v5181, 1e-05
        %v5186 = vadd.f32 %v5182, 1e-05
        %v5187 = vadd.f32 %v5183, 1e-05
        %v5188 = vadd.f32 %v5184, 1e-05
        %v5189 = vrsqrt.pop %v5185
        %v5190 = vmul.f32 %v5189, %v5185
        %v5191 = vmul.f32 %v5190, %v5189
        %v5192 = vmul.f32 0.5, %v5191
        %v5193 = vsub.f32 1.5, %v5192
        %v5194 = vmul.f32 %v5189, %v5193
        %vm5195 = vweird.f32 %v5185
        %vm5196 = vweird.f32 %v5189
        %vm5197 = vmor %vm5195, %vm5196
        %v5198 = vsel %vm5197, %v5189, %v5194
        %v5199 = vrsqrt.pop %v5186
        %v5200 = vmul.f32 %v5199, %v5186
        %v5201 = vmul.f32 %v5200, %v5199
        %v5202 = vmul.f32 0.5, %v5201
        %v5203 = vsub.f32 1.5, %v5202
        %v5204 = vmul.f32 %v5199, %v5203
        %vm5205 = vweird.f32 %v5186
        %vm5206 = vweird.f32 %v5199
        %vm5207 = vmor %vm5205, %vm5206
        %v5208 = vsel %vm5207, %v5199, %v5204
        %v5209 = vrsqrt.pop %v5187
        %v5210 = vmul.f32 %v5209, %v5187
        %v5211 = vmul.f32 %v5210, %v5209
        %v5212 = vmul.f32 0.5, %v5211
        %v5213 = vsub.f32 1.5, %v5212
        %v5214 = vmul.f32 %v5209, %v5213
        %vm5215 = vweird.f32 %v5187
        %vm5216 = vweird.f32 %v5209
        %vm5217 = vmor %vm5215, %vm5216
        %v5218 = vsel %vm5217, %v5209, %v5214
        %v5219 = vrsqrt.pop %v5188
        %v5220 = vmul.f32 %v5219, %v5188
        %v5221 = vmul.f32 %v5220, %v5219
        %v5222 = vmul.f32 0.5, %v5221
        %v5223 = vsub.f32 1.5, %v5222
        %v5224 = vmul.f32 %v5219, %v5223
        %vm5225 = vweird.f32 %v5188
        %vm5226 = vweird.f32 %v5219
        %vm5227 = vmor %vm5225, %vm5226
        %v5228 = vsel %vm5227, %v5219, %v5224
        %v5229 = vmul.f32 %v5165, %v5198
        %v5230 = vmul.f32 %v5166, %v5208
        %v5231 = vmul.f32 %v5167, %v5218
        %v5232 = vmul.f32 %v5168, %v5228
        %v5234 = vperm.slane %v1121, 0
        %v5236 = vmul.f32 %v5229, %v5234
        %v5237 = vmul.f32 %v5230, %v5234
        %v5238 = vmul.f32 %v5231, %v5234
        %v5239 = vmul.f32 %v5232, %v5234
        %v5241 = vperm.slane %v1123, 0
        %v5243 = vadd.f32 %v5236, %v5241
        %v5244 = vadd.f32 %v5237, %v5241
        %v5245 = vadd.f32 %v5238, %v5241
        %v5246 = vadd.f32 %v5239, %v5241
        %vm5247 = vcmask 1044480
        %v5248 = vsel %vm5247, %v5243, 0.0
        %v5249 = vrot.slane %v5248, 4
        %v5250 = vadd.f32 %v5248, %v5249
        %v5251 = vrot.slane %v5250, 2
        %v5252 = vadd.f32 %v5250, %v5251
        %v5253 = vrot.slane %v5252, 1
        %v5254 = vadd.f32 %v5252, %v5253
        %v5255 = vsel %vm5247, %v5244, 0.0
        %v5256 = vrot.slane %v5255, 4
        %v5257 = vadd.f32 %v5255, %v5256
        %v5258 = vrot.slane %v5257, 2
        %v5259 = vadd.f32 %v5257, %v5258
        %v5260 = vrot.slane %v5259, 1
        %v5261 = vadd.f32 %v5259, %v5260
        %v5262 = vsel %vm5247, %v5245, 0.0
        %v5263 = vrot.slane %v5262, 4
        %v5264 = vadd.f32 %v5262, %v5263
        %v5265 = vrot.slane %v5264, 2
        %v5266 = vadd.f32 %v5264, %v5265
        %v5267 = vrot.slane %v5266, 1
        %v5268 = vadd.f32 %v5266, %v5267
        %v5269 = vsel %vm5247, %v5246, 0.0
        %v5270 = vrot.slane %v5269, 4
        %v5271 = vadd.f32 %v5269, %v5270
        %v5272 = vrot.slane %v5271, 2
        %v5273 = vadd.f32 %v5271, %v5272
        %v5274 = vrot.slane %v5273, 1
        %v5275 = vadd.f32 %v5273, %v5274
        %v5276 = vrcp.pop 5.0
        %v5277 = vmul.f32 5.0, %v5276
        %v5278 = vsub.f32 1.0, %v5277
        %v5279 = vmul.f32 %v5276, %v5278
        %v5280 = vadd.f32 %v5276, %v5279
        %vm5281 = vweird.f32 %v5276
        %v5282 = vsel %vm5281, %v5276, %v5280
        %v5283 = vmul.f32 %v5254, %v5282
        %v5284 = vmul.f32 %v5261, %v5282
        %v5285 = vmul.f32 %v5268, %v5282
        %v5286 = vmul.f32 %v5275, %v5282
        %v5288 = vperm.slane %v1206, 0
        %vm5294 = vcmask 1041409
        %v5295 = vsel %vm5294, %v5284, %v5283
        %vm5296 = vcmask 1042434
        %v5297 = vsel %vm5296, %v5285, %v5295
        %vm5298 = vcmask 1043459
        %v5299 = vsel %vm5298, %v5286, %v5297
        %5301 = vmatpush.msra.mxu0 %v1205
        %5302 = vmatpush.msra.mxu0 %v1204
        %5303 = vmatpush.msra.mxu0 %v1203
        %5304 = vmatpush.msra.mxu0 %v1202
        %5305 = vmatpush.msra.mxu0 %v1201
        %5306 = vmatpush.msra.mxu0 %v1200
        %5307 = vmatpush.msra.mxu0 %v1199
        %5308 = vmatpush.msra.mxu0 %v1198
        %5309 = vmatpush.msra.mxu0 %v1197
        %5310 = vmatpush.msra.mxu0 %v1196
        %5311 = vmatpush.msra.mxu0 %v1195
        %5312 = vmatpush.msra.mxu0 %v1194
        %5313 = vmatpush.msra.mxu0 %v1193
        %5314 = vmatpush.msra.mxu0 %v1192
        %5315 = vmatpush.msra.mxu0 %v1191
        %5316 = vmatpush.msra.mxu0 %v1190
        %5317 = vmatmul.f32.gmra.mxu0 %v5299
        %v5318 = vpop.f32.mrf.mxu0
        %v5319 = vadd.f32 %v5288, %v5318
        %5320 = vdwg.mxu0
        %v5322 = vrot.slane %v5319, 1
        %v5323 = vrot.slane %v5319, 2
        %v5324 = vrot.slane %v5319, 3
        %5328 = vst [vmem:[%s908] sm:$0x1] %v5319
        %5329 = vst [vmem:[%s908 + $0x1] sm:$0x1] %v5322
        %5330 = vst [vmem:[%s908 + $0x2] sm:$0x1] %v5323
        %5331 = vst [vmem:[%s908 + $0x3] sm:$0x1] %v5324
        %s5332 = sand.u32 %s570, 1
        %s5333 = scalar_lea.sflag [#allocation5], %s5332
        %s5334 = sand.u32 %s570, 1
        %s5335 = smul.addr %s5334, 4
        %s5336 = scalar_lea.vmem [#allocation18], %s5335
        // Predicated region
        $region153: #{tpu_custom_call.1} parent=115 // pred_check
          %p5337 = pneg %p580
        $region154: #{tpu_custom_call.1} parent=115 // pred_check_branch
          %5339 = sbr.rel (%p5337) target = $region156
        $region155: #{tpu_custom_call.1} parent=115 // pred_region
          %s5340 = smul.u32 4, %s43
          %5342 = vsyncadd %s5333, 0
          %s5343 = scalar_lea.hbm %s24, %s5340
          %s5344 = sshll.u32 %s5336, 4
          %s5345 = int_to_ptr.vmem [resolvable:$true] %s5344
          %s5346 = sshll.u32 %s5343, 4
          %s5347 = int_to_ptr.hbm [resolvable:$true] %s5346
          %5352 = dma.vmem_to_hbm [thread:$0]  %s5345, 64, %s5347, %s5333, 16, 16, 1
        $region156: #{tpu_custom_call.1} parent=115 // pred_fallthru
          _
      $region116: #{tpu_custom_call.1} parent=5 // pred_fallthru
        _
      %p5353 = scmp.le.s32.totalorder 2, %s38
      // Predicated region
      $region157: #{tpu_custom_call.1} parent=5 // pred_check
        %p5354 = pneg %p5353
      $region158: #{tpu_custom_call.1} parent=5 // pred_check_branch
        %5356 = sbr.rel (%p5354) target = $region160
      $region159: #{tpu_custom_call.1} parent=5 // pred_region
        %s5357 = ssub.s32 %s38, 2
        // Predicated region
        $region161: #{tpu_custom_call.1} parent=159 // pred_check
          %p5358 = pneg %p586
        $region162: #{tpu_custom_call.1} parent=159 // pred_check_branch
          %5360 = sbr.rel (%p5358) target = $region164
        $region163: #{tpu_custom_call.1} parent=159 // pred_region
          %s5361 = sand.u32 %s571, 1
          %s5362 = scalar_lea.sflag [#allocation5], %s5361
          %s5363 = sand.u32 %s571, 1
          %s5364 = smul.addr %s5363, 4
          %s5365 = scalar_lea.vmem [#allocation18], %s5364
          %5367 = dma.done %s5362, 64
        $region164: #{tpu_custom_call.1} parent=159 // pred_fallthru
          _
      $region160: #{tpu_custom_call.1} parent=5 // pred_fallthru
        _
    $region6: #{tpu_custom_call.1} parent=1 // loop_footer
      %s42 = sadd.s32 1, %s38
    $region7: #{tpu_custom_call.1} parent=1 // loop_footer_branch
      %37 = sbr.rel target = $region3
    $region8: #{tpu_custom_call.1} parent=1 // loop_exit
      _
    %5368 = vsyncpa [#allocation4], 1
    %s5369 = scalar_lea.sflag [#allocation4], 1
    %5370 = vsyncpa %s5369, 1
    %5371 = vsyncpa [#allocation7], 1
    %5372 = vsyncpa [#allocation10], 1
    %5373 = vsyncpa [#allocation13], 1
    %5374 = vsyncpa [#allocation16], 1
    %5375 = vsyncpa [#allocation5], 1
    %s5376 = scalar_lea.sflag [#allocation5], 1
    %5377 = vsyncpa %s5376, 1

</llo_original>
